<compile_context>
chip_gen: v6e
topology: v6e:2x2x1
jax: 0.10.0
libtpu: 0.0.40
codegen_flags: <defaults>
</compile_context>

<pallas_src>
import jax
import jax.numpy as jnp
from jax.experimental import pallas as pl
from jax.experimental.pallas import tpu as pltpu

E = 256          # embed_dim  (matches the module)
NH = 16          # num_heads  (matches the module)
HD = E // NH     # head_dim = 16
NQ = 1           # num_query  (matches the module)
C_IN = 8         # input feature channels (small synthetic choice)


# ------------------------------ fused kernel -------------------------------

def _encoder_step_kernel(q_ref, kvp_ref, w_ref, b_ref, g_ref, gt_ref, s_ref,
                         out_ref):
    """One (batch-tile, image) step of the encoder loop, fully fused.

    grid = (B // TB, num_imgs).  The image axis MUST stay innermost and
    "arbitrary": prev_embed is carried in out_ref, which is resident in VMEM
    across that axis because its block index is constant in i (reset at i==0).
    """
    i = pl.program_id(1)                     # image index
    f32, bf16 = jnp.float32, jnp.bfloat16

    q2d = q_ref[:, 0, :]                     # (TB, E) f32 original query rows

    # prev_embed is None on the first image -> TSA values come from the query.
    @pl.when(i == 0)
    def _():
        out_ref[:, 0, :] = q2d.astype(out_ref.dtype)

    prev = out_ref[:, 0, :].astype(f32)      # (TB, E) carried post-LN output

    def mm(a, w, bias_row):                  # bf16 MXU matmul, f32 accumulate
        return jnp.dot(a.astype(bf16), w, preferred_element_type=f32) + bias_row

    # ---- TemporalSelfAttention (placeholder MHA; key length == 1 so softmax
    #      is exactly 1).  Folded offline: x_t = q + prev@(Wv Wo) + (bv Wo+bo).
    x_t = q2d + mm(prev, w_ref[:, 0 * E:1 * E], b_ref[0])           # (TB, E)

    # ---- SpatialCrossAttention (placeholder MHA over the h*w tokens) -------
    kp = kvp_ref[0, :, :, :E]                # (TB, hw, E) bf16 pre-projected K
    vp = kvp_ref[0, :, :, E:]                # (TB, hw, E) bf16 pre-projected V
    TB, hw, _ = kp.shape

    qp = mm(x_t, w_ref[:, 1 * E:2 * E], b_ref[1])   # (TB, E); 1/sqrt(HD) folded

    # Per-head scores via the 0/1 head-segment matrix G (no transposes):
    #   s[b, k, h] = sum_{e in head h} qp[b, e] * kp[b, k, e]
    prod = kp * qp.astype(bf16)[:, None, :]                          # (TB,hw,E)
    s = jnp.dot(prod.reshape(TB * hw, E), g_ref[...],
                preferred_element_type=f32).reshape(TB, hw, NH)
    s = s - jnp.max(s, axis=1, keepdims=True)
    p = jnp.exp(s)
    p = p * pl.reciprocal(jnp.sum(p, axis=1, keepdims=True), approx=True)

    # Broadcast head probabilities back to E lanes, then contract the hw axis
    # on the MXU via the 0/1 batch-segment matrix (no cross-sublane reduce).
    p_full = jnp.dot(p.reshape(TB * hw, NH).astype(bf16), gt_ref[...],
                     preferred_element_type=f32)                     # (TB*hw,E)
    pfv = p_full * vp.reshape(TB * hw, E).astype(f32)                # f32
    attn = jnp.dot(s_ref[...], pfv, preferred_element_type=f32)      # (TB, E)
    x_s = x_t + mm(attn, w_ref[:, 2 * E:3 * E], b_ref[2])            # residual

    # output.mean(1) is the identity for num_query == 1 -> dropped.

    # ---- MLP + residual + LayerNorm (statistics in f32) --------------------
    h1 = jnp.maximum(mm(x_s, w_ref[:, 3 * E:4 * E], b_ref[3]), 0.0)
    y = mm(h1, w_ref[:, 4 * E:5 * E], b_ref[4]) + x_s
    mu = jnp.mean(y, axis=-1, keepdims=True)
    d = y - mu
    var = jnp.mean(d * d, axis=-1, keepdims=True)
    out = (d * jax.lax.rsqrt(var + 1e-5)) * b_ref[5] + b_ref[6]

    out_ref[:, 0, :] = out.astype(out_ref.dtype)     # output AND carry to i+1


# ------------------------------ wrapper (JAX) -------------------------------

def _pick_tb(batch, max_tb=16):
    """Largest divisor of `batch` <= max_tb, preferring >= 2 grid blocks on
    the (parallel) batch axis so both v7x TensorCores get work."""
    divs = [d for d in range(1, batch + 1) if batch % d == 0 and d <= max_tb]
    two_block = [d for d in divs if batch // d >= 2]
    return max(two_block) if two_block else max(divs)


def encoder_forward(query, x, params, *, tb=None):
    """query: (NQ, E)   x: (B, num_imgs, C, h, w) NCHW   ->   (B, 1, E)"""
    B, num_imgs, C, h, w = x.shape
    hw = h * w
    TB = _pick_tb(B) if tb is None else tb
    assert B % TB == 0

    f32, bf16 = jnp.float32, jnp.bfloat16

    # (the reference module also computes get_reference_points here, but its
    #  result is never used, so it is omitted from the fused graph)

    # query.unsqueeze(0).repeat(B, 1, 1)
    q3d = jnp.broadcast_to(query[None].astype(f32), (B, NQ, E))

    scale = 1.0 / float(HD) ** 0.5

    # --- exact offline linear folds -----------------------------------------
    # TSA (softmax over one key == 1):  x_t = q + prev @ (Wv Wo) + (bv Wo + bo)
    w_tsa = params["tsa_wv"] @ params["tsa_wo"]                       # (E, E)
    b_tsa = params["tsa_bv"] @ params["tsa_wo"] + params["tsa_bo"]    # (E,)
    # SCA: fuse K|V projections and fold the input feature projection:
    #   kvp = feat @ (Wf [Wk|Wv]) + (bf [Wk|Wv] + [bk|bv])
    wkv = jnp.concatenate([params["sca_wk"], params["sca_wv"]], axis=1)   # (E,2E)
    bkv = jnp.concatenate([params["sca_bk"], params["sca_bv"]], axis=0)   # (2E,)
    wf_kv = params["sca_wf"] @ wkv                                        # (C,2E)
    bf_kv = params["sca_bf"] @ wkv + bkv                                  # (2E,)

    # --- pre-project image features outside the kernel (one lane-dense GEMM) -
    # NCHW -> (num_imgs, B, h*w, C) tokens -> (num_imgs, B, h*w, 2E) bf16 K|V.
    feat = jnp.transpose(x, (1, 0, 3, 4, 2)).reshape(num_imgs * B * hw, C)
    kvp = jnp.dot(feat.astype(bf16), wf_kv.astype(bf16),
                  preferred_element_type=f32) + bf_kv
    kvp = kvp.astype(bf16).reshape(num_imgs, B, hw, 2 * E)

    # --- pack the resident operands -----------------------------------------
    # Five (E,E) weights in one lane-packed bf16 slab (1/sqrt(HD) folded in Wq)
    w_pack = jnp.concatenate(
        [w_tsa, params["sca_wq"] * scale, params["sca_wo"],
         params["mlp_w1"], params["mlp_w2"]], axis=1).astype(bf16)    # (E, 5E)
    # Seven bias/affine rows in one (8, E) f32 tile (row 7 is padding)
    b_pack = jnp.stack(
        [b_tsa, params["sca_bq"] * scale, params["sca_bo"],
         params["mlp_b1"], params["mlp_b2"], params["ln_g"], params["ln_b"],
         jnp.zeros((E,), f32)], axis=0).astype(f32)                   # (8, E)

    # 0/1 head-segment matrix (and its transpose) for per-head score/expand.
    g = (jnp.arange(E)[:, None] // HD == jnp.arange(NH)[None, :]).astype(bf16)
    gt = jnp.transpose(g)                                             # (NH, E)
    # 0/1 batch-segment matrix: contracts the hw axis per batch row on the MXU.
    s_sel = (jnp.arange(TB)[:, None] ==
             jnp.arange(TB * hw)[None, :] // hw).astype(f32)          # (TB, TB*hw)

    residents = [w_pack, b_pack, g, gt, s_sel]

    def resident(arr):   # whole array resident in VMEM across all grid steps
        nd = arr.ndim
        return pl.BlockSpec(arr.shape, lambda b, i, _n=nd: (0,) * _n)

    grid_spec = pltpu.PrefetchScalarGridSpec(
        num_scalar_prefetch=0,
        # Batch tiles are independent ("parallel"); the image axis must stay
        # innermost + "arbitrary" because out_ref carries prev_embed across it.
        grid=(B // TB, num_imgs),
        in_specs=[pl.BlockSpec((TB, 1, E), lambda b, i: (b, 0, 0)),           # query
                  pl.BlockSpec((1, TB, hw, 2 * E), lambda b, i: (i, b, 0, 0)) # K|V
                  ] + [resident(a) for a in residents],
        out_specs=pl.BlockSpec((TB, 1, E), lambda b, i: (b, 0, 0)),
    )

    return pl.pallas_call(
        _encoder_step_kernel,
        out_shape=jax.ShapeDtypeStruct((B, 1, E), f32),
        grid_spec=grid_spec,
        compiler_params=pltpu.CompilerParams(
            dimension_semantics=("parallel", "arbitrary")),
    )(q3d, kvp, *residents)


def init_params(key):
    # tsa_wq / tsa_wk (and their biases) are created for interface parity with
    # an MHA module but are mathematically dead when the key length is 1.
    specs = []
    for p in ("tsa", "sca"):
        for s in ("q", "k", "v", "o"):
            specs.append((f"{p}_w{s}", f"{p}_b{s}", E, E))
    specs.append(("sca_wf", "sca_bf", C_IN, E))
    specs.append(("mlp_w1", "mlp_b1", E, E))
    specs.append(("mlp_w2", "mlp_b2", E, E))
    params = {}
    keys = jax.random.split(key, len(specs))
    for (wn, bn, fi, fo), k in zip(specs, keys):
        params[wn] = jax.random.normal(k, (fi, fo), jnp.float32) * 0.02
        params[bn] = jnp.zeros((fo,), jnp.float32)
    params["ln_g"] = jnp.ones((E,), jnp.float32)
    params["ln_b"] = jnp.zeros((E,), jnp.float32)
    return params


if __name__ == "__main__":
    key = jax.random.PRNGKey(0)
    kq, kx, kp = jax.random.split(key, 3)

    B, num_imgs, h, w = 16, 2, 8, 8          # -> TB = 8, grid = (2, 2)
    query = jax.random.normal(kq, (NQ, E), jnp.float32)              # (1, 256)
    x = jax.random.normal(kx, (B, num_imgs, C_IN, h, w), jnp.float32)
    params = init_params(kp)

    fwd = jax.jit(encoder_forward)
    out = jax.block_until_ready(fwd(query, x, params))
    assert out.shape == (B, 1, E), out.shape
    assert bool(jnp.all(jnp.isfinite(out)))
    print("KERNEL_OK")
</pallas_src>

<mosaic_0001>
module attributes {stable_mosaic.version = 11 : i64} {
  func.func @_encoder_step_kernel(%arg0: i32, %arg1: i32, %arg2: memref<8x1x256xf32, #tpu.memory_space<vmem>>, %arg3: memref<1x8x64x512xbf16, #tpu.memory_space<vmem>>, %arg4: memref<256x1280xbf16, #tpu.memory_space<vmem>>, %arg5: memref<8x256xf32, #tpu.memory_space<vmem>>, %arg6: memref<256x16xbf16, #tpu.memory_space<vmem>>, %arg7: memref<16x256xbf16, #tpu.memory_space<vmem>>, %arg8: memref<8x512xf32, #tpu.memory_space<vmem>>, %arg9: memref<8x1x256xf32, #tpu.memory_space<vmem>>) attributes {dimension_semantics = [#tpu.dimension_semantics<parallel>, #tpu.dimension_semantics<arbitrary>], iteration_bounds = array<i64: 2, 2>, scalar_prefetch = 0 : i64, scratch_operands = 0 : i64, tpu.core_type = #tpu.core_type<tc>, window_params = [{transform_indices = @transform_0, window_bounds = array<i64: 8, 1, 256>}, {transform_indices = @transform_1, window_bounds = array<i64: 1, 8, 64, 512>}, {pipeline_mode = #tpu.pipeline_mode<synchronous>, transform_indices = @transform_2, window_bounds = array<i64: 256, 1280>}, {pipeline_mode = #tpu.pipeline_mode<synchronous>, transform_indices = @transform_3, window_bounds = array<i64: 8, 256>}, {pipeline_mode = #tpu.pipeline_mode<synchronous>, transform_indices = @transform_4, window_bounds = array<i64: 256, 16>}, {pipeline_mode = #tpu.pipeline_mode<synchronous>, transform_indices = @transform_5, window_bounds = array<i64: 16, 256>}, {pipeline_mode = #tpu.pipeline_mode<synchronous>, transform_indices = @transform_6, window_bounds = array<i64: 8, 512>}, {transform_indices = @transform_7, window_bounds = array<i64: 8, 1, 256>}]} {
    %c0 = arith.constant 0 : index
    %c0_0 = arith.constant 0 : index
    %c0_1 = arith.constant 0 : index
    %0 = vector.load %arg2[%c0, %c0_0, %c0_1] : memref<8x1x256xf32, #tpu.memory_space<vmem>>, vector<8x1x256xf32>
    %1 = vector.shape_cast %0 : vector<8x1x256xf32> to vector<8x256xf32>
    %c0_i32 = arith.constant 0 : i32
    %2 = arith.cmpi eq, %arg1, %c0_i32 : i32
    %3 = arith.extui %2 : i1 to i32
    %c0_i32_2 = arith.constant 0 : i32
    %4 = arith.cmpi ne, %3, %c0_i32_2 : i32
    scf.if %4 {
      %c0_52 = arith.constant 0 : index
      %c0_53 = arith.constant 0 : index
      %c0_54 = arith.constant 0 : index
      %112 = vector.load %arg9[%c0_52, %c0_53, %c0_54] : memref<8x1x256xf32, #tpu.memory_space<vmem>>, vector<8x1x256xf32>
      %113 = vector.shape_cast %112 : vector<8x1x256xf32> to vector<8x256xf32>
      %114 = vector.shape_cast %1 : vector<8x256xf32> to vector<8x1x256xf32>
      tpu.vector_store %arg9[%c0_52, %c0_53, %c0_54], %114 {strides = array<i32>} : memref<8x1x256xf32, #tpu.memory_space<vmem>>, vector<8x1x256xf32>,
    } else {
    }
    %c0_3 = arith.constant 0 : index
    %c0_4 = arith.constant 0 : index
    %c0_5 = arith.constant 0 : index
    %5 = vector.load %arg9[%c0_3, %c0_4, %c0_5] : memref<8x1x256xf32, #tpu.memory_space<vmem>>, vector<8x1x256xf32>
    %6 = vector.shape_cast %5 : vector<8x1x256xf32> to vector<8x256xf32>
    %c0_6 = arith.constant 0 : index
    %c0_7 = arith.constant 0 : index
    %7 = vector.load %arg4[%c0_6, %c0_7] : memref<256x1280xbf16, #tpu.memory_space<vmem>>, vector<256x256xbf16>
    %c0_8 = arith.constant 0 : index
    %c0_9 = arith.constant 0 : index
    %8 = vector.load %arg5[%c0_8, %c0_9] : memref<8x256xf32, #tpu.memory_space<vmem>>, vector<1x256xf32>
    %9 = vector.shape_cast %8 : vector<1x256xf32> to vector<256xf32>
    %10 = arith.truncf %6 : vector<8x256xf32> to vector<8x256xbf16>
    %cst = arith.constant dense<0.000000e+00> : vector<8x256xf32>
    %11 = tpu.matmul %10, %7, %cst {dimension_numbers = #tpu.dot_dimension_numbers<[1], [0], [0], [1], [0, 0, 1, 1], [], []>} : vector<8x256xbf16>, vector<256x256xbf16>, vector<8x256xf32> -> vector<8x256xf32>
    %12 = vector.shape_cast %9 : vector<256xf32> to vector<1x256xf32>
    %13 = vector.broadcast %12 : vector<1x256xf32> to vector<8x256xf32>
    %14 = arith.addf %11, %13 : vector<8x256xf32>
    %15 = arith.addf %1, %14 : vector<8x256xf32>
    %c0_10 = arith.constant 0 : index
    %c0_11 = arith.constant 0 : index
    %c0_12 = arith.constant 0 : index
    %c0_13 = arith.constant 0 : index
    %16 = vector.load %arg3[%c0_10, %c0_11, %c0_12, %c0_13] : memref<1x8x64x512xbf16, #tpu.memory_space<vmem>>, vector<1x8x64x256xbf16>
    %17 = vector.shape_cast %16 : vector<1x8x64x256xbf16> to vector<8x64x256xbf16>
    %c0_14 = arith.constant 0 : index
    %c0_15 = arith.constant 0 : index
    %c0_16 = arith.constant 0 : index
    %c256 = arith.constant 256 : index
    %18 = vector.load %arg3[%c0_14, %c0_15, %c0_16, %c256] : memref<1x8x64x512xbf16, #tpu.memory_space<vmem>>, vector<1x8x64x256xbf16>
    %19 = vector.shape_cast %18 : vector<1x8x64x256xbf16> to vector<8x64x256xbf16>
    %c0_17 = arith.constant 0 : index
    %c256_18 = arith.constant 256 : index
    %20 = vector.load %arg4[%c0_17, %c256_18] : memref<256x1280xbf16, #tpu.memory_space<vmem>>, vector<256x256xbf16>
    %c1 = arith.constant 1 : index
    %c0_19 = arith.constant 0 : index
    %21 = vector.load %arg5[%c1, %c0_19] : memref<8x256xf32, #tpu.memory_space<vmem>>, vector<1x256xf32>
    %22 = vector.shape_cast %21 : vector<1x256xf32> to vector<256xf32>
    %23 = arith.truncf %15 : vector<8x256xf32> to vector<8x256xbf16>
    %cst_20 = arith.constant dense<0.000000e+00> : vector<8x256xf32>
    %24 = tpu.matmul %23, %20, %cst_20 {dimension_numbers = #tpu.dot_dimension_numbers<[1], [0], [0], [1], [0, 0, 1, 1], [], []>} : vector<8x256xbf16>, vector<256x256xbf16>, vector<8x256xf32> -> vector<8x256xf32>
    %25 = vector.shape_cast %22 : vector<256xf32> to vector<1x256xf32>
    %26 = vector.broadcast %25 : vector<1x256xf32> to vector<8x256xf32>
    %27 = arith.addf %24, %26 : vector<8x256xf32>
    %28 = arith.truncf %27 : vector<8x256xf32> to vector<8x256xbf16>
    %29 = vector.shape_cast %28 : vector<8x256xbf16> to vector<8x1x256xbf16>
    %30 = vector.broadcast %29 : vector<8x1x256xbf16> to vector<8x64x256xbf16>
    %31 = arith.mulf %17, %30 : vector<8x64x256xbf16>
    %32 = vector.shape_cast %31 : vector<8x64x256xbf16> to vector<512x256xbf16>
    %c0_21 = arith.constant 0 : index
    %c0_22 = arith.constant 0 : index
    %33 = vector.load %arg6[%c0_21, %c0_22] : memref<256x16xbf16, #tpu.memory_space<vmem>>, vector<256x16xbf16>
    %cst_23 = arith.constant dense<0.000000e+00> : vector<512x16xf32>
    %34 = tpu.matmul %32, %33, %cst_23 {dimension_numbers = #tpu.dot_dimension_numbers<[1], [0], [0], [1], [0, 0, 1, 1], [], []>} : vector<512x256xbf16>, vector<256x16xbf16>, vector<512x16xf32> -> vector<512x16xf32>
    %35 = vector.shape_cast %34 : vector<512x16xf32> to vector<8x64x16xf32>
    %cst_24 = arith.constant dense<0xFF800000> : vector<8x16xf32>
    %36 = vector.multi_reduction <maximumf>, %35, %cst_24 [1] : vector<8x64x16xf32> to vector<8x16xf32>
    %37 = vector.shape_cast %36 : vector<8x16xf32> to vector<8x1x16xf32>
    %38 = vector.broadcast %37 : vector<8x1x16xf32> to vector<8x64x16xf32>
    %39 = arith.subf %35, %38 : vector<8x64x16xf32>
    %40 = math.exp %39 : vector<8x64x16xf32>
    %cst_25 = arith.constant dense<0.000000e+00> : vector<8x16xf32>
    %41 = vector.multi_reduction <add>, %40, %cst_25 [1] : vector<8x64x16xf32> to vector<8x16xf32>
    %42 = vector.shape_cast %41 : vector<8x16xf32> to vector<8x1x16xf32>
    %43 = tpu.reciprocal %42 {approx = true} : vector<8x1x16xf32> -> vector<8x1x16xf32>
    %44 = vector.broadcast %43 : vector<8x1x16xf32> to vector<8x64x16xf32>
    %45 = arith.mulf %40, %44 : vector<8x64x16xf32>
    %46 = vector.shape_cast %45 : vector<8x64x16xf32> to vector<512x16xf32>
    %47 = arith.truncf %46 : vector<512x16xf32> to vector<512x16xbf16>
    %c0_26 = arith.constant 0 : index
    %c0_27 = arith.constant 0 : index
    %48 = vector.load %arg7[%c0_26, %c0_27] : memref<16x256xbf16, #tpu.memory_space<vmem>>, vector<16x256xbf16>
    %cst_28 = arith.constant dense<0.000000e+00> : vector<512x256xf32>
    %49 = tpu.matmul %47, %48, %cst_28 {dimension_numbers = #tpu.dot_dimension_numbers<[1], [0], [0], [1], [0, 0, 1, 1], [], []>} : vector<512x16xbf16>, vector<16x256xbf16>, vector<512x256xf32> -> vector<512x256xf32>
    %50 = vector.shape_cast %19 : vector<8x64x256xbf16> to vector<512x256xbf16>
    %51 = arith.extf %50 : vector<512x256xbf16> to vector<512x256xf32>
    %52 = arith.mulf %49, %51 : vector<512x256xf32>
    %c0_29 = arith.constant 0 : index
    %c0_30 = arith.constant 0 : index
    %53 = vector.load %arg8[%c0_29, %c0_30] : memref<8x512xf32, #tpu.memory_space<vmem>>, vector<8x512xf32>
    %cst_31 = arith.constant dense<0.000000e+00> : vector<8x256xf32>
    %54 = tpu.matmul %53, %52, %cst_31 {dimension_numbers = #tpu.dot_dimension_numbers<[1], [0], [0], [1], [0, 0, 1, 1], [], []>} : vector<8x512xf32>, vector<512x256xf32>, vector<8x256xf32> -> vector<8x256xf32>
    %c0_32 = arith.constant 0 : index
    %c512 = arith.constant 512 : index
    %55 = vector.load %arg4[%c0_32, %c512] : memref<256x1280xbf16, #tpu.memory_space<vmem>>, vector<256x256xbf16>
    %c2 = arith.constant 2 : index
    %c0_33 = arith.constant 0 : index
    %56 = vector.load %arg5[%c2, %c0_33] : memref<8x256xf32, #tpu.memory_space<vmem>>, vector<1x256xf32>
    %57 = vector.shape_cast %56 : vector<1x256xf32> to vector<256xf32>
    %58 = arith.truncf %54 : vector<8x256xf32> to vector<8x256xbf16>
    %cst_34 = arith.constant dense<0.000000e+00> : vector<8x256xf32>
    %59 = tpu.matmul %58, %55, %cst_34 {dimension_numbers = #tpu.dot_dimension_numbers<[1], [0], [0], [1], [0, 0, 1, 1], [], []>} : vector<8x256xbf16>, vector<256x256xbf16>, vector<8x256xf32> -> vector<8x256xf32>
    %60 = vector.shape_cast %57 : vector<256xf32> to vector<1x256xf32>
    %61 = vector.broadcast %60 : vector<1x256xf32> to vector<8x256xf32>
    %62 = arith.addf %59, %61 : vector<8x256xf32>
    %63 = arith.addf %15, %62 : vector<8x256xf32>
    %c0_35 = arith.constant 0 : index
    %c768 = arith.constant 768 : index
    %64 = vector.load %arg4[%c0_35, %c768] : memref<256x1280xbf16, #tpu.memory_space<vmem>>, vector<256x256xbf16>
    %c3 = arith.constant 3 : index
    %c0_36 = arith.constant 0 : index
    %65 = vector.load %arg5[%c3, %c0_36] : memref<8x256xf32, #tpu.memory_space<vmem>>, vector<1x256xf32>
    %66 = vector.shape_cast %65 : vector<1x256xf32> to vector<256xf32>
    %67 = arith.truncf %63 : vector<8x256xf32> to vector<8x256xbf16>
    %cst_37 = arith.constant dense<0.000000e+00> : vector<8x256xf32>
    %68 = tpu.matmul %67, %64, %cst_37 {dimension_numbers = #tpu.dot_dimension_numbers<[1], [0], [0], [1], [0, 0, 1, 1], [], []>} : vector<8x256xbf16>, vector<256x256xbf16>, vector<8x256xf32> -> vector<8x256xf32>
    %69 = vector.shape_cast %66 : vector<256xf32> to vector<1x256xf32>
    %70 = vector.broadcast %69 : vector<1x256xf32> to vector<8x256xf32>
    %71 = arith.addf %68, %70 : vector<8x256xf32>
    %cst_38 = arith.constant 0.000000e+00 : f32
    %72 = vector.broadcast %cst_38 : f32 to vector<8x256xf32>
    %73 = arith.maximumf %71, %72 : vector<8x256xf32>
    %c0_39 = arith.constant 0 : index
    %c1024 = arith.constant 1024 : index
    %74 = vector.load %arg4[%c0_39, %c1024] : memref<256x1280xbf16, #tpu.memory_space<vmem>>, vector<256x256xbf16>
    %c4 = arith.constant 4 : index
    %c0_40 = arith.constant 0 : index
    %75 = vector.load %arg5[%c4, %c0_40] : memref<8x256xf32, #tpu.memory_space<vmem>>, vector<1x256xf32>
    %76 = vector.shape_cast %75 : vector<1x256xf32> to vector<256xf32>
    %77 = arith.truncf %73 : vector<8x256xf32> to vector<8x256xbf16>
    %cst_41 = arith.constant dense<0.000000e+00> : vector<8x256xf32>
    %78 = tpu.matmul %77, %74, %cst_41 {dimension_numbers = #tpu.dot_dimension_numbers<[1], [0], [0], [1], [0, 0, 1, 1], [], []>} : vector<8x256xbf16>, vector<256x256xbf16>, vector<8x256xf32> -> vector<8x256xf32>
    %79 = vector.shape_cast %76 : vector<256xf32> to vector<1x256xf32>
    %80 = vector.broadcast %79 : vector<1x256xf32> to vector<8x256xf32>
    %81 = arith.addf %78, %80 : vector<8x256xf32>
    %82 = arith.addf %81, %63 : vector<8x256xf32>
    %cst_42 = arith.constant dense<0.000000e+00> : vector<8xf32>
    %83 = vector.multi_reduction <add>, %82, %cst_42 [1] : vector<8x256xf32> to vector<8xf32>
    %84 = vector.shape_cast %83 : vector<8xf32> to vector<8x1xf32>
    %cst_43 = arith.constant 2.560000e+02 : f32
    %85 = vector.broadcast %cst_43 : f32 to vector<8x1xf32>
    %86 = arith.divf %84, %85 : vector<8x1xf32>
    %87 = vector.broadcast %86 : vector<8x1xf32> to vector<8x256xf32>
    %88 = arith.subf %82, %87 : vector<8x256xf32>
    %89 = arith.mulf %88, %88 : vector<8x256xf32>
    %cst_44 = arith.constant dense<0.000000e+00> : vector<8xf32>
    %90 = vector.multi_reduction <add>, %89, %cst_44 [1] : vector<8x256xf32> to vector<8xf32>
    %91 = vector.shape_cast %90 : vector<8xf32> to vector<8x1xf32>
    %cst_45 = arith.constant 2.560000e+02 : f32
    %92 = vector.broadcast %cst_45 : f32 to vector<8x1xf32>
    %93 = arith.divf %91, %92 : vector<8x1xf32>
    %cst_46 = arith.constant 9.99999974E-6 : f32
    %94 = vector.broadcast %cst_46 : f32 to vector<8x1xf32>
    %95 = arith.addf %93, %94 : vector<8x1xf32>
    %96 = math.rsqrt %95 : vector<8x1xf32>
    %97 = vector.broadcast %96 : vector<8x1xf32> to vector<8x256xf32>
    %98 = arith.mulf %88, %97 : vector<8x256xf32>
    %c5 = arith.constant 5 : index
    %c0_47 = arith.constant 0 : index
    %99 = vector.load %arg5[%c5, %c0_47] : memref<8x256xf32, #tpu.memory_space<vmem>>, vector<1x256xf32>
    %100 = vector.shape_cast %99 : vector<1x256xf32> to vector<256xf32>
    %101 = vector.shape_cast %100 : vector<256xf32> to vector<1x256xf32>
    %102 = vector.broadcast %101 : vector<1x256xf32> to vector<8x256xf32>
    %103 = arith.mulf %98, %102 : vector<8x256xf32>
    %c6 = arith.constant 6 : index
    %c0_48 = arith.constant 0 : index
    %104 = vector.load %arg5[%c6, %c0_48] : memref<8x256xf32, #tpu.memory_space<vmem>>, vector<1x256xf32>
    %105 = vector.shape_cast %104 : vector<1x256xf32> to vector<256xf32>
    %106 = vector.shape_cast %105 : vector<256xf32> to vector<1x256xf32>
    %107 = vector.broadcast %106 : vector<1x256xf32> to vector<8x256xf32>
    %108 = arith.addf %103, %107 : vector<8x256xf32>
    %c0_49 = arith.constant 0 : index
    %c0_50 = arith.constant 0 : index
    %c0_51 = arith.constant 0 : index
    %109 = vector.load %arg9[%c0_49, %c0_50, %c0_51] : memref<8x1x256xf32, #tpu.memory_space<vmem>>, vector<8x1x256xf32>
    %110 = vector.shape_cast %109 : vector<8x1x256xf32> to vector<8x256xf32>
    %111 = vector.shape_cast %108 : vector<8x256xf32> to vector<8x1x256xf32>
    tpu.vector_store %arg9[%c0_49, %c0_50, %c0_51], %111 {strides = array<i32>} : memref<8x1x256xf32, #tpu.memory_space<vmem>>, vector<8x1x256xf32>,
    return
  }
  func.func @transform_0(%arg0: i32, %arg1: i32) -> (i32, i32, i32) {
    %c0_i32 = arith.constant 0 : i32
    %c0_i32_0 = arith.constant 0 : i32
    %c0_i32_1 = arith.constant 0 : i32
    return %arg0, %c0_i32, %c0_i32_0 : i32, i32, i32
  }
  func.func @transform_1(%arg0: i32, %arg1: i32) -> (i32, i32, i32, i32) {
    %c0_i32 = arith.constant 0 : i32
    %c0_i32_0 = arith.constant 0 : i32
    %c0_i32_1 = arith.constant 0 : i32
    return %arg1, %arg0, %c0_i32, %c0_i32_0 : i32, i32, i32, i32
  }
  func.func @transform_2(%arg0: i32, %arg1: i32) -> (i32, i32) {
    %c0_i32 = arith.constant 0 : i32
    %c0_i32_0 = arith.constant 0 : i32
    %c0_i32_1 = arith.constant 0 : i32
    return %c0_i32, %c0_i32_0 : i32, i32
  }
  func.func @transform_3(%arg0: i32, %arg1: i32) -> (i32, i32) {
    %c0_i32 = arith.constant 0 : i32
    %c0_i32_0 = arith.constant 0 : i32
    %c0_i32_1 = arith.constant 0 : i32
    return %c0_i32, %c0_i32_0 : i32, i32
  }
  func.func @transform_4(%arg0: i32, %arg1: i32) -> (i32, i32) {
    %c0_i32 = arith.constant 0 : i32
    %c0_i32_0 = arith.constant 0 : i32
    %c0_i32_1 = arith.constant 0 : i32
    return %c0_i32, %c0_i32_0 : i32, i32
  }
  func.func @transform_5(%arg0: i32, %arg1: i32) -> (i32, i32) {
    %c0_i32 = arith.constant 0 : i32
    %c0_i32_0 = arith.constant 0 : i32
    %c0_i32_1 = arith.constant 0 : i32
    return %c0_i32, %c0_i32_0 : i32, i32
  }
  func.func @transform_6(%arg0: i32, %arg1: i32) -> (i32, i32) {
    %c0_i32 = arith.constant 0 : i32
    %c0_i32_0 = arith.constant 0 : i32
    %c0_i32_1 = arith.constant 0 : i32
    return %c0_i32, %c0_i32_0 : i32, i32
  }
  func.func @transform_7(%arg0: i32, %arg1: i32) -> (i32, i32, i32) {
    %c0_i32 = arith.constant 0 : i32
    %c0_i32_0 = arith.constant 0 : i32
    %c0_i32_1 = arith.constant 0 : i32
    return %arg0, %c0_i32, %c0_i32_0 : i32, i32, i32
  }
}

</mosaic_0001>

<llo_original>
// kernel: encoder_forward.1
$region0: #{encoder_forward.1}
  #allocation0 [shape = 'u32[]', space=smem, size = 0x4, offset = 0x4, fixed_abs, tag = 'smem constant byte address 0x4 - core index']
  #allocation1 [shape = 'u32[144,128]{1,0:T(1,128)}', space=vmem, size = 0x12000, scoped, tag = 'internal scratch']
  %s0 = inlined_call_operand.vmem [shape: f32[16,1,256], index: 0, kind: input, shape index: {}]
  %s1 = inlined_call_operand.vmem [shape: bf16[2,16,64,512], index: 1, kind: input, shape index: {}]
  %s2 = inlined_call_operand.vmem [shape: bf16[256,1280], index: 2, kind: input, shape index: {}]
  %s3 = inlined_call_operand.vmem [shape: f32[8,256], index: 3, kind: input, shape index: {}]
  %s4 = inlined_call_operand.vmem [shape: bf16[256,16], index: 4, kind: input, shape index: {}]
  %s5 = inlined_call_operand.vmem [shape: bf16[16,256], index: 5, kind: input, shape index: {}]
  %s6 = inlined_call_operand.vmem [shape: f32[8,512], index: 6, kind: input, shape index: {}]
  %s7 = inlined_call_operand.hbm [shape: f32[16,1,256], index: 7, kind: output, shape index: {}]
  %s8 = sld [smem:[#allocation0]]
  $region65: #{encoder_forward.1} parent=0
    _
  %s10 = ssub.s32 1, %s8
  %s11 = scalar_select 0, %s10, %s8
  $region1: #{encoder_forward.1} parent=0
    #allocation2 [shape = 'u8[16384]{0}', space=vmem, size = 0x4000, scoped, tag = 'output window, operand 0']
    #allocation3 [shape = 's32[2]{0}', space=sflag, size = 0x8, scoped, tag = 'scoped memory for encoder_forward.1']
    %12 = vsyncpa [#allocation3], 0
    %s13 = scalar_lea.sflag [#allocation3], 1
    %14 = vsyncpa %s13, 0
    loop: start=0, step=1, limit=6
    $region2: #{encoder_forward.1} parent=1 // loop_pre_header
      _
    $region3: #{encoder_forward.1} parent=1 // loop_header
      %s16 = sphi 0, %s20
      %p17 = scmp.ge.s32.totalorder %s16, 6
      %s23 = sphi 0, %s35
      %s24 = sphi 0, %s31
      %s25 = sphi 0, %s23
      %s26 = sphi 0, %s24
      %s27 = sphi 0, %s25
      %s28 = sphi 0, %s26
      %s38 = sphi 0, %s40
      %s41 = sphi 0, %s38
      %s42 = sphi 0, %s41
      %s58 = sphi 0, %s42
      %s66 = sphi 0, %s68
      %s69 = sphi 0, %s66
      %s70 = sphi 0, %s69
      %s86 = sphi 0, %s70
      %s90 = sphi 0, %s90
      %s92 = sphi 0, %s90
      %s93 = sphi 0, %s92
      %s107 = sphi 0, %s93
      %s111 = sphi 0, %s111
      %s113 = sphi 0, %s111
      %s114 = sphi 0, %s113
      %s128 = sphi 0, %s114
      %s132 = sphi 0, %s132
      %s134 = sphi 0, %s132
      %s135 = sphi 0, %s134
      %s149 = sphi 0, %s135
      %s153 = sphi 0, %s153
      %s155 = sphi 0, %s153
      %s156 = sphi 0, %s155
      %s170 = sphi 0, %s156
      %s174 = sphi 0, %s174
      %s176 = sphi 0, %s174
      %s177 = sphi 0, %s176
      %s191 = sphi 0, %s177
      %s197 = sphi 0, %s199
      %s200 = sphi 0, %s197
      %s201 = sphi 0, %s200
      %s217 = sphi 0, %s201
    $region4: #{encoder_forward.1} parent=1 // loop_header_branch
      %19 = sbr.rel (%p17) target = $region8
    $region5: #{encoder_forward.1} parent=1 // loop_body
      %s21 = ssub.s32 %s16, 1
      %s22 = ssub.s32 %s16, 2
      %s29 = sadd.s32 1, %s24
      %p30 = scmp.ge.s32.totalorder %s29, 2
      %s31 = scalar_select %p30, 0, %s29
      %s32 = sadd.s32 1, %s23
      %s33 = scalar_select %p30, %s32, %s23
      %p34 = scmp.ge.s32.totalorder %s33, 2
      %s35 = scalar_select %p34, 0, %s33
      %s36 = ssub.s32 %s23, %s35
      %p37 = scmp.eq.s32.totalorder %s36, 0
      %s39 = sadd.s32 %s38, 1
      %s40 = scalar_select %p37, %s38, %s39
      %p43 = pneg %p37
      %p44 = scmp.eq.s32.totalorder %s16, 3
      %p45 = por %p43, %p44
      %p46 = scmp.ne.s32.totalorder %s38, %s41
      %p47 = scmp.eq.s32.totalorder %s16, 0
      %p48 = por %p46, %p47
      %p49 = scmp.ne.s32.totalorder %s38, %s41
      %p50 = scmp.eq.s32.totalorder %s21, 3
      %p51 = por %p49, %p50
      %p52 = scmp.ne.s32.totalorder %s41, %s42
      %p53 = scmp.eq.s32.totalorder %s21, 0
      %p54 = por %p52, %p53
      %p55 = scmp.ne.s32.totalorder %s41, %s42
      %p56 = scmp.eq.s32.totalorder %s22, 3
      %p57 = por %p55, %p56
      %p59 = scmp.ne.s32.totalorder %s42, %s58
      %p60 = scmp.eq.s32.totalorder %s22, 0
      %p61 = por %p59, %p60
      %s62 = ssub.s32 %s24, %s31
      %s63 = ssub.s32 %s23, %s35
      %s64 = sor.u32 %s62, %s63
      %p65 = scmp.eq.s32.totalorder %s64, 0
      %s67 = sadd.s32 %s66, 1
      %s68 = scalar_select %p65, %s66, %s67
      %p71 = pneg %p65
      %p72 = scmp.eq.s32.totalorder %s16, 3
      %p73 = por %p71, %p72
      %p74 = scmp.ne.s32.totalorder %s66, %s69
      %p75 = scmp.eq.s32.totalorder %s16, 0
      %p76 = por %p74, %p75
      %p77 = scmp.ne.s32.totalorder %s66, %s69
      %p78 = scmp.eq.s32.totalorder %s21, 3
      %p79 = por %p77, %p78
      %p80 = scmp.ne.s32.totalorder %s69, %s70
      %p81 = scmp.eq.s32.totalorder %s21, 0
      %p82 = por %p80, %p81
      %p83 = scmp.ne.s32.totalorder %s69, %s70
      %p84 = scmp.eq.s32.totalorder %s22, 3
      %p85 = por %p83, %p84
      %p87 = scmp.ne.s32.totalorder %s70, %s86
      %p88 = scmp.eq.s32.totalorder %s22, 0
      %p89 = por %p87, %p88
      %s91 = sadd.s32 %s90, 1
      %p94 = scmp.eq.s32.totalorder %s16, 3
      %p95 = scmp.ne.s32.totalorder %s90, %s92
      %p96 = scmp.eq.s32.totalorder %s16, 0
      %p97 = por %p95, %p96
      %p98 = scmp.ne.s32.totalorder %s90, %s92
      %p99 = scmp.eq.s32.totalorder %s21, 3
      %p100 = por %p98, %p99
      %p101 = scmp.ne.s32.totalorder %s92, %s93
      %p102 = scmp.eq.s32.totalorder %s21, 0
      %p103 = por %p101, %p102
      %p104 = scmp.ne.s32.totalorder %s92, %s93
      %p105 = scmp.eq.s32.totalorder %s22, 3
      %p106 = por %p104, %p105
      %p108 = scmp.ne.s32.totalorder %s93, %s107
      %p109 = scmp.eq.s32.totalorder %s22, 0
      %p110 = por %p108, %p109
      %s112 = sadd.s32 %s111, 1
      %p115 = scmp.eq.s32.totalorder %s16, 3
      %p116 = scmp.ne.s32.totalorder %s111, %s113
      %p117 = scmp.eq.s32.totalorder %s16, 0
      %p118 = por %p116, %p117
      %p119 = scmp.ne.s32.totalorder %s111, %s113
      %p120 = scmp.eq.s32.totalorder %s21, 3
      %p121 = por %p119, %p120
      %p122 = scmp.ne.s32.totalorder %s113, %s114
      %p123 = scmp.eq.s32.totalorder %s21, 0
      %p124 = por %p122, %p123
      %p125 = scmp.ne.s32.totalorder %s113, %s114
      %p126 = scmp.eq.s32.totalorder %s22, 3
      %p127 = por %p125, %p126
      %p129 = scmp.ne.s32.totalorder %s114, %s128
      %p130 = scmp.eq.s32.totalorder %s22, 0
      %p131 = por %p129, %p130
      %s133 = sadd.s32 %s132, 1
      %p136 = scmp.eq.s32.totalorder %s16, 3
      %p137 = scmp.ne.s32.totalorder %s132, %s134
      %p138 = scmp.eq.s32.totalorder %s16, 0
      %p139 = por %p137, %p138
      %p140 = scmp.ne.s32.totalorder %s132, %s134
      %p141 = scmp.eq.s32.totalorder %s21, 3
      %p142 = por %p140, %p141
      %p143 = scmp.ne.s32.totalorder %s134, %s135
      %p144 = scmp.eq.s32.totalorder %s21, 0
      %p145 = por %p143, %p144
      %p146 = scmp.ne.s32.totalorder %s134, %s135
      %p147 = scmp.eq.s32.totalorder %s22, 3
      %p148 = por %p146, %p147
      %p150 = scmp.ne.s32.totalorder %s135, %s149
      %p151 = scmp.eq.s32.totalorder %s22, 0
      %p152 = por %p150, %p151
      %s154 = sadd.s32 %s153, 1
      %p157 = scmp.eq.s32.totalorder %s16, 3
      %p158 = scmp.ne.s32.totalorder %s153, %s155
      %p159 = scmp.eq.s32.totalorder %s16, 0
      %p160 = por %p158, %p159
      %p161 = scmp.ne.s32.totalorder %s153, %s155
      %p162 = scmp.eq.s32.totalorder %s21, 3
      %p163 = por %p161, %p162
      %p164 = scmp.ne.s32.totalorder %s155, %s156
      %p165 = scmp.eq.s32.totalorder %s21, 0
      %p166 = por %p164, %p165
      %p167 = scmp.ne.s32.totalorder %s155, %s156
      %p168 = scmp.eq.s32.totalorder %s22, 3
      %p169 = por %p167, %p168
      %p171 = scmp.ne.s32.totalorder %s156, %s170
      %p172 = scmp.eq.s32.totalorder %s22, 0
      %p173 = por %p171, %p172
      %s175 = sadd.s32 %s174, 1
      %p178 = scmp.eq.s32.totalorder %s16, 3
      %p179 = scmp.ne.s32.totalorder %s174, %s176
      %p180 = scmp.eq.s32.totalorder %s16, 0
      %p181 = por %p179, %p180
      %p182 = scmp.ne.s32.totalorder %s174, %s176
      %p183 = scmp.eq.s32.totalorder %s21, 3
      %p184 = por %p182, %p183
      %p185 = scmp.ne.s32.totalorder %s176, %s177
      %p186 = scmp.eq.s32.totalorder %s21, 0
      %p187 = por %p185, %p186
      %p188 = scmp.ne.s32.totalorder %s176, %s177
      %p189 = scmp.eq.s32.totalorder %s22, 3
      %p190 = por %p188, %p189
      %p192 = scmp.ne.s32.totalorder %s177, %s191
      %p193 = scmp.eq.s32.totalorder %s22, 0
      %p194 = por %p192, %p193
      %s195 = ssub.s32 %s23, %s35
      %p196 = scmp.eq.s32.totalorder %s195, 0
      %s198 = sadd.s32 %s197, 1
      %s199 = scalar_select %p196, %s197, %s198
      %p202 = pneg %p196
      %p203 = scmp.eq.s32.totalorder %s16, 3
      %p204 = por %p202, %p203
      %p205 = scmp.ne.s32.totalorder %s197, %s200
      %p206 = scmp.eq.s32.totalorder %s16, 0
      %p207 = por %p205, %p206
      %p208 = scmp.ne.s32.totalorder %s197, %s200
      %p209 = scmp.eq.s32.totalorder %s21, 3
      %p210 = por %p208, %p209
      %p211 = scmp.ne.s32.totalorder %s200, %s201
      %p212 = scmp.eq.s32.totalorder %s21, 0
      %p213 = por %p211, %p212
      %p214 = scmp.ne.s32.totalorder %s200, %s201
      %p215 = scmp.eq.s32.totalorder %s22, 3
      %p216 = por %p214, %p215
      %p218 = scmp.ne.s32.totalorder %s201, %s217
      %p219 = scmp.eq.s32.totalorder %s22, 0
      %p220 = por %p218, %p219
      %p221 = scmp.le.s32.totalorder 1, %s16
      %p222 = scmp.lt.s32.totalorder %s16, 5
      %p223 = pnand %p221, %p222
      %p224 = pneg %p223
      // Predicated region
      $region9: #{encoder_forward.1} parent=5 // pred_check
        _
      $region10: #{encoder_forward.1} parent=5 // pred_check_branch
        %226 = sbr.rel (%p223) target = $region12
      $region11: #{encoder_forward.1} parent=5 // pred_region
        %s227 = ssub.s32 %s16, 1
        // Predicated region
        $region13: #{encoder_forward.1} parent=11 // pred_check
          %p228 = pneg %p103
        $region14: #{encoder_forward.1} parent=11 // pred_check_branch
          %230 = sbr.rel (%p228) target = $region16
        $region15: #{encoder_forward.1} parent=11 // pred_region
          _
        $region16: #{encoder_forward.1} parent=11 // pred_fallthru
          _
        // Predicated region
        $region17: #{encoder_forward.1} parent=11 // pred_check
          %p231 = pneg %p124
        $region18: #{encoder_forward.1} parent=11 // pred_check_branch
          %233 = sbr.rel (%p231) target = $region20
        $region19: #{encoder_forward.1} parent=11 // pred_region
          _
        $region20: #{encoder_forward.1} parent=11 // pred_fallthru
          _
        // Predicated region
        $region21: #{encoder_forward.1} parent=11 // pred_check
          %p234 = pneg %p145
        $region22: #{encoder_forward.1} parent=11 // pred_check_branch
          %236 = sbr.rel (%p234) target = $region24
        $region23: #{encoder_forward.1} parent=11 // pred_region
          _
        $region24: #{encoder_forward.1} parent=11 // pred_fallthru
          _
        // Predicated region
        $region25: #{encoder_forward.1} parent=11 // pred_check
          %p237 = pneg %p166
        $region26: #{encoder_forward.1} parent=11 // pred_check_branch
          %239 = sbr.rel (%p237) target = $region28
        $region27: #{encoder_forward.1} parent=11 // pred_region
          _
        $region28: #{encoder_forward.1} parent=11 // pred_fallthru
          _
        // Predicated region
        $region29: #{encoder_forward.1} parent=11 // pred_check
          %p240 = pneg %p187
        $region30: #{encoder_forward.1} parent=11 // pred_check_branch
          %242 = sbr.rel (%p240) target = $region32
        $region31: #{encoder_forward.1} parent=11 // pred_region
          _
        $region32: #{encoder_forward.1} parent=11 // pred_fallthru
          _
      $region12: #{encoder_forward.1} parent=5 // pred_fallthru
        _
      %p243 = scmp.lt.s32.totalorder %s16, 4
      // Predicated region
      $region33: #{encoder_forward.1} parent=5 // pred_check
        %p244 = pneg %p243
      $region34: #{encoder_forward.1} parent=5 // pred_check_branch
        %246 = sbr.rel (%p244) target = $region36
      $region35: #{encoder_forward.1} parent=5 // pred_region
        // Predicated region
        $region37: #{encoder_forward.1} parent=35 // pred_check
          %p247 = pneg %p48
        $region38: #{encoder_forward.1} parent=35 // pred_check_branch
          %249 = sbr.rel (%p247) target = $region40
        $region39: #{encoder_forward.1} parent=35 // pred_region
          %s250 = smul.u32 8, %s23
          %p251 = scmp.lt.s32.totalorder %s250, 15
          %s252 = scalar_select %p251, %s250, 15
          %s253 = smul.addr %s252, 2
          %s254 = scalar_lea.vmem %s0, %s253
          %s255 = smul.u32 8, %s23
        $region40: #{encoder_forward.1} parent=35 // pred_fallthru
          _
        // Predicated region
        $region41: #{encoder_forward.1} parent=35 // pred_check
          %p256 = pneg %p76
        $region42: #{encoder_forward.1} parent=35 // pred_check_branch
          %258 = sbr.rel (%p256) target = $region44
        $region43: #{encoder_forward.1} parent=35 // pred_region
          %s259 = smul.u32 8, %s23
          %p260 = scmp.lt.s32.totalorder %s24, 1
          %s261 = scalar_select %p260, %s24, 1
          %p262 = scmp.lt.s32.totalorder %s259, 15
          %s263 = scalar_select %p262, %s259, 15
          %s264 = smul.addr %s263, 32
          %s265 = smul.addr %s261, 512
          %s266 = sadd.s32 %s264, %s265
          %s267 = smul.addr %s266, 4
          %s268 = scalar_lea.vmem %s1, %s267
          %s269 = smul.u32 8, %s23
        $region44: #{encoder_forward.1} parent=35 // pred_fallthru
          _
      $region36: #{encoder_forward.1} parent=5 // pred_fallthru
        _
      %p270 = scmp.le.s32.totalorder 1, %s16
      %p271 = scmp.lt.s32.totalorder %s16, 5
      %p272 = pnand %p270, %p271
      %p273 = pneg %p272
      // Predicated region
      $region45: #{encoder_forward.1} parent=5 // pred_check
        _
      $region46: #{encoder_forward.1} parent=5 // pred_check_branch
        %275 = sbr.rel (%p272) target = $region48
      $region47: #{encoder_forward.1} parent=5 // pred_region
        %s276 = ssub.s32 %s16, 1
        %s277 = smul.u32 8, %s25
        %p278 = scmp.lt.s32.totalorder %s277, 15
        %s279 = scalar_select %p278, %s277, 15
        %s280 = smul.addr %s279, 2
        %s281 = scalar_lea.vmem %s0, %s280
        %p282 = pneg %p54
        %p283 = pneg %p51
        %s284 = smul.u32 8, %s25
        %p285 = scmp.lt.s32.totalorder %s26, 1
        %s286 = scalar_select %p285, %s26, 1
        %p287 = scmp.lt.s32.totalorder %s284, 15
        %s288 = scalar_select %p287, %s284, 15
        %s289 = smul.addr %s288, 32
        %s290 = smul.addr %s286, 512
        %s291 = sadd.s32 %s289, %s290
        %s292 = smul.addr %s291, 4
        %s293 = scalar_lea.vmem %s1, %s292
        %p294 = pneg %p82
        %p295 = pneg %p79
        %p296 = pneg %p103
        %p297 = pneg %p100
        %p298 = pneg %p124
        %p299 = pneg %p121
        %p300 = pneg %p145
        %p301 = pneg %p142
        %p302 = pneg %p166
        %p303 = pneg %p163
        %p304 = pneg %p187
        %p305 = pneg %p184
        %p306 = pneg %p213
        %p307 = pneg %p210
        %s308 = sand.u32 %s200, 1
        %s309 = scalar_lea.sflag [#allocation3], %s308
        %s310 = sand.u32 %s200, 1
        %s311 = smul.addr %s310, 16
        %s312 = scalar_lea.vmem [#allocation2], %s311
        %s313 = smul.u32 8, %s25
        %p314 = scmp.lt.s32.totalorder %s313, 15
        %s315 = scalar_select %p314, %s313, 15
        %s316 = smul.addr %s315, 2
        %s317 = scalar_lea.vmem %s0, %s316
        %s318 = smul.u32 8, %s25
        %s319 = smul.u32 8, %s25
        %p320 = scmp.lt.s32.totalorder %s26, 1
        %s321 = scalar_select %p320, %s26, 1
        %p322 = scmp.lt.s32.totalorder %s319, 15
        %s323 = scalar_select %p322, %s319, 15
        %s324 = smul.addr %s323, 32
        %s325 = smul.addr %s321, 512
        %s326 = sadd.s32 %s324, %s325
        %s327 = smul.addr %s326, 4
        %s328 = scalar_lea.vmem %s1, %s327
        %s329 = smul.u32 8, %s25
        %s330 = smul.u32 8, %s25
        %v332 = vld [vmem:[%s317] sm:$0x3]
        %v333 = vld [vmem:[%s317 + $0x2] sm:$0x3]
        %v334 = vld [vmem:[%s317 + $0x4] sm:$0x3]
        %v335 = vld [vmem:[%s317 + $0x6] sm:$0x3]
        %v336 = vld [vmem:[%s317 + $0x8] sm:$0x3]
        %v337 = vld [vmem:[%s317 + $0xa] sm:$0x3]
        %v338 = vld [vmem:[%s317 + $0xc] sm:$0x3]
        %v339 = vld [vmem:[%s317 + $0xe] sm:$0x3]
        %p340 = scmp.eq.s32.totalorder %s26, 0
        // Predicated region
        $region49: #{encoder_forward.1} parent=47 // pred_check
          %p341 = pneg %p340
        $region50: #{encoder_forward.1} parent=47 // pred_check_branch
          %343 = sbr.rel (%p341) target = $region52
        $region51: #{encoder_forward.1} parent=47 // pred_region
          %v344 = vlaneseq
          %vm345 = vcmp.ge.s32.totalorder %v344, 0
          %vm346 = vcmp.lt.s32.totalorder %v344, 256
          %vm347 = vmand %vm345, %vm346
          %348 = vst.msk [vmem:[%s312] sm:$0x3] %vm347, %v332
          %349 = vst.msk [vmem:[%s312 + $0x2] sm:$0x3] %vm347, %v333
          %350 = vst.msk [vmem:[%s312 + $0x4] sm:$0x3] %vm347, %v334
          %351 = vst.msk [vmem:[%s312 + $0x6] sm:$0x3] %vm347, %v335
          %352 = vst.msk [vmem:[%s312 + $0x8] sm:$0x3] %vm347, %v336
          %353 = vst.msk [vmem:[%s312 + $0xa] sm:$0x3] %vm347, %v337
          %354 = vst.msk [vmem:[%s312 + $0xc] sm:$0x3] %vm347, %v338
          %355 = vst.msk [vmem:[%s312 + $0xe] sm:$0x3] %vm347, %v339
        $region52: #{encoder_forward.1} parent=47 // pred_fallthru
          _
        %v356 = vld [vmem:[%s312] sm:$0x3]
        %v357 = vld [vmem:[%s312 + $0x2] sm:$0x3]
        %v358 = vld [vmem:[%s312 + $0x4] sm:$0x3]
        %v359 = vld [vmem:[%s312 + $0x6] sm:$0x3]
        %v360 = vld [vmem:[%s312 + $0x8] sm:$0x3]
        %v361 = vld [vmem:[%s312 + $0xa] sm:$0x3]
        %v362 = vld [vmem:[%s312 + $0xc] sm:$0x3]
        %v363 = vld [vmem:[%s312 + $0xe] sm:$0x3]
        %v364 = vld [vmem:[%s2] sm:$0xff]
        %v365 = vld [vmem:[%s2 + $0x28] sm:$0xff]
        %v366 = vld [vmem:[%s2 + $0x50] sm:$0xff]
        %v367 = vld [vmem:[%s2 + $0x78] sm:$0xff]
        %v368 = vld [vmem:[%s2 + $0xa0] sm:$0xff]
        %v369 = vld [vmem:[%s2 + $0xc8] sm:$0xff]
        %v370 = vld [vmem:[%s2 + $0xf0] sm:$0xff]
        %v371 = vld [vmem:[%s2 + $0x118] sm:$0xff]
        %v372 = vld [vmem:[%s2 + $0x140] sm:$0xff]
        %v373 = vld [vmem:[%s2 + $0x168] sm:$0xff]
        %v374 = vld [vmem:[%s2 + $0x190] sm:$0xff]
        %v375 = vld [vmem:[%s2 + $0x1b8] sm:$0xff]
        %v376 = vld [vmem:[%s2 + $0x1e0] sm:$0xff]
        %v377 = vld [vmem:[%s2 + $0x208] sm:$0xff]
        %v378 = vld [vmem:[%s2 + $0x230] sm:$0xff]
        %v379 = vld [vmem:[%s2 + $0x258] sm:$0xff]
        %v380 = vld [vmem:[%s2 + $0x280] sm:$0xff]
        %v381 = vld [vmem:[%s2 + $0x2a8] sm:$0xff]
        %v382 = vld [vmem:[%s2 + $0x2d0] sm:$0xff]
        %v383 = vld [vmem:[%s2 + $0x2f8] sm:$0xff]
        %v384 = vld [vmem:[%s2 + $0x320] sm:$0xff]
        %v385 = vld [vmem:[%s2 + $0x348] sm:$0xff]
        %v386 = vld [vmem:[%s2 + $0x370] sm:$0xff]
        %v387 = vld [vmem:[%s2 + $0x398] sm:$0xff]
        %v388 = vld [vmem:[%s2 + $0x3c0] sm:$0xff]
        %v389 = vld [vmem:[%s2 + $0x3e8] sm:$0xff]
        %v390 = vld [vmem:[%s2 + $0x410] sm:$0xff]
        %v391 = vld [vmem:[%s2 + $0x438] sm:$0xff]
        %v392 = vld [vmem:[%s2 + $0x460] sm:$0xff]
        %v393 = vld [vmem:[%s2 + $0x488] sm:$0xff]
        %v394 = vld [vmem:[%s2 + $0x4b0] sm:$0xff]
        %v395 = vld [vmem:[%s2 + $0x4d8] sm:$0xff]
        %v396 = vld [vmem:[%s3] ss:$8 sm:$0x3]
        %v405 = vlaneseq
        %v406 = vshrl.u32 %v405, 7
        %v407 = vsub.s32 0, %v406
        %v408 = vrot.slane %v356, %v407
        %v409 = vlaneseq
        %v410 = vshrl.u32 %v409, 7
        %v411 = vsub.s32 1, %v410
        %v412 = vrot.slane %v356, %v411
        %v413 = vlaneseq
        %v414 = vshrl.u32 %v413, 7
        %v415 = vsub.s32 0, %v414
        %v416 = vrot.slane %v357, %v415
        %v417 = vlaneseq
        %v418 = vshrl.u32 %v417, 7
        %v419 = vsub.s32 1, %v418
        %v420 = vrot.slane %v357, %v419
        %v421 = vlaneseq
        %v422 = vshrl.u32 %v421, 7
        %v423 = vsub.s32 0, %v422
        %v424 = vrot.slane %v358, %v423
        %v425 = vlaneseq
        %v426 = vshrl.u32 %v425, 7
        %v427 = vsub.s32 1, %v426
        %v428 = vrot.slane %v358, %v427
        %v429 = vlaneseq
        %v430 = vshrl.u32 %v429, 7
        %v431 = vsub.s32 0, %v430
        %v432 = vrot.slane %v359, %v431
        %v433 = vlaneseq
        %v434 = vshrl.u32 %v433, 7
        %v435 = vsub.s32 1, %v434
        %v436 = vrot.slane %v359, %v435
        %v437 = vlaneseq
        %v438 = vshrl.u32 %v437, 7
        %v439 = vsub.s32 0, %v438
        %v440 = vrot.slane %v360, %v439
        %v441 = vlaneseq
        %v442 = vshrl.u32 %v441, 7
        %v443 = vsub.s32 1, %v442
        %v444 = vrot.slane %v360, %v443
        %v445 = vlaneseq
        %v446 = vshrl.u32 %v445, 7
        %v447 = vsub.s32 0, %v446
        %v448 = vrot.slane %v361, %v447
        %v449 = vlaneseq
        %v450 = vshrl.u32 %v449, 7
        %v451 = vsub.s32 1, %v450
        %v452 = vrot.slane %v361, %v451
        %v453 = vlaneseq
        %v454 = vshrl.u32 %v453, 7
        %v455 = vsub.s32 0, %v454
        %v456 = vrot.slane %v362, %v455
        %v457 = vlaneseq
        %v458 = vshrl.u32 %v457, 7
        %v459 = vsub.s32 1, %v458
        %v460 = vrot.slane %v362, %v459
        %v461 = vlaneseq
        %v462 = vshrl.u32 %v461, 7
        %v463 = vsub.s32 0, %v462
        %v464 = vrot.slane %v363, %v463
        %v465 = vlaneseq
        %v466 = vshrl.u32 %v465, 7
        %v467 = vsub.s32 1, %v466
        %v468 = vrot.slane %v363, %v467
        %v485 = vpack.c.bf16 %v408, %v408
        %v486 = vpack.c.bf16 %v412, %v412
        %v487 = vpack.c.bf16 %v416, %v416
        %v488 = vpack.c.bf16 %v420, %v420
        %v489 = vpack.c.bf16 %v424, %v424
        %v490 = vpack.c.bf16 %v428, %v428
        %v491 = vpack.c.bf16 %v432, %v432
        %v492 = vpack.c.bf16 %v436, %v436
        %v493 = vpack.c.bf16 %v440, %v440
        %v494 = vpack.c.bf16 %v444, %v444
        %v495 = vpack.c.bf16 %v448, %v448
        %v496 = vpack.c.bf16 %v452, %v452
        %v497 = vpack.c.bf16 %v456, %v456
        %v498 = vpack.c.bf16 %v460, %v460
        %v499 = vpack.c.bf16 %v464, %v464
        %v500 = vpack.c.bf16 %v468, %v468
        %v502 = vlaneseq
        %v503 = vshrl.u32 %v502, 7
        %v504 = vsub.s32 0, %v503
        %v505 = vrot.slane %v396, %v504
        %v506 = vlaneseq
        %v507 = vshrl.u32 %v506, 7
        %v508 = vsub.s32 1, %v507
        %v509 = vrot.slane %v396, %v508
        %v528 = vunpack.c.l.b16 %v485
        %v529 = vunpack.c.l.b16 %v486
        %v530 = vunpack.c.l.b16 %v487
        %v531 = vunpack.c.l.b16 %v488
        %v532 = vunpack.c.l.b16 %v489
        %v533 = vunpack.c.l.b16 %v490
        %v534 = vunpack.c.l.b16 %v491
        %v535 = vunpack.c.l.b16 %v492
        %v536 = vunpack.c.l.b16 %v493
        %v537 = vunpack.c.l.b16 %v494
        %v538 = vunpack.c.l.b16 %v495
        %v539 = vunpack.c.l.b16 %v496
        %v540 = vunpack.c.l.b16 %v497
        %v541 = vunpack.c.l.b16 %v498
        %v542 = vunpack.c.l.b16 %v499
        %v543 = vunpack.c.l.b16 %v500
        %v544 = vrot.slane %v530, 7
        %vm545 = vcmask 1041409
        %v546 = vsel %vm545, %v544, %v528
        %v547 = vrot.slane %v532, 6
        %vm548 = vcmask 1042434
        %v549 = vsel %vm548, %v547, %v546
        %v550 = vrot.slane %v534, 5
        %vm551 = vcmask 1043459
        %v552 = vsel %vm551, %v550, %v549
        %v553 = vrot.slane %v536, 4
        %vm554 = vcmask 1044484
        %v555 = vsel %vm554, %v553, %v552
        %v556 = vrot.slane %v538, 3
        %vm557 = vcmask 1045509
        %v558 = vsel %vm557, %v556, %v555
        %v559 = vrot.slane %v540, 2
        %vm560 = vcmask 1046534
        %v561 = vsel %vm560, %v559, %v558
        %v562 = vrot.slane %v542, 1
        %vm563 = vcmask 1047559
        %v564 = vsel %vm563, %v562, %v561
        %v565 = vrot.slane %v531, 7
        %v566 = vsel %vm545, %v565, %v529
        %v567 = vrot.slane %v533, 6
        %v568 = vsel %vm548, %v567, %v566
        %v569 = vrot.slane %v535, 5
        %v570 = vsel %vm551, %v569, %v568
        %v571 = vrot.slane %v537, 4
        %v572 = vsel %vm554, %v571, %v570
        %v573 = vrot.slane %v539, 3
        %v574 = vsel %vm557, %v573, %v572
        %v575 = vrot.slane %v541, 2
        %v576 = vsel %vm560, %v575, %v574
        %v577 = vrot.slane %v543, 1
        %v578 = vsel %vm563, %v577, %v576
        %v579 = vpack.c.b16 %v564, %v564
        %v580 = vpack.c.b16 %v578, %v578
        %v615 = vunpack.c.l.b16 %v364
        %v616 = vunpack.c.h.b16 %v364
        %v617 = vunpack.c.l.b16 %v365
        %v618 = vunpack.c.h.b16 %v365
        %v619 = vunpack.c.l.b16 %v366
        %v620 = vunpack.c.h.b16 %v366
        %v621 = vunpack.c.l.b16 %v367
        %v622 = vunpack.c.h.b16 %v367
        %v623 = vunpack.c.l.b16 %v368
        %v624 = vunpack.c.h.b16 %v368
        %v625 = vunpack.c.l.b16 %v369
        %v626 = vunpack.c.h.b16 %v369
        %v627 = vunpack.c.l.b16 %v370
        %v628 = vunpack.c.h.b16 %v370
        %v629 = vunpack.c.l.b16 %v371
        %v630 = vunpack.c.h.b16 %v371
        %v631 = vunpack.c.l.b16 %v372
        %v632 = vunpack.c.h.b16 %v372
        %v633 = vunpack.c.l.b16 %v373
        %v634 = vunpack.c.h.b16 %v373
        %v635 = vunpack.c.l.b16 %v374
        %v636 = vunpack.c.h.b16 %v374
        %v637 = vunpack.c.l.b16 %v375
        %v638 = vunpack.c.h.b16 %v375
        %v639 = vunpack.c.l.b16 %v376
        %v640 = vunpack.c.h.b16 %v376
        %v641 = vunpack.c.l.b16 %v377
        %v642 = vunpack.c.h.b16 %v377
        %v643 = vunpack.c.l.b16 %v378
        %v644 = vunpack.c.h.b16 %v378
        %v645 = vunpack.c.l.b16 %v379
        %v646 = vunpack.c.h.b16 %v379
        %v647 = vunpack.c.l.b16 %v380
        %v648 = vunpack.c.h.b16 %v380
        %v649 = vunpack.c.l.b16 %v381
        %v650 = vunpack.c.h.b16 %v381
        %v651 = vunpack.c.l.b16 %v382
        %v652 = vunpack.c.h.b16 %v382
        %v653 = vunpack.c.l.b16 %v383
        %v654 = vunpack.c.h.b16 %v383
        %v655 = vunpack.c.l.b16 %v384
        %v656 = vunpack.c.h.b16 %v384
        %v657 = vunpack.c.l.b16 %v385
        %v658 = vunpack.c.h.b16 %v385
        %v659 = vunpack.c.l.b16 %v386
        %v660 = vunpack.c.h.b16 %v386
        %v661 = vunpack.c.l.b16 %v387
        %v662 = vunpack.c.h.b16 %v387
        %v663 = vunpack.c.l.b16 %v388
        %v664 = vunpack.c.h.b16 %v388
        %v665 = vunpack.c.l.b16 %v389
        %v666 = vunpack.c.h.b16 %v389
        %v667 = vunpack.c.l.b16 %v390
        %v668 = vunpack.c.h.b16 %v390
        %v669 = vunpack.c.l.b16 %v391
        %v670 = vunpack.c.h.b16 %v391
        %v671 = vunpack.c.l.b16 %v392
        %v672 = vunpack.c.h.b16 %v392
        %v673 = vunpack.c.l.b16 %v393
        %v674 = vunpack.c.h.b16 %v393
        %v675 = vunpack.c.l.b16 %v394
        %v676 = vunpack.c.h.b16 %v394
        %v677 = vunpack.c.l.b16 %v395
        %v678 = vunpack.c.h.b16 %v395
        %v679 = vpack.c.b16 %v617, %v615
        %v680 = vpack.c.b16 %v618, %v616
        %v681 = vpack.c.b16 %v621, %v619
        %v682 = vpack.c.b16 %v622, %v620
        %v683 = vpack.c.b16 %v625, %v623
        %v684 = vpack.c.b16 %v626, %v624
        %v685 = vpack.c.b16 %v629, %v627
        %v686 = vpack.c.b16 %v630, %v628
        %v687 = vpack.c.b16 %v633, %v631
        %v688 = vpack.c.b16 %v634, %v632
        %v689 = vpack.c.b16 %v637, %v635
        %v690 = vpack.c.b16 %v638, %v636
        %v691 = vpack.c.b16 %v641, %v639
        %v692 = vpack.c.b16 %v642, %v640
        %v693 = vpack.c.b16 %v645, %v643
        %v694 = vpack.c.b16 %v646, %v644
        %v695 = vpack.c.b16 %v649, %v647
        %v696 = vpack.c.b16 %v650, %v648
        %v697 = vpack.c.b16 %v653, %v651
        %v698 = vpack.c.b16 %v654, %v652
        %v699 = vpack.c.b16 %v657, %v655
        %v700 = vpack.c.b16 %v658, %v656
        %v701 = vpack.c.b16 %v661, %v659
        %v702 = vpack.c.b16 %v662, %v660
        %v703 = vpack.c.b16 %v665, %v663
        %v704 = vpack.c.b16 %v666, %v664
        %v705 = vpack.c.b16 %v669, %v667
        %v706 = vpack.c.b16 %v670, %v668
        %v707 = vpack.c.b16 %v673, %v671
        %v708 = vpack.c.b16 %v674, %v672
        %v709 = vpack.c.b16 %v677, %v675
        %v710 = vpack.c.b16 %v678, %v676
        %743 = vmatprep.subr.bf16.mxu0 %v694
        %744 = vmatpush1.bf16.msra.mxu0 %v693
        %745 = vmatprep.subr.bf16.mxu0 %v692
        %746 = vmatpush1.bf16.msra.mxu0 %v691
        %747 = vmatprep.subr.bf16.mxu0 %v690
        %748 = vmatpush1.bf16.msra.mxu0 %v689
        %749 = vmatprep.subr.bf16.mxu0 %v688
        %750 = vmatpush1.bf16.msra.mxu0 %v687
        %751 = vmatprep.subr.bf16.mxu0 %v686
        %752 = vmatpush1.bf16.msra.mxu0 %v685
        %753 = vmatprep.subr.bf16.mxu0 %v684
        %754 = vmatpush1.bf16.msra.mxu0 %v683
        %755 = vmatprep.subr.bf16.mxu0 %v682
        %756 = vmatpush1.bf16.msra.mxu0 %v681
        %757 = vmatprep.subr.bf16.mxu0 %v680
        %758 = vmatpush1.bf16.msra.mxu0 %v679
        %759 = vmatprep.subr.bf16.mxu0 %v710
        %760 = vmatpush2.bf16.msra.mxu0 %v709
        %761 = vmatprep.subr.bf16.mxu0 %v708
        %762 = vmatpush2.bf16.msra.mxu0 %v707
        %763 = vmatprep.subr.bf16.mxu0 %v706
        %764 = vmatpush2.bf16.msra.mxu0 %v705
        %765 = vmatprep.subr.bf16.mxu0 %v704
        %766 = vmatpush2.bf16.msra.mxu0 %v703
        %767 = vmatprep.subr.bf16.mxu0 %v702
        %768 = vmatpush2.bf16.msra.mxu0 %v701
        %769 = vmatprep.subr.bf16.mxu0 %v700
        %770 = vmatpush2.bf16.msra.mxu0 %v699
        %771 = vmatprep.subr.bf16.mxu0 %v698
        %772 = vmatpush2.bf16.msra.mxu0 %v697
        %773 = vmatprep.subr.bf16.mxu0 %v696
        %774 = vmatpush2.bf16.msra.mxu0 %v695
        %775 = vmatprep.mubr.bf16.mxu0 %v580
        %776 = vmatmul.mubr.bf16.gmra.mxu0 %v579
        %v777 = vpop.f32.mrf.mxu0
        %v778 = vadd.f32 %v505, %v777
        %v779 = vpop.f32.mrf.mxu0
        %v780 = vadd.f32 %v509, %v779
        %v781 = vpop.f32.mrf.mxu0
        %v782 = vpop.f32.mrf.mxu0
        %783 = vdwg.mxu0
        %v786 = vcombine.low %v778, %v780
        %v787 = vcombine.high %v778, %v780
        %v789 = vunpack.c.l.s4 1966171168
        %v790 = vunpack.c.0.s8 %v789
        %v791 = vlaneseq
        %v792 = vshrl.u32 %v791, 7
        %v793 = vsub.s32 %v790, %v792
        %v794 = vrot.slane %v786, %v793
        %v796 = vunpack.c.l.s4 1966171168
        %v797 = vunpack.c.0.s8 %v796
        %v798 = vlaneseq
        %v799 = vshrl.u32 %v798, 7
        %v800 = vsub.s32 %v797, %v799
        %v801 = vrot.slane %v787, %v800
        %v802 = vcombine.high %v794, %v794
        %v803 = vcombine.high %v801, %v801
        %v805 = vunpack.c.l.s4 1966171168
        %v806 = vunpack.c.0.s8 %v805
        %v807 = vlaneseq
        %v808 = vshrl.u32 %v807, 7
        %v809 = vsub.s32 %v806, %v808
        %v810 = vrot.slane %v794, %v809
        %v812 = vunpack.c.l.s4 1966171168
        %v813 = vunpack.c.0.s8 %v812
        %v814 = vlaneseq
        %v815 = vshrl.u32 %v814, 7
        %v816 = vsub.s32 %v813, %v815
        %v817 = vrot.slane %v801, %v816
        %v819 = vunpack.c.l.s4 1966171168
        %v820 = vunpack.c.0.s8 %v819
        %v821 = vlaneseq
        %v822 = vshrl.u32 %v821, 7
        %v823 = vsub.s32 %v820, %v822
        %v824 = vrot.slane %v802, %v823
        %v826 = vunpack.c.l.s4 1966171168
        %v827 = vunpack.c.0.s8 %v826
        %v828 = vlaneseq
        %v829 = vshrl.u32 %v828, 7
        %v830 = vsub.s32 %v827, %v829
        %v831 = vrot.slane %v803, %v830
        %v832 = vcombine.high %v810, %v810
        %v833 = vcombine.high %v817, %v817
        %v834 = vcombine.high %v824, %v824
        %v835 = vcombine.high %v831, %v831
        %v844 = vadd.f32 %v332, %v810
        %v845 = vadd.f32 %v333, %v824
        %v846 = vadd.f32 %v334, %v832
        %v847 = vadd.f32 %v335, %v834
        %v848 = vadd.f32 %v336, %v817
        %v849 = vadd.f32 %v337, %v831
        %v850 = vadd.f32 %v338, %v833
        %v851 = vadd.f32 %v339, %v835
        %v852 = vld [vmem:[%s328] sm:$0xff]
        %v853 = vld [vmem:[%s328 + $0x10] sm:$0xff]
        %v854 = vld [vmem:[%s328 + $0x20] sm:$0xff]
        %v855 = vld [vmem:[%s328 + $0x30] sm:$0xff]
        %v856 = vld [vmem:[%s328 + $0x40] sm:$0xff]
        %v857 = vld [vmem:[%s328 + $0x50] sm:$0xff]
        %v858 = vld [vmem:[%s328 + $0x60] sm:$0xff]
        %v859 = vld [vmem:[%s328 + $0x70] sm:$0xff]
        %v860 = vld [vmem:[%s328 + $0x80] sm:$0xff]
        %v861 = vld [vmem:[%s328 + $0x90] sm:$0xff]
        %v862 = vld [vmem:[%s328 + $0xa0] sm:$0xff]
        %v863 = vld [vmem:[%s328 + $0xb0] sm:$0xff]
        %v864 = vld [vmem:[%s328 + $0xc0] sm:$0xff]
        %v865 = vld [vmem:[%s328 + $0xd0] sm:$0xff]
        %v866 = vld [vmem:[%s328 + $0xe0] sm:$0xff]
        %v867 = vld [vmem:[%s328 + $0xf0] sm:$0xff]
        %v868 = vld [vmem:[%s328 + $0x100] sm:$0xff]
        %v869 = vld [vmem:[%s328 + $0x110] sm:$0xff]
        %v870 = vld [vmem:[%s328 + $0x120] sm:$0xff]
        %v871 = vld [vmem:[%s328 + $0x130] sm:$0xff]
        %v872 = vld [vmem:[%s328 + $0x140] sm:$0xff]
        %v873 = vld [vmem:[%s328 + $0x150] sm:$0xff]
        %v874 = vld [vmem:[%s328 + $0x160] sm:$0xff]
        %v875 = vld [vmem:[%s328 + $0x170] sm:$0xff]
        %v876 = vld [vmem:[%s328 + $0x180] sm:$0xff]
        %v877 = vld [vmem:[%s328 + $0x190] sm:$0xff]
        %v878 = vld [vmem:[%s328 + $0x1a0] sm:$0xff]
        %v879 = vld [vmem:[%s328 + $0x1b0] sm:$0xff]
        %v880 = vld [vmem:[%s328 + $0x1c0] sm:$0xff]
        %v881 = vld [vmem:[%s328 + $0x1d0] sm:$0xff]
        %v882 = vld [vmem:[%s328 + $0x1e0] sm:$0xff]
        %v883 = vld [vmem:[%s328 + $0x1f0] sm:$0xff]
        %v884 = vld [vmem:[%s328 + $0x200] sm:$0xff]
        %v885 = vld [vmem:[%s328 + $0x210] sm:$0xff]
        %v886 = vld [vmem:[%s328 + $0x220] sm:$0xff]
        %v887 = vld [vmem:[%s328 + $0x230] sm:$0xff]
        %v888 = vld [vmem:[%s328 + $0x240] sm:$0xff]
        %v889 = vld [vmem:[%s328 + $0x250] sm:$0xff]
        %v890 = vld [vmem:[%s328 + $0x260] sm:$0xff]
        %v891 = vld [vmem:[%s328 + $0x270] sm:$0xff]
        %v892 = vld [vmem:[%s328 + $0x280] sm:$0xff]
        %v893 = vld [vmem:[%s328 + $0x290] sm:$0xff]
        %v894 = vld [vmem:[%s328 + $0x2a0] sm:$0xff]
        %v895 = vld [vmem:[%s328 + $0x2b0] sm:$0xff]
        %v896 = vld [vmem:[%s328 + $0x2c0] sm:$0xff]
        %v897 = vld [vmem:[%s328 + $0x2d0] sm:$0xff]
        %v898 = vld [vmem:[%s328 + $0x2e0] sm:$0xff]
        %v899 = vld [vmem:[%s328 + $0x2f0] sm:$0xff]
        %v900 = vld [vmem:[%s328 + $0x300] sm:$0xff]
        %v901 = vld [vmem:[%s328 + $0x310] sm:$0xff]
        %v902 = vld [vmem:[%s328 + $0x320] sm:$0xff]
        %v903 = vld [vmem:[%s328 + $0x330] sm:$0xff]
        %v904 = vld [vmem:[%s328 + $0x340] sm:$0xff]
        %v905 = vld [vmem:[%s328 + $0x350] sm:$0xff]
        %v906 = vld [vmem:[%s328 + $0x360] sm:$0xff]
        %v907 = vld [vmem:[%s328 + $0x370] sm:$0xff]
        %v908 = vld [vmem:[%s328 + $0x380] sm:$0xff]
        %v909 = vld [vmem:[%s328 + $0x390] sm:$0xff]
        %v910 = vld [vmem:[%s328 + $0x3a0] sm:$0xff]
        %v911 = vld [vmem:[%s328 + $0x3b0] sm:$0xff]
        %v912 = vld [vmem:[%s328 + $0x3c0] sm:$0xff]
        %v913 = vld [vmem:[%s328 + $0x3d0] sm:$0xff]
        %v914 = vld [vmem:[%s328 + $0x3e0] sm:$0xff]
        %v915 = vld [vmem:[%s328 + $0x3f0] sm:$0xff]
        %v916 = vld [vmem:[%s328 + $0x8] sm:$0xff]
        %v917 = vld [vmem:[%s328 + $0x18] sm:$0xff]
        %v918 = vld [vmem:[%s328 + $0x28] sm:$0xff]
        %v919 = vld [vmem:[%s328 + $0x38] sm:$0xff]
        %v920 = vld [vmem:[%s328 + $0x48] sm:$0xff]
        %v921 = vld [vmem:[%s328 + $0x58] sm:$0xff]
        %v922 = vld [vmem:[%s328 + $0x68] sm:$0xff]
        %v923 = vld [vmem:[%s328 + $0x78] sm:$0xff]
        %v924 = vld [vmem:[%s328 + $0x88] sm:$0xff]
        %v925 = vld [vmem:[%s328 + $0x98] sm:$0xff]
        %v926 = vld [vmem:[%s328 + $0xa8] sm:$0xff]
        %v927 = vld [vmem:[%s328 + $0xb8] sm:$0xff]
        %v928 = vld [vmem:[%s328 + $0xc8] sm:$0xff]
        %v929 = vld [vmem:[%s328 + $0xd8] sm:$0xff]
        %v930 = vld [vmem:[%s328 + $0xe8] sm:$0xff]
        %v931 = vld [vmem:[%s328 + $0xf8] sm:$0xff]
        %v932 = vld [vmem:[%s328 + $0x108] sm:$0xff]
        %v933 = vld [vmem:[%s328 + $0x118] sm:$0xff]
        %v934 = vld [vmem:[%s328 + $0x128] sm:$0xff]
        %v935 = vld [vmem:[%s328 + $0x138] sm:$0xff]
        %v936 = vld [vmem:[%s328 + $0x148] sm:$0xff]
        %v937 = vld [vmem:[%s328 + $0x158] sm:$0xff]
        %v938 = vld [vmem:[%s328 + $0x168] sm:$0xff]
        %v939 = vld [vmem:[%s328 + $0x178] sm:$0xff]
        %v940 = vld [vmem:[%s328 + $0x188] sm:$0xff]
        %v941 = vld [vmem:[%s328 + $0x198] sm:$0xff]
        %v942 = vld [vmem:[%s328 + $0x1a8] sm:$0xff]
        %v943 = vld [vmem:[%s328 + $0x1b8] sm:$0xff]
        %v944 = vld [vmem:[%s328 + $0x1c8] sm:$0xff]
        %v945 = vld [vmem:[%s328 + $0x1d8] sm:$0xff]
        %v946 = vld [vmem:[%s328 + $0x1e8] sm:$0xff]
        %v947 = vld [vmem:[%s328 + $0x1f8] sm:$0xff]
        %v948 = vld [vmem:[%s328 + $0x208] sm:$0xff]
        %v949 = vld [vmem:[%s328 + $0x218] sm:$0xff]
        %v950 = vld [vmem:[%s328 + $0x228] sm:$0xff]
        %v951 = vld [vmem:[%s328 + $0x238] sm:$0xff]
        %v952 = vld [vmem:[%s328 + $0x248] sm:$0xff]
        %v953 = vld [vmem:[%s328 + $0x258] sm:$0xff]
        %v954 = vld [vmem:[%s328 + $0x268] sm:$0xff]
        %v955 = vld [vmem:[%s328 + $0x278] sm:$0xff]
        %v956 = vld [vmem:[%s328 + $0x288] sm:$0xff]
        %v957 = vld [vmem:[%s328 + $0x298] sm:$0xff]
        %v958 = vld [vmem:[%s328 + $0x2a8] sm:$0xff]
        %v959 = vld [vmem:[%s328 + $0x2b8] sm:$0xff]
        %v960 = vld [vmem:[%s328 + $0x2c8] sm:$0xff]
        %v961 = vld [vmem:[%s328 + $0x2d8] sm:$0xff]
        %v962 = vld [vmem:[%s328 + $0x2e8] sm:$0xff]
        %v963 = vld [vmem:[%s328 + $0x2f8] sm:$0xff]
        %v964 = vld [vmem:[%s328 + $0x308] sm:$0xff]
        %v965 = vld [vmem:[%s328 + $0x318] sm:$0xff]
        %v966 = vld [vmem:[%s328 + $0x328] sm:$0xff]
        %v967 = vld [vmem:[%s328 + $0x338] sm:$0xff]
        %v968 = vld [vmem:[%s328 + $0x348] sm:$0xff]
        %v969 = vld [vmem:[%s328 + $0x358] sm:$0xff]
        %v970 = vld [vmem:[%s328 + $0x368] sm:$0xff]
        %v971 = vld [vmem:[%s328 + $0x378] sm:$0xff]
        %v972 = vld [vmem:[%s328 + $0x388] sm:$0xff]
        %v973 = vld [vmem:[%s328 + $0x398] sm:$0xff]
        %v974 = vld [vmem:[%s328 + $0x3a8] sm:$0xff]
        %v975 = vld [vmem:[%s328 + $0x3b8] sm:$0xff]
        %v976 = vld [vmem:[%s328 + $0x3c8] sm:$0xff]
        %v977 = vld [vmem:[%s328 + $0x3d8] sm:$0xff]
        %v978 = vld [vmem:[%s328 + $0x3e8] sm:$0xff]
        %v979 = vld [vmem:[%s328 + $0x3f8] sm:$0xff]
        %v980 = vld [vmem:[%s2 + $0x8] sm:$0xff]
        %v981 = vld [vmem:[%s2 + $0x30] sm:$0xff]
        %v982 = vld [vmem:[%s2 + $0x58] sm:$0xff]
        %v983 = vld [vmem:[%s2 + $0x80] sm:$0xff]
        %v984 = vld [vmem:[%s2 + $0xa8] sm:$0xff]
        %v985 = vld [vmem:[%s2 + $0xd0] sm:$0xff]
        %v986 = vld [vmem:[%s2 + $0xf8] sm:$0xff]
        %v987 = vld [vmem:[%s2 + $0x120] sm:$0xff]
        %v988 = vld [vmem:[%s2 + $0x148] sm:$0xff]
        %v989 = vld [vmem:[%s2 + $0x170] sm:$0xff]
        %v990 = vld [vmem:[%s2 + $0x198] sm:$0xff]
        %v991 = vld [vmem:[%s2 + $0x1c0] sm:$0xff]
        %v992 = vld [vmem:[%s2 + $0x1e8] sm:$0xff]
        %v993 = vld [vmem:[%s2 + $0x210] sm:$0xff]
        %v994 = vld [vmem:[%s2 + $0x238] sm:$0xff]
        %v995 = vld [vmem:[%s2 + $0x260] sm:$0xff]
        %v996 = vld [vmem:[%s2 + $0x288] sm:$0xff]
        %v997 = vld [vmem:[%s2 + $0x2b0] sm:$0xff]
        %v998 = vld [vmem:[%s2 + $0x2d8] sm:$0xff]
        %v999 = vld [vmem:[%s2 + $0x300] sm:$0xff]
        %v1000 = vld [vmem:[%s2 + $0x328] sm:$0xff]
        %v1001 = vld [vmem:[%s2 + $0x350] sm:$0xff]
        %v1002 = vld [vmem:[%s2 + $0x378] sm:$0xff]
        %v1003 = vld [vmem:[%s2 + $0x3a0] sm:$0xff]
        %v1004 = vld [vmem:[%s2 + $0x3c8] sm:$0xff]
        %v1005 = vld [vmem:[%s2 + $0x3f0] sm:$0xff]
        %v1006 = vld [vmem:[%s2 + $0x418] sm:$0xff]
        %v1007 = vld [vmem:[%s2 + $0x440] sm:$0xff]
        %v1008 = vld [vmem:[%s2 + $0x468] sm:$0xff]
        %v1009 = vld [vmem:[%s2 + $0x490] sm:$0xff]
        %v1010 = vld [vmem:[%s2 + $0x4b8] sm:$0xff]
        %v1011 = vld [vmem:[%s2 + $0x4e0] sm:$0xff]
        %s1012 = scalar_lea.vmem %s3, 1
        %v1013 = vld [vmem:[%s1012] ss:$8 sm:$0x3]
        %v1022 = vlaneseq
        %v1023 = vshrl.u32 %v1022, 7
        %v1024 = vsub.s32 0, %v1023
        %v1025 = vrot.slane %v844, %v1024
        %v1026 = vlaneseq
        %v1027 = vshrl.u32 %v1026, 7
        %v1028 = vsub.s32 1, %v1027
        %v1029 = vrot.slane %v844, %v1028
        %v1030 = vlaneseq
        %v1031 = vshrl.u32 %v1030, 7
        %v1032 = vsub.s32 0, %v1031
        %v1033 = vrot.slane %v845, %v1032
        %v1034 = vlaneseq
        %v1035 = vshrl.u32 %v1034, 7
        %v1036 = vsub.s32 1, %v1035
        %v1037 = vrot.slane %v845, %v1036
        %v1038 = vlaneseq
        %v1039 = vshrl.u32 %v1038, 7
        %v1040 = vsub.s32 0, %v1039
        %v1041 = vrot.slane %v846, %v1040
        %v1042 = vlaneseq
        %v1043 = vshrl.u32 %v1042, 7
        %v1044 = vsub.s32 1, %v1043
        %v1045 = vrot.slane %v846, %v1044
        %v1046 = vlaneseq
        %v1047 = vshrl.u32 %v1046, 7
        %v1048 = vsub.s32 0, %v1047
        %v1049 = vrot.slane %v847, %v1048
        %v1050 = vlaneseq
        %v1051 = vshrl.u32 %v1050, 7
        %v1052 = vsub.s32 1, %v1051
        %v1053 = vrot.slane %v847, %v1052
        %v1054 = vlaneseq
        %v1055 = vshrl.u32 %v1054, 7
        %v1056 = vsub.s32 0, %v1055
        %v1057 = vrot.slane %v848, %v1056
        %v1058 = vlaneseq
        %v1059 = vshrl.u32 %v1058, 7
        %v1060 = vsub.s32 1, %v1059
        %v1061 = vrot.slane %v848, %v1060
        %v1062 = vlaneseq
        %v1063 = vshrl.u32 %v1062, 7
        %v1064 = vsub.s32 0, %v1063
        %v1065 = vrot.slane %v849, %v1064
        %v1066 = vlaneseq
        %v1067 = vshrl.u32 %v1066, 7
        %v1068 = vsub.s32 1, %v1067
        %v1069 = vrot.slane %v849, %v1068
        %v1070 = vlaneseq
        %v1071 = vshrl.u32 %v1070, 7
        %v1072 = vsub.s32 0, %v1071
        %v1073 = vrot.slane %v850, %v1072
        %v1074 = vlaneseq
        %v1075 = vshrl.u32 %v1074, 7
        %v1076 = vsub.s32 1, %v1075
        %v1077 = vrot.slane %v850, %v1076
        %v1078 = vlaneseq
        %v1079 = vshrl.u32 %v1078, 7
        %v1080 = vsub.s32 0, %v1079
        %v1081 = vrot.slane %v851, %v1080
        %v1082 = vlaneseq
        %v1083 = vshrl.u32 %v1082, 7
        %v1084 = vsub.s32 1, %v1083
        %v1085 = vrot.slane %v851, %v1084
        %v1102 = vpack.c.bf16 %v1025, %v1025
        %v1103 = vpack.c.bf16 %v1029, %v1029
        %v1104 = vpack.c.bf16 %v1033, %v1033
        %v1105 = vpack.c.bf16 %v1037, %v1037
        %v1106 = vpack.c.bf16 %v1041, %v1041
        %v1107 = vpack.c.bf16 %v1045, %v1045
        %v1108 = vpack.c.bf16 %v1049, %v1049
        %v1109 = vpack.c.bf16 %v1053, %v1053
        %v1110 = vpack.c.bf16 %v1057, %v1057
        %v1111 = vpack.c.bf16 %v1061, %v1061
        %v1112 = vpack.c.bf16 %v1065, %v1065
        %v1113 = vpack.c.bf16 %v1069, %v1069
        %v1114 = vpack.c.bf16 %v1073, %v1073
        %v1115 = vpack.c.bf16 %v1077, %v1077
        %v1116 = vpack.c.bf16 %v1081, %v1081
        %v1117 = vpack.c.bf16 %v1085, %v1085
        %v1119 = vlaneseq
        %v1120 = vshrl.u32 %v1119, 7
        %v1121 = vsub.s32 0, %v1120
        %v1122 = vrot.slane %v1013, %v1121
        %v1123 = vlaneseq
        %v1124 = vshrl.u32 %v1123, 7
        %v1125 = vsub.s32 1, %v1124
        %v1126 = vrot.slane %v1013, %v1125
        %v1145 = vunpack.c.l.b16 %v1102
        %v1146 = vunpack.c.l.b16 %v1103
        %v1147 = vunpack.c.l.b16 %v1104
        %v1148 = vunpack.c.l.b16 %v1105
        %v1149 = vunpack.c.l.b16 %v1106
        %v1150 = vunpack.c.l.b16 %v1107
        %v1151 = vunpack.c.l.b16 %v1108
        %v1152 = vunpack.c.l.b16 %v1109
        %v1153 = vunpack.c.l.b16 %v1110
        %v1154 = vunpack.c.l.b16 %v1111
        %v1155 = vunpack.c.l.b16 %v1112
        %v1156 = vunpack.c.l.b16 %v1113
        %v1157 = vunpack.c.l.b16 %v1114
        %v1158 = vunpack.c.l.b16 %v1115
        %v1159 = vunpack.c.l.b16 %v1116
        %v1160 = vunpack.c.l.b16 %v1117
        %v1161 = vrot.slane %v1147, 7
        %v1162 = vsel %vm545, %v1161, %v1145
        %v1163 = vrot.slane %v1149, 6
        %v1164 = vsel %vm548, %v1163, %v1162
        %v1165 = vrot.slane %v1151, 5
        %v1166 = vsel %vm551, %v1165, %v1164
        %v1167 = vrot.slane %v1153, 4
        %v1168 = vsel %vm554, %v1167, %v1166
        %v1169 = vrot.slane %v1155, 3
        %v1170 = vsel %vm557, %v1169, %v1168
        %v1171 = vrot.slane %v1157, 2
        %v1172 = vsel %vm560, %v1171, %v1170
        %v1173 = vrot.slane %v1159, 1
        %v1174 = vsel %vm563, %v1173, %v1172
        %v1175 = vrot.slane %v1148, 7
        %v1176 = vsel %vm545, %v1175, %v1146
        %v1177 = vrot.slane %v1150, 6
        %v1178 = vsel %vm548, %v1177, %v1176
        %v1179 = vrot.slane %v1152, 5
        %v1180 = vsel %vm551, %v1179, %v1178
        %v1181 = vrot.slane %v1154, 4
        %v1182 = vsel %vm554, %v1181, %v1180
        %v1183 = vrot.slane %v1156, 3
        %v1184 = vsel %vm557, %v1183, %v1182
        %v1185 = vrot.slane %v1158, 2
        %v1186 = vsel %vm560, %v1185, %v1184
        %v1187 = vrot.slane %v1160, 1
        %v1188 = vsel %vm563, %v1187, %v1186
        %v1189 = vpack.c.b16 %v1174, %v1174
        %v1190 = vpack.c.b16 %v1188, %v1188
        %v1225 = vunpack.c.l.b16 %v980
        %v1226 = vunpack.c.h.b16 %v980
        %v1227 = vunpack.c.l.b16 %v981
        %v1228 = vunpack.c.h.b16 %v981
        %v1229 = vunpack.c.l.b16 %v982
        %v1230 = vunpack.c.h.b16 %v982
        %v1231 = vunpack.c.l.b16 %v983
        %v1232 = vunpack.c.h.b16 %v983
        %v1233 = vunpack.c.l.b16 %v984
        %v1234 = vunpack.c.h.b16 %v984
        %v1235 = vunpack.c.l.b16 %v985
        %v1236 = vunpack.c.h.b16 %v985
        %v1237 = vunpack.c.l.b16 %v986
        %v1238 = vunpack.c.h.b16 %v986
        %v1239 = vunpack.c.l.b16 %v987
        %v1240 = vunpack.c.h.b16 %v987
        %v1241 = vunpack.c.l.b16 %v988
        %v1242 = vunpack.c.h.b16 %v988
        %v1243 = vunpack.c.l.b16 %v989
        %v1244 = vunpack.c.h.b16 %v989
        %v1245 = vunpack.c.l.b16 %v990
        %v1246 = vunpack.c.h.b16 %v990
        %v1247 = vunpack.c.l.b16 %v991
        %v1248 = vunpack.c.h.b16 %v991
        %v1249 = vunpack.c.l.b16 %v992
        %v1250 = vunpack.c.h.b16 %v992
        %v1251 = vunpack.c.l.b16 %v993
        %v1252 = vunpack.c.h.b16 %v993
        %v1253 = vunpack.c.l.b16 %v994
        %v1254 = vunpack.c.h.b16 %v994
        %v1255 = vunpack.c.l.b16 %v995
        %v1256 = vunpack.c.h.b16 %v995
        %v1257 = vunpack.c.l.b16 %v996
        %v1258 = vunpack.c.h.b16 %v996
        %v1259 = vunpack.c.l.b16 %v997
        %v1260 = vunpack.c.h.b16 %v997
        %v1261 = vunpack.c.l.b16 %v998
        %v1262 = vunpack.c.h.b16 %v998
        %v1263 = vunpack.c.l.b16 %v999
        %v1264 = vunpack.c.h.b16 %v999
        %v1265 = vunpack.c.l.b16 %v1000
        %v1266 = vunpack.c.h.b16 %v1000
        %v1267 = vunpack.c.l.b16 %v1001
        %v1268 = vunpack.c.h.b16 %v1001
        %v1269 = vunpack.c.l.b16 %v1002
        %v1270 = vunpack.c.h.b16 %v1002
        %v1271 = vunpack.c.l.b16 %v1003
        %v1272 = vunpack.c.h.b16 %v1003
        %v1273 = vunpack.c.l.b16 %v1004
        %v1274 = vunpack.c.h.b16 %v1004
        %v1275 = vunpack.c.l.b16 %v1005
        %v1276 = vunpack.c.h.b16 %v1005
        %v1277 = vunpack.c.l.b16 %v1006
        %v1278 = vunpack.c.h.b16 %v1006
        %v1279 = vunpack.c.l.b16 %v1007
        %v1280 = vunpack.c.h.b16 %v1007
        %v1281 = vunpack.c.l.b16 %v1008
        %v1282 = vunpack.c.h.b16 %v1008
        %v1283 = vunpack.c.l.b16 %v1009
        %v1284 = vunpack.c.h.b16 %v1009
        %v1285 = vunpack.c.l.b16 %v1010
        %v1286 = vunpack.c.h.b16 %v1010
        %v1287 = vunpack.c.l.b16 %v1011
        %v1288 = vunpack.c.h.b16 %v1011
        %v1289 = vpack.c.b16 %v1227, %v1225
        %v1290 = vpack.c.b16 %v1228, %v1226
        %v1291 = vpack.c.b16 %v1231, %v1229
        %v1292 = vpack.c.b16 %v1232, %v1230
        %v1293 = vpack.c.b16 %v1235, %v1233
        %v1294 = vpack.c.b16 %v1236, %v1234
        %v1295 = vpack.c.b16 %v1239, %v1237
        %v1296 = vpack.c.b16 %v1240, %v1238
        %v1297 = vpack.c.b16 %v1243, %v1241
        %v1298 = vpack.c.b16 %v1244, %v1242
        %v1299 = vpack.c.b16 %v1247, %v1245
        %v1300 = vpack.c.b16 %v1248, %v1246
        %v1301 = vpack.c.b16 %v1251, %v1249
        %v1302 = vpack.c.b16 %v1252, %v1250
        %v1303 = vpack.c.b16 %v1255, %v1253
        %v1304 = vpack.c.b16 %v1256, %v1254
        %v1305 = vpack.c.b16 %v1259, %v1257
        %v1306 = vpack.c.b16 %v1260, %v1258
        %v1307 = vpack.c.b16 %v1263, %v1261
        %v1308 = vpack.c.b16 %v1264, %v1262
        %v1309 = vpack.c.b16 %v1267, %v1265
        %v1310 = vpack.c.b16 %v1268, %v1266
        %v1311 = vpack.c.b16 %v1271, %v1269
        %v1312 = vpack.c.b16 %v1272, %v1270
        %v1313 = vpack.c.b16 %v1275, %v1273
        %v1314 = vpack.c.b16 %v1276, %v1274
        %v1315 = vpack.c.b16 %v1279, %v1277
        %v1316 = vpack.c.b16 %v1280, %v1278
        %v1317 = vpack.c.b16 %v1283, %v1281
        %v1318 = vpack.c.b16 %v1284, %v1282
        %v1319 = vpack.c.b16 %v1287, %v1285
        %v1320 = vpack.c.b16 %v1288, %v1286
        %1353 = vmatprep.subr.bf16.mxu0 %v1304
        %1354 = vmatpush1.bf16.msra.mxu0 %v1303
        %1355 = vmatprep.subr.bf16.mxu0 %v1302
        %1356 = vmatpush1.bf16.msra.mxu0 %v1301
        %1357 = vmatprep.subr.bf16.mxu0 %v1300
        %1358 = vmatpush1.bf16.msra.mxu0 %v1299
        %1359 = vmatprep.subr.bf16.mxu0 %v1298
        %1360 = vmatpush1.bf16.msra.mxu0 %v1297
        %1361 = vmatprep.subr.bf16.mxu0 %v1296
        %1362 = vmatpush1.bf16.msra.mxu0 %v1295
        %1363 = vmatprep.subr.bf16.mxu0 %v1294
        %1364 = vmatpush1.bf16.msra.mxu0 %v1293
        %1365 = vmatprep.subr.bf16.mxu0 %v1292
        %1366 = vmatpush1.bf16.msra.mxu0 %v1291
        %1367 = vmatprep.subr.bf16.mxu0 %v1290
        %1368 = vmatpush1.bf16.msra.mxu0 %v1289
        %1369 = vmatprep.subr.bf16.mxu0 %v1320
        %1370 = vmatpush2.bf16.msra.mxu0 %v1319
        %1371 = vmatprep.subr.bf16.mxu0 %v1318
        %1372 = vmatpush2.bf16.msra.mxu0 %v1317
        %1373 = vmatprep.subr.bf16.mxu0 %v1316
        %1374 = vmatpush2.bf16.msra.mxu0 %v1315
        %1375 = vmatprep.subr.bf16.mxu0 %v1314
        %1376 = vmatpush2.bf16.msra.mxu0 %v1313
        %1377 = vmatprep.subr.bf16.mxu0 %v1312
        %1378 = vmatpush2.bf16.msra.mxu0 %v1311
        %1379 = vmatprep.subr.bf16.mxu0 %v1310
        %1380 = vmatpush2.bf16.msra.mxu0 %v1309
        %1381 = vmatprep.subr.bf16.mxu0 %v1308
        %1382 = vmatpush2.bf16.msra.mxu0 %v1307
        %1383 = vmatprep.subr.bf16.mxu0 %v1306
        %1384 = vmatpush2.bf16.msra.mxu0 %v1305
        %1385 = vmatprep.mubr.bf16.mxu0 %v1190
        %1386 = vmatmul.mubr.bf16.gmra.mxu0 %v1189
        %v1387 = vpop.f32.mrf.mxu0
        %v1388 = vadd.f32 %v1122, %v1387
        %v1389 = vpop.f32.mrf.mxu0
        %v1390 = vadd.f32 %v1126, %v1389
        %v1391 = vpop.f32.mrf.mxu0
        %v1392 = vpop.f32.mrf.mxu0
        %1393 = vdwg.mxu0
        %v1394 = vpack.c.bf16 %v1388, %v1388
        %v1395 = vpack.c.bf16 %v1390, %v1390
        %v1398 = vcombine.low %v1394, %v1395
        %v1400 = vunpack.c.l.s4 1966171168
        %v1401 = vunpack.c.0.s8 %v1400
        %v1402 = vlaneseq
        %v1403 = vshrl.u32 %v1402, 7
        %v1404 = vsub.s32 %v1401, %v1403
        %v1405 = vrot.slane %v1398, %v1404
        %v1406 = vcombine.high %v1405, %v1405
        %v1408 = vunpack.c.l.s4 1966171168
        %v1409 = vunpack.c.0.s8 %v1408
        %v1410 = vlaneseq
        %v1411 = vshrl.u32 %v1410, 7
        %v1412 = vsub.s32 %v1409, %v1411
        %v1413 = vrot.slane %v1405, %v1412
        %v1415 = vunpack.c.l.s4 1966171168
        %v1416 = vunpack.c.0.s8 %v1415
        %v1417 = vlaneseq
        %v1418 = vshrl.u32 %v1417, 7
        %v1419 = vsub.s32 %v1416, %v1418
        %v1420 = vrot.slane %v1406, %v1419
        %v1421 = vcombine.high %v1413, %v1413
        %v1422 = vcombine.high %v1420, %v1420
        %v1423 = vunpack.i.l.s16 %v1413
        %v1424 = vunpack.i.h.s16 %v1413
        %v1425 = vunpack.i.l.s16 %v1420
        %v1426 = vunpack.i.h.s16 %v1420
        %v1427 = vunpack.i.l.s16 %v1421
        %v1428 = vunpack.i.h.s16 %v1421
        %v1429 = vunpack.i.l.s16 %v1422
        %v1430 = vunpack.i.h.s16 %v1422
        %v1431 = vpack.i.b16 %v1423, %v1423
        %v1432 = vpack.i.b16 %v1424, %v1424
        %v1433 = vpack.i.b16 %v1425, %v1425
        %v1434 = vpack.i.b16 %v1426, %v1426
        %v1435 = vpack.i.b16 %v1427, %v1427
        %v1436 = vpack.i.b16 %v1428, %v1428
        %v1437 = vpack.i.b16 %v1429, %v1429
        %v1438 = vpack.i.b16 %v1430, %v1430
        %v1439 = vlaneseq
        %v1440 = vshrl.u32 %v1439, 7
        %v1441 = vsub.s32 0, %v1440
        %v1442 = vrot.slane %v1431, %v1441
        %v1443 = vlaneseq
        %v1444 = vshrl.u32 %v1443, 7
        %v1445 = vsub.s32 1, %v1444
        %v1446 = vrot.slane %v1431, %v1445
        %v1447 = vlaneseq
        %v1448 = vshrl.u32 %v1447, 7
        %v1449 = vsub.s32 0, %v1448
        %v1450 = vrot.slane %v1432, %v1449
        %v1451 = vlaneseq
        %v1452 = vshrl.u32 %v1451, 7
        %v1453 = vsub.s32 1, %v1452
        %v1454 = vrot.slane %v1432, %v1453
        %v1455 = vlaneseq
        %v1456 = vshrl.u32 %v1455, 7
        %v1457 = vsub.s32 0, %v1456
        %v1458 = vrot.slane %v1433, %v1457
        %v1459 = vlaneseq
        %v1460 = vshrl.u32 %v1459, 7
        %v1461 = vsub.s32 1, %v1460
        %v1462 = vrot.slane %v1433, %v1461
        %v1463 = vlaneseq
        %v1464 = vshrl.u32 %v1463, 7
        %v1465 = vsub.s32 0, %v1464
        %v1466 = vrot.slane %v1434, %v1465
        %v1467 = vlaneseq
        %v1468 = vshrl.u32 %v1467, 7
        %v1469 = vsub.s32 1, %v1468
        %v1470 = vrot.slane %v1434, %v1469
        %v1471 = vlaneseq
        %v1472 = vshrl.u32 %v1471, 7
        %v1473 = vsub.s32 0, %v1472
        %v1474 = vrot.slane %v1435, %v1473
        %v1475 = vlaneseq
        %v1476 = vshrl.u32 %v1475, 7
        %v1477 = vsub.s32 1, %v1476
        %v1478 = vrot.slane %v1435, %v1477
        %v1479 = vlaneseq
        %v1480 = vshrl.u32 %v1479, 7
        %v1481 = vsub.s32 0, %v1480
        %v1482 = vrot.slane %v1436, %v1481
        %v1483 = vlaneseq
        %v1484 = vshrl.u32 %v1483, 7
        %v1485 = vsub.s32 1, %v1484
        %v1486 = vrot.slane %v1436, %v1485
        %v1487 = vlaneseq
        %v1488 = vshrl.u32 %v1487, 7
        %v1489 = vsub.s32 0, %v1488
        %v1490 = vrot.slane %v1437, %v1489
        %v1491 = vlaneseq
        %v1492 = vshrl.u32 %v1491, 7
        %v1493 = vsub.s32 1, %v1492
        %v1494 = vrot.slane %v1437, %v1493
        %v1495 = vlaneseq
        %v1496 = vshrl.u32 %v1495, 7
        %v1497 = vsub.s32 0, %v1496
        %v1498 = vrot.slane %v1438, %v1497
        %v1499 = vlaneseq
        %v1500 = vshrl.u32 %v1499, 7
        %v1501 = vsub.s32 1, %v1500
        %v1502 = vrot.slane %v1438, %v1501
        %v1504 = vpack.i.b16 %v1442, %v1442
        %v1506 = vlaneseq
        %v1507 = vshrl.u32 %v1506, 7
        %v1508 = vsub.s32 0, %v1507
        %v1509 = vrot.slane %v1504, %v1508
        %v1511 = vpack.i.b16 %v1446, %v1446
        %v1513 = vlaneseq
        %v1514 = vshrl.u32 %v1513, 7
        %v1515 = vsub.s32 0, %v1514
        %v1516 = vrot.slane %v1511, %v1515
        %v1518 = vpack.i.b16 %v1450, %v1450
        %v1520 = vlaneseq
        %v1521 = vshrl.u32 %v1520, 7
        %v1522 = vsub.s32 0, %v1521
        %v1523 = vrot.slane %v1518, %v1522
        %v1525 = vpack.i.b16 %v1454, %v1454
        %v1527 = vlaneseq
        %v1528 = vshrl.u32 %v1527, 7
        %v1529 = vsub.s32 0, %v1528
        %v1530 = vrot.slane %v1525, %v1529
        %v1532 = vpack.i.b16 %v1458, %v1458
        %v1534 = vlaneseq
        %v1535 = vshrl.u32 %v1534, 7
        %v1536 = vsub.s32 0, %v1535
        %v1537 = vrot.slane %v1532, %v1536
        %v1539 = vpack.i.b16 %v1462, %v1462
        %v1541 = vlaneseq
        %v1542 = vshrl.u32 %v1541, 7
        %v1543 = vsub.s32 0, %v1542
        %v1544 = vrot.slane %v1539, %v1543
        %v1546 = vpack.i.b16 %v1466, %v1466
        %v1548 = vlaneseq
        %v1549 = vshrl.u32 %v1548, 7
        %v1550 = vsub.s32 0, %v1549
        %v1551 = vrot.slane %v1546, %v1550
        %v1553 = vpack.i.b16 %v1470, %v1470
        %v1555 = vlaneseq
        %v1556 = vshrl.u32 %v1555, 7
        %v1557 = vsub.s32 0, %v1556
        %v1558 = vrot.slane %v1553, %v1557
        %v1560 = vpack.i.b16 %v1474, %v1474
        %v1562 = vlaneseq
        %v1563 = vshrl.u32 %v1562, 7
        %v1564 = vsub.s32 0, %v1563
        %v1565 = vrot.slane %v1560, %v1564
        %v1567 = vpack.i.b16 %v1478, %v1478
        %v1569 = vlaneseq
        %v1570 = vshrl.u32 %v1569, 7
        %v1571 = vsub.s32 0, %v1570
        %v1572 = vrot.slane %v1567, %v1571
        %v1574 = vpack.i.b16 %v1482, %v1482
        %v1576 = vlaneseq
        %v1577 = vshrl.u32 %v1576, 7
        %v1578 = vsub.s32 0, %v1577
        %v1579 = vrot.slane %v1574, %v1578
        %v1581 = vpack.i.b16 %v1486, %v1486
        %v1583 = vlaneseq
        %v1584 = vshrl.u32 %v1583, 7
        %v1585 = vsub.s32 0, %v1584
        %v1586 = vrot.slane %v1581, %v1585
        %v1588 = vpack.i.b16 %v1490, %v1490
        %v1590 = vlaneseq
        %v1591 = vshrl.u32 %v1590, 7
        %v1592 = vsub.s32 0, %v1591
        %v1593 = vrot.slane %v1588, %v1592
        %v1595 = vpack.i.b16 %v1494, %v1494
        %v1597 = vlaneseq
        %v1598 = vshrl.u32 %v1597, 7
        %v1599 = vsub.s32 0, %v1598
        %v1600 = vrot.slane %v1595, %v1599
        %v1602 = vpack.i.b16 %v1498, %v1498
        %v1604 = vlaneseq
        %v1605 = vshrl.u32 %v1604, 7
        %v1606 = vsub.s32 0, %v1605
        %v1607 = vrot.slane %v1602, %v1606
        %v1609 = vpack.i.b16 %v1502, %v1502
        %v1611 = vlaneseq
        %v1612 = vshrl.u32 %v1611, 7
        %v1613 = vsub.s32 0, %v1612
        %v1614 = vrot.slane %v1609, %v1613
        %v1631 = vunpack.c.l.b16 %v1509
        %v1632 = vunpack.c.l.b16 %v1516
        %v1633 = vunpack.c.l.b16 %v1523
        %v1634 = vunpack.c.l.b16 %v1530
        %v1635 = vunpack.c.l.b16 %v1537
        %v1636 = vunpack.c.l.b16 %v1544
        %v1637 = vunpack.c.l.b16 %v1551
        %v1638 = vunpack.c.l.b16 %v1558
        %v1639 = vunpack.c.l.b16 %v1565
        %v1640 = vunpack.c.l.b16 %v1572
        %v1641 = vunpack.c.l.b16 %v1579
        %v1642 = vunpack.c.l.b16 %v1586
        %v1643 = vunpack.c.l.b16 %v1593
        %v1644 = vunpack.c.l.b16 %v1600
        %v1645 = vunpack.c.l.b16 %v1607
        %v1646 = vunpack.c.l.b16 %v1614
        %v1647 = vpack.c.b16 %v1632, %v1631
        %v1648 = vpack.c.b16 %v1634, %v1633
        %v1649 = vpack.c.b16 %v1636, %v1635
        %v1650 = vpack.c.b16 %v1638, %v1637
        %v1651 = vpack.c.b16 %v1640, %v1639
        %v1652 = vpack.c.b16 %v1642, %v1641
        %v1653 = vpack.c.b16 %v1644, %v1643
        %v1654 = vpack.c.b16 %v1646, %v1645
        %v1663 = vmul.bf16 %v852, %v1647
        %v1664 = vmul.bf16 %v853, %v1647
        %v1665 = vmul.bf16 %v854, %v1647
        %v1666 = vmul.bf16 %v855, %v1647
        %v1667 = vmul.bf16 %v856, %v1647
        %v1668 = vmul.bf16 %v857, %v1647
        %v1669 = vmul.bf16 %v858, %v1647
        %v1670 = vmul.bf16 %v859, %v1647
        %v1671 = vmul.bf16 %v860, %v1648
        %v1672 = vmul.bf16 %v861, %v1648
        %v1673 = vmul.bf16 %v862, %v1648
        %v1674 = vmul.bf16 %v863, %v1648
        %v1675 = vmul.bf16 %v864, %v1648
        %v1676 = vmul.bf16 %v865, %v1648
        %v1677 = vmul.bf16 %v866, %v1648
        %v1678 = vmul.bf16 %v867, %v1648
        %v1679 = vmul.bf16 %v868, %v1649
        %v1680 = vmul.bf16 %v869, %v1649
        %v1681 = vmul.bf16 %v870, %v1649
        %v1682 = vmul.bf16 %v871, %v1649
        %v1683 = vmul.bf16 %v872, %v1649
        %v1684 = vmul.bf16 %v873, %v1649
        %v1685 = vmul.bf16 %v874, %v1649
        %v1686 = vmul.bf16 %v875, %v1649
        %v1687 = vmul.bf16 %v876, %v1650
        %v1688 = vmul.bf16 %v877, %v1650
        %v1689 = vmul.bf16 %v878, %v1650
        %v1690 = vmul.bf16 %v879, %v1650
        %v1691 = vmul.bf16 %v880, %v1650
        %v1692 = vmul.bf16 %v881, %v1650
        %v1693 = vmul.bf16 %v882, %v1650
        %v1694 = vmul.bf16 %v883, %v1650
        %v1695 = vmul.bf16 %v884, %v1651
        %v1696 = vmul.bf16 %v885, %v1651
        %v1697 = vmul.bf16 %v886, %v1651
        %v1698 = vmul.bf16 %v887, %v1651
        %v1699 = vmul.bf16 %v888, %v1651
        %v1700 = vmul.bf16 %v889, %v1651
        %v1701 = vmul.bf16 %v890, %v1651
        %v1702 = vmul.bf16 %v891, %v1651
        %v1703 = vmul.bf16 %v892, %v1652
        %v1704 = vmul.bf16 %v893, %v1652
        %v1705 = vmul.bf16 %v894, %v1652
        %v1706 = vmul.bf16 %v895, %v1652
        %v1707 = vmul.bf16 %v896, %v1652
        %v1708 = vmul.bf16 %v897, %v1652
        %v1709 = vmul.bf16 %v898, %v1652
        %v1710 = vmul.bf16 %v899, %v1652
        %v1711 = vmul.bf16 %v900, %v1653
        %v1712 = vmul.bf16 %v901, %v1653
        %v1713 = vmul.bf16 %v902, %v1653
        %v1714 = vmul.bf16 %v903, %v1653
        %v1715 = vmul.bf16 %v904, %v1653
        %v1716 = vmul.bf16 %v905, %v1653
        %v1717 = vmul.bf16 %v906, %v1653
        %v1718 = vmul.bf16 %v907, %v1653
        %v1719 = vmul.bf16 %v908, %v1654
        %v1720 = vmul.bf16 %v909, %v1654
        %v1721 = vmul.bf16 %v910, %v1654
        %v1722 = vmul.bf16 %v911, %v1654
        %v1723 = vmul.bf16 %v912, %v1654
        %v1724 = vmul.bf16 %v913, %v1654
        %v1725 = vmul.bf16 %v914, %v1654
        %v1726 = vmul.bf16 %v915, %v1654
        %v1727 = vld [vmem:[%s4] sm:$0xf]
        %v1728 = vld [vmem:[%s4 + $0x4] sm:$0xf]
        %v1729 = vld [vmem:[%s4 + $0x8] sm:$0xf]
        %v1730 = vld [vmem:[%s4 + $0xc] sm:$0xf]
        %v1731 = vld [vmem:[%s4 + $0x10] sm:$0xf]
        %v1732 = vld [vmem:[%s4 + $0x14] sm:$0xf]
        %v1733 = vld [vmem:[%s4 + $0x18] sm:$0xf]
        %v1734 = vld [vmem:[%s4 + $0x1c] sm:$0xf]
        %v1735 = vld [vmem:[%s4 + $0x20] sm:$0xf]
        %v1736 = vld [vmem:[%s4 + $0x24] sm:$0xf]
        %v1737 = vld [vmem:[%s4 + $0x28] sm:$0xf]
        %v1738 = vld [vmem:[%s4 + $0x2c] sm:$0xf]
        %v1739 = vld [vmem:[%s4 + $0x30] sm:$0xf]
        %v1740 = vld [vmem:[%s4 + $0x34] sm:$0xf]
        %v1741 = vld [vmem:[%s4 + $0x38] sm:$0xf]
        %v1742 = vld [vmem:[%s4 + $0x3c] sm:$0xf]
        %v1743 = vld [vmem:[%s4 + $0x40] sm:$0xf]
        %v1744 = vld [vmem:[%s4 + $0x44] sm:$0xf]
        %v1745 = vld [vmem:[%s4 + $0x48] sm:$0xf]
        %v1746 = vld [vmem:[%s4 + $0x4c] sm:$0xf]
        %v1747 = vld [vmem:[%s4 + $0x50] sm:$0xf]
        %v1748 = vld [vmem:[%s4 + $0x54] sm:$0xf]
        %v1749 = vld [vmem:[%s4 + $0x58] sm:$0xf]
        %v1750 = vld [vmem:[%s4 + $0x5c] sm:$0xf]
        %v1751 = vld [vmem:[%s4 + $0x60] sm:$0xf]
        %v1752 = vld [vmem:[%s4 + $0x64] sm:$0xf]
        %v1753 = vld [vmem:[%s4 + $0x68] sm:$0xf]
        %v1754 = vld [vmem:[%s4 + $0x6c] sm:$0xf]
        %v1755 = vld [vmem:[%s4 + $0x70] sm:$0xf]
        %v1756 = vld [vmem:[%s4 + $0x74] sm:$0xf]
        %v1757 = vld [vmem:[%s4 + $0x78] sm:$0xf]
        %v1758 = vld [vmem:[%s4 + $0x7c] sm:$0xf]
        %v1823 = vunpack.c.l.b16 %v1663
        %v1824 = vunpack.c.h.b16 %v1663
        %v1825 = vunpack.c.l.b16 %v1664
        %v1826 = vunpack.c.h.b16 %v1664
        %v1827 = vunpack.c.l.b16 %v1665
        %v1828 = vunpack.c.h.b16 %v1665
        %v1829 = vunpack.c.l.b16 %v1666
        %v1830 = vunpack.c.h.b16 %v1666
        %v1831 = vunpack.c.l.b16 %v1667
        %v1832 = vunpack.c.h.b16 %v1667
        %v1833 = vunpack.c.l.b16 %v1668
        %v1834 = vunpack.c.h.b16 %v1668
        %v1835 = vunpack.c.l.b16 %v1669
        %v1836 = vunpack.c.h.b16 %v1669
        %v1837 = vunpack.c.l.b16 %v1670
        %v1838 = vunpack.c.h.b16 %v1670
        %v1839 = vunpack.c.l.b16 %v1671
        %v1840 = vunpack.c.h.b16 %v1671
        %v1841 = vunpack.c.l.b16 %v1672
        %v1842 = vunpack.c.h.b16 %v1672
        %v1843 = vunpack.c.l.b16 %v1673
        %v1844 = vunpack.c.h.b16 %v1673
        %v1845 = vunpack.c.l.b16 %v1674
        %v1846 = vunpack.c.h.b16 %v1674
        %v1847 = vunpack.c.l.b16 %v1675
        %v1848 = vunpack.c.h.b16 %v1675
        %v1849 = vunpack.c.l.b16 %v1676
        %v1850 = vunpack.c.h.b16 %v1676
        %v1851 = vunpack.c.l.b16 %v1677
        %v1852 = vunpack.c.h.b16 %v1677
        %v1853 = vunpack.c.l.b16 %v1678
        %v1854 = vunpack.c.h.b16 %v1678
        %v1855 = vunpack.c.l.b16 %v1679
        %v1856 = vunpack.c.h.b16 %v1679
        %v1857 = vunpack.c.l.b16 %v1680
        %v1858 = vunpack.c.h.b16 %v1680
        %v1859 = vunpack.c.l.b16 %v1681
        %v1860 = vunpack.c.h.b16 %v1681
        %v1861 = vunpack.c.l.b16 %v1682
        %v1862 = vunpack.c.h.b16 %v1682
        %v1863 = vunpack.c.l.b16 %v1683
        %v1864 = vunpack.c.h.b16 %v1683
        %v1865 = vunpack.c.l.b16 %v1684
        %v1866 = vunpack.c.h.b16 %v1684
        %v1867 = vunpack.c.l.b16 %v1685
        %v1868 = vunpack.c.h.b16 %v1685
        %v1869 = vunpack.c.l.b16 %v1686
        %v1870 = vunpack.c.h.b16 %v1686
        %v1871 = vunpack.c.l.b16 %v1687
        %v1872 = vunpack.c.h.b16 %v1687
        %v1873 = vunpack.c.l.b16 %v1688
        %v1874 = vunpack.c.h.b16 %v1688
        %v1875 = vunpack.c.l.b16 %v1689
        %v1876 = vunpack.c.h.b16 %v1689
        %v1877 = vunpack.c.l.b16 %v1690
        %v1878 = vunpack.c.h.b16 %v1690
        %v1879 = vunpack.c.l.b16 %v1691
        %v1880 = vunpack.c.h.b16 %v1691
        %v1881 = vunpack.c.l.b16 %v1692
        %v1882 = vunpack.c.h.b16 %v1692
        %v1883 = vunpack.c.l.b16 %v1693
        %v1884 = vunpack.c.h.b16 %v1693
        %v1885 = vunpack.c.l.b16 %v1694
        %v1886 = vunpack.c.h.b16 %v1694
        %v1887 = vunpack.c.l.b16 %v1695
        %v1888 = vunpack.c.h.b16 %v1695
        %v1889 = vunpack.c.l.b16 %v1696
        %v1890 = vunpack.c.h.b16 %v1696
        %v1891 = vunpack.c.l.b16 %v1697
        %v1892 = vunpack.c.h.b16 %v1697
        %v1893 = vunpack.c.l.b16 %v1698
        %v1894 = vunpack.c.h.b16 %v1698
        %v1895 = vunpack.c.l.b16 %v1699
        %v1896 = vunpack.c.h.b16 %v1699
        %v1897 = vunpack.c.l.b16 %v1700
        %v1898 = vunpack.c.h.b16 %v1700
        %v1899 = vunpack.c.l.b16 %v1701
        %v1900 = vunpack.c.h.b16 %v1701
        %v1901 = vunpack.c.l.b16 %v1702
        %v1902 = vunpack.c.h.b16 %v1702
        %v1903 = vunpack.c.l.b16 %v1703
        %v1904 = vunpack.c.h.b16 %v1703
        %v1905 = vunpack.c.l.b16 %v1704
        %v1906 = vunpack.c.h.b16 %v1704
        %v1907 = vunpack.c.l.b16 %v1705
        %v1908 = vunpack.c.h.b16 %v1705
        %v1909 = vunpack.c.l.b16 %v1706
        %v1910 = vunpack.c.h.b16 %v1706
        %v1911 = vunpack.c.l.b16 %v1707
        %v1912 = vunpack.c.h.b16 %v1707
        %v1913 = vunpack.c.l.b16 %v1708
        %v1914 = vunpack.c.h.b16 %v1708
        %v1915 = vunpack.c.l.b16 %v1709
        %v1916 = vunpack.c.h.b16 %v1709
        %v1917 = vunpack.c.l.b16 %v1710
        %v1918 = vunpack.c.h.b16 %v1710
        %v1919 = vunpack.c.l.b16 %v1711
        %v1920 = vunpack.c.h.b16 %v1711
        %v1921 = vunpack.c.l.b16 %v1712
        %v1922 = vunpack.c.h.b16 %v1712
        %v1923 = vunpack.c.l.b16 %v1713
        %v1924 = vunpack.c.h.b16 %v1713
        %v1925 = vunpack.c.l.b16 %v1714
        %v1926 = vunpack.c.h.b16 %v1714
        %v1927 = vunpack.c.l.b16 %v1715
        %v1928 = vunpack.c.h.b16 %v1715
        %v1929 = vunpack.c.l.b16 %v1716
        %v1930 = vunpack.c.h.b16 %v1716
        %v1931 = vunpack.c.l.b16 %v1717
        %v1932 = vunpack.c.h.b16 %v1717
        %v1933 = vunpack.c.l.b16 %v1718
        %v1934 = vunpack.c.h.b16 %v1718
        %v1935 = vunpack.c.l.b16 %v1719
        %v1936 = vunpack.c.h.b16 %v1719
        %v1937 = vunpack.c.l.b16 %v1720
        %v1938 = vunpack.c.h.b16 %v1720
        %v1939 = vunpack.c.l.b16 %v1721
        %v1940 = vunpack.c.h.b16 %v1721
        %v1941 = vunpack.c.l.b16 %v1722
        %v1942 = vunpack.c.h.b16 %v1722
        %v1943 = vunpack.c.l.b16 %v1723
        %v1944 = vunpack.c.h.b16 %v1723
        %v1945 = vunpack.c.l.b16 %v1724
        %v1946 = vunpack.c.h.b16 %v1724
        %v1947 = vunpack.c.l.b16 %v1725
        %v1948 = vunpack.c.h.b16 %v1725
        %v1949 = vunpack.c.l.b16 %v1726
        %v1950 = vunpack.c.h.b16 %v1726
        %v1951 = vpack.c.b16 %v1825, %v1823
        %v1952 = vpack.c.b16 %v1826, %v1824
        %v1953 = vpack.c.b16 %v1829, %v1827
        %v1954 = vpack.c.b16 %v1830, %v1828
        %v1955 = vpack.c.b16 %v1833, %v1831
        %v1956 = vpack.c.b16 %v1834, %v1832
        %v1957 = vpack.c.b16 %v1837, %v1835
        %v1958 = vpack.c.b16 %v1838, %v1836
        %v1959 = vpack.c.b16 %v1841, %v1839
        %v1960 = vpack.c.b16 %v1842, %v1840
        %v1961 = vpack.c.b16 %v1845, %v1843
        %v1962 = vpack.c.b16 %v1846, %v1844
        %v1963 = vpack.c.b16 %v1849, %v1847
        %v1964 = vpack.c.b16 %v1850, %v1848
        %v1965 = vpack.c.b16 %v1853, %v1851
        %v1966 = vpack.c.b16 %v1854, %v1852
        %v1967 = vpack.c.b16 %v1857, %v1855
        %v1968 = vpack.c.b16 %v1858, %v1856
        %v1969 = vpack.c.b16 %v1861, %v1859
        %v1970 = vpack.c.b16 %v1862, %v1860
        %v1971 = vpack.c.b16 %v1865, %v1863
        %v1972 = vpack.c.b16 %v1866, %v1864
        %v1973 = vpack.c.b16 %v1869, %v1867
        %v1974 = vpack.c.b16 %v1870, %v1868
        %v1975 = vpack.c.b16 %v1873, %v1871
        %v1976 = vpack.c.b16 %v1874, %v1872
        %v1977 = vpack.c.b16 %v1877, %v1875
        %v1978 = vpack.c.b16 %v1878, %v1876
        %v1979 = vpack.c.b16 %v1881, %v1879
        %v1980 = vpack.c.b16 %v1882, %v1880
        %v1981 = vpack.c.b16 %v1885, %v1883
        %v1982 = vpack.c.b16 %v1886, %v1884
        %v1983 = vpack.c.b16 %v1889, %v1887
        %v1984 = vpack.c.b16 %v1890, %v1888
        %v1985 = vpack.c.b16 %v1893, %v1891
        %v1986 = vpack.c.b16 %v1894, %v1892
        %v1987 = vpack.c.b16 %v1897, %v1895
        %v1988 = vpack.c.b16 %v1898, %v1896
        %v1989 = vpack.c.b16 %v1901, %v1899
        %v1990 = vpack.c.b16 %v1902, %v1900
        %v1991 = vpack.c.b16 %v1905, %v1903
        %v1992 = vpack.c.b16 %v1906, %v1904
        %v1993 = vpack.c.b16 %v1909, %v1907
        %v1994 = vpack.c.b16 %v1910, %v1908
        %v1995 = vpack.c.b16 %v1913, %v1911
        %v1996 = vpack.c.b16 %v1914, %v1912
        %v1997 = vpack.c.b16 %v1917, %v1915
        %v1998 = vpack.c.b16 %v1918, %v1916
        %v1999 = vpack.c.b16 %v1921, %v1919
        %v2000 = vpack.c.b16 %v1922, %v1920
        %v2001 = vpack.c.b16 %v1925, %v1923
        %v2002 = vpack.c.b16 %v1926, %v1924
        %v2003 = vpack.c.b16 %v1929, %v1927
        %v2004 = vpack.c.b16 %v1930, %v1928
        %v2005 = vpack.c.b16 %v1933, %v1931
        %v2006 = vpack.c.b16 %v1934, %v1932
        %v2007 = vpack.c.b16 %v1937, %v1935
        %v2008 = vpack.c.b16 %v1938, %v1936
        %v2009 = vpack.c.b16 %v1941, %v1939
        %v2010 = vpack.c.b16 %v1942, %v1940
        %v2011 = vpack.c.b16 %v1945, %v1943
        %v2012 = vpack.c.b16 %v1946, %v1944
        %v2013 = vpack.c.b16 %v1949, %v1947
        %v2014 = vpack.c.b16 %v1950, %v1948
        %v2111 = vunpack.c.l.b16 %v1727
        %v2112 = vunpack.c.l.b16 %v1728
        %v2113 = vunpack.c.l.b16 %v1729
        %v2114 = vunpack.c.l.b16 %v1730
        %v2115 = vunpack.c.l.b16 %v1731
        %v2116 = vunpack.c.l.b16 %v1732
        %v2117 = vunpack.c.l.b16 %v1733
        %v2118 = vunpack.c.l.b16 %v1734
        %v2119 = vunpack.c.l.b16 %v1735
        %v2120 = vunpack.c.l.b16 %v1736
        %v2121 = vunpack.c.l.b16 %v1737
        %v2122 = vunpack.c.l.b16 %v1738
        %v2123 = vunpack.c.l.b16 %v1739
        %v2124 = vunpack.c.l.b16 %v1740
        %v2125 = vunpack.c.l.b16 %v1741
        %v2126 = vunpack.c.l.b16 %v1742
        %v2127 = vunpack.c.l.b16 %v1743
        %v2128 = vunpack.c.l.b16 %v1744
        %v2129 = vunpack.c.l.b16 %v1745
        %v2130 = vunpack.c.l.b16 %v1746
        %v2131 = vunpack.c.l.b16 %v1747
        %v2132 = vunpack.c.l.b16 %v1748
        %v2133 = vunpack.c.l.b16 %v1749
        %v2134 = vunpack.c.l.b16 %v1750
        %v2135 = vunpack.c.l.b16 %v1751
        %v2136 = vunpack.c.l.b16 %v1752
        %v2137 = vunpack.c.l.b16 %v1753
        %v2138 = vunpack.c.l.b16 %v1754
        %v2139 = vunpack.c.l.b16 %v1755
        %v2140 = vunpack.c.l.b16 %v1756
        %v2141 = vunpack.c.l.b16 %v1757
        %v2142 = vunpack.c.l.b16 %v1758
        %v2143 = vpack.c.b16 %v2112, %v2111
        %v2144 = vpack.c.b16 %v2114, %v2113
        %v2145 = vpack.c.b16 %v2116, %v2115
        %v2146 = vpack.c.b16 %v2118, %v2117
        %v2147 = vpack.c.b16 %v2120, %v2119
        %v2148 = vpack.c.b16 %v2122, %v2121
        %v2149 = vpack.c.b16 %v2124, %v2123
        %v2150 = vpack.c.b16 %v2126, %v2125
        %v2151 = vpack.c.b16 %v2128, %v2127
        %v2152 = vpack.c.b16 %v2130, %v2129
        %v2153 = vpack.c.b16 %v2132, %v2131
        %v2154 = vpack.c.b16 %v2134, %v2133
        %v2155 = vpack.c.b16 %v2136, %v2135
        %v2156 = vpack.c.b16 %v2138, %v2137
        %v2157 = vpack.c.b16 %v2140, %v2139
        %v2158 = vpack.c.b16 %v2142, %v2141
        %2175 = vmatprep.subr.bf16.mxu0 0
        %2176 = vmatpush1.bf16.msra.mxu0 %v2150
        %2177 = vmatprep.subr.bf16.mxu0 0
        %2178 = vmatpush1.bf16.msra.mxu0 %v2149
        %2179 = vmatprep.subr.bf16.mxu0 0
        %2180 = vmatpush1.bf16.msra.mxu0 %v2148
        %2181 = vmatprep.subr.bf16.mxu0 0
        %2182 = vmatpush1.bf16.msra.mxu0 %v2147
        %2183 = vmatprep.subr.bf16.mxu0 0
        %2184 = vmatpush1.bf16.msra.mxu0 %v2146
        %2185 = vmatprep.subr.bf16.mxu0 0
        %2186 = vmatpush1.bf16.msra.mxu0 %v2145
        %2187 = vmatprep.subr.bf16.mxu0 0
        %2188 = vmatpush1.bf16.msra.mxu0 %v2144
        %2189 = vmatprep.subr.bf16.mxu0 0
        %2190 = vmatpush1.bf16.msra.mxu0 %v2143
        %2191 = vmatprep.subr.bf16.mxu0 0
        %2192 = vmatpush2.bf16.msra.mxu0 %v2158
        %2193 = vmatprep.subr.bf16.mxu0 0
        %2194 = vmatpush2.bf16.msra.mxu0 %v2157
        %2195 = vmatprep.subr.bf16.mxu0 0
        %2196 = vmatpush2.bf16.msra.mxu0 %v2156
        %2197 = vmatprep.subr.bf16.mxu0 0
        %2198 = vmatpush2.bf16.msra.mxu0 %v2155
        %2199 = vmatprep.subr.bf16.mxu0 0
        %2200 = vmatpush2.bf16.msra.mxu0 %v2154
        %2201 = vmatprep.subr.bf16.mxu0 0
        %2202 = vmatpush2.bf16.msra.mxu0 %v2153
        %2203 = vmatprep.subr.bf16.mxu0 0
        %2204 = vmatpush2.bf16.msra.mxu0 %v2152
        %2205 = vmatprep.subr.bf16.mxu0 0
        %2206 = vmatpush2.bf16.msra.mxu0 %v2151
        %2207 = vmatprep.mubr.bf16.mxu0 %v1952
        %2208 = vmatmul.mubr.bf16.gmra.mxu0 %v1951
        %v2209 = vpop.f32.mrf.mxu0
        %v2210 = vadd.f32 0.0, %v2209
        %v2211 = vpop.f32.mrf.mxu0
        %v2212 = vpop.f32.mrf.mxu0
        %v2213 = vadd.f32 0.0, %v2212
        %v2214 = vpop.f32.mrf.mxu0
        %2215 = vmatprep.mubr.bf16.mxu0 %v1954
        %2216 = vmatmul.mubr.bf16.gmra.mxu0 %v1953
        %v2217 = vpop.f32.mrf.mxu0
        %v2218 = vadd.f32 0.0, %v2217
        %v2219 = vpop.f32.mrf.mxu0
        %v2220 = vpop.f32.mrf.mxu0
        %v2221 = vadd.f32 0.0, %v2220
        %v2222 = vpop.f32.mrf.mxu0
        %2223 = vmatprep.mubr.bf16.mxu0 %v1956
        %2224 = vmatmul.mubr.bf16.gmra.mxu0 %v1955
        %v2225 = vpop.f32.mrf.mxu0
        %v2226 = vadd.f32 0.0, %v2225
        %v2227 = vpop.f32.mrf.mxu0
        %v2228 = vpop.f32.mrf.mxu0
        %v2229 = vadd.f32 0.0, %v2228
        %v2230 = vpop.f32.mrf.mxu0
        %2231 = vmatprep.mubr.bf16.mxu0 %v1958
        %2232 = vmatmul.mubr.bf16.gmra.mxu0 %v1957
        %v2233 = vpop.f32.mrf.mxu0
        %v2234 = vadd.f32 0.0, %v2233
        %v2235 = vpop.f32.mrf.mxu0
        %v2236 = vpop.f32.mrf.mxu0
        %v2237 = vadd.f32 0.0, %v2236
        %v2238 = vpop.f32.mrf.mxu0
        %2239 = vmatprep.mubr.bf16.mxu0 %v1960
        %2240 = vmatmul.mubr.bf16.gmra.mxu0 %v1959
        %v2241 = vpop.f32.mrf.mxu0
        %v2242 = vadd.f32 0.0, %v2241
        %v2243 = vpop.f32.mrf.mxu0
        %v2244 = vpop.f32.mrf.mxu0
        %v2245 = vadd.f32 0.0, %v2244
        %v2246 = vpop.f32.mrf.mxu0
        %2247 = vmatprep.mubr.bf16.mxu0 %v1962
        %2248 = vmatmul.mubr.bf16.gmra.mxu0 %v1961
        %v2249 = vpop.f32.mrf.mxu0
        %v2250 = vadd.f32 0.0, %v2249
        %v2251 = vpop.f32.mrf.mxu0
        %v2252 = vpop.f32.mrf.mxu0
        %v2253 = vadd.f32 0.0, %v2252
        %v2254 = vpop.f32.mrf.mxu0
        %2255 = vmatprep.mubr.bf16.mxu0 %v1964
        %2256 = vmatmul.mubr.bf16.gmra.mxu0 %v1963
        %v2257 = vpop.f32.mrf.mxu0
        %v2258 = vadd.f32 0.0, %v2257
        %v2259 = vpop.f32.mrf.mxu0
        %v2260 = vpop.f32.mrf.mxu0
        %v2261 = vadd.f32 0.0, %v2260
        %v2262 = vpop.f32.mrf.mxu0
        %2263 = vmatprep.mubr.bf16.mxu0 %v1966
        %2264 = vmatmul.mubr.bf16.gmra.mxu0 %v1965
        %v2265 = vpop.f32.mrf.mxu0
        %v2266 = vadd.f32 0.0, %v2265
        %v2267 = vpop.f32.mrf.mxu0
        %v2268 = vpop.f32.mrf.mxu0
        %v2269 = vadd.f32 0.0, %v2268
        %v2270 = vpop.f32.mrf.mxu0
        %2271 = vmatprep.mubr.bf16.mxu0 %v1968
        %2272 = vmatmul.mubr.bf16.gmra.mxu0 %v1967
        %v2273 = vpop.f32.mrf.mxu0
        %v2274 = vadd.f32 0.0, %v2273
        %v2275 = vpop.f32.mrf.mxu0
        %v2276 = vpop.f32.mrf.mxu0
        %v2277 = vadd.f32 0.0, %v2276
        %v2278 = vpop.f32.mrf.mxu0
        %2279 = vmatprep.mubr.bf16.mxu0 %v1970
        %2280 = vmatmul.mubr.bf16.gmra.mxu0 %v1969
        %v2281 = vpop.f32.mrf.mxu0
        %v2282 = vadd.f32 0.0, %v2281
        %v2283 = vpop.f32.mrf.mxu0
        %v2284 = vpop.f32.mrf.mxu0
        %v2285 = vadd.f32 0.0, %v2284
        %v2286 = vpop.f32.mrf.mxu0
        %2287 = vmatprep.mubr.bf16.mxu0 %v1972
        %2288 = vmatmul.mubr.bf16.gmra.mxu0 %v1971
        %v2289 = vpop.f32.mrf.mxu0
        %v2290 = vadd.f32 0.0, %v2289
        %v2291 = vpop.f32.mrf.mxu0
        %v2292 = vpop.f32.mrf.mxu0
        %v2293 = vadd.f32 0.0, %v2292
        %v2294 = vpop.f32.mrf.mxu0
        %2295 = vmatprep.mubr.bf16.mxu0 %v1974
        %2296 = vmatmul.mubr.bf16.gmra.mxu0 %v1973
        %v2297 = vpop.f32.mrf.mxu0
        %v2298 = vadd.f32 0.0, %v2297
        %v2299 = vpop.f32.mrf.mxu0
        %v2300 = vpop.f32.mrf.mxu0
        %v2301 = vadd.f32 0.0, %v2300
        %v2302 = vpop.f32.mrf.mxu0
        %2303 = vmatprep.mubr.bf16.mxu0 %v1976
        %2304 = vmatmul.mubr.bf16.gmra.mxu0 %v1975
        %v2305 = vpop.f32.mrf.mxu0
        %v2306 = vadd.f32 0.0, %v2305
        %v2307 = vpop.f32.mrf.mxu0
        %v2308 = vpop.f32.mrf.mxu0
        %v2309 = vadd.f32 0.0, %v2308
        %v2310 = vpop.f32.mrf.mxu0
        %2311 = vmatprep.mubr.bf16.mxu0 %v1978
        %2312 = vmatmul.mubr.bf16.gmra.mxu0 %v1977
        %v2313 = vpop.f32.mrf.mxu0
        %v2314 = vadd.f32 0.0, %v2313
        %v2315 = vpop.f32.mrf.mxu0
        %v2316 = vpop.f32.mrf.mxu0
        %v2317 = vadd.f32 0.0, %v2316
        %v2318 = vpop.f32.mrf.mxu0
        %2319 = vmatprep.mubr.bf16.mxu0 %v1980
        %2320 = vmatmul.mubr.bf16.gmra.mxu0 %v1979
        %v2321 = vpop.f32.mrf.mxu0
        %v2322 = vadd.f32 0.0, %v2321
        %v2323 = vpop.f32.mrf.mxu0
        %v2324 = vpop.f32.mrf.mxu0
        %v2325 = vadd.f32 0.0, %v2324
        %v2326 = vpop.f32.mrf.mxu0
        %2327 = vmatprep.mubr.bf16.mxu0 %v1982
        %2328 = vmatmul.mubr.bf16.gmra.mxu0 %v1981
        %v2329 = vpop.f32.mrf.mxu0
        %v2330 = vadd.f32 0.0, %v2329
        %v2331 = vpop.f32.mrf.mxu0
        %v2332 = vpop.f32.mrf.mxu0
        %v2333 = vadd.f32 0.0, %v2332
        %v2334 = vpop.f32.mrf.mxu0
        %2335 = vmatprep.mubr.bf16.mxu0 %v1984
        %2336 = vmatmul.mubr.bf16.gmra.mxu0 %v1983
        %v2337 = vpop.f32.mrf.mxu0
        %v2338 = vadd.f32 0.0, %v2337
        %v2339 = vpop.f32.mrf.mxu0
        %v2340 = vpop.f32.mrf.mxu0
        %v2341 = vadd.f32 0.0, %v2340
        %v2342 = vpop.f32.mrf.mxu0
        %2343 = vmatprep.mubr.bf16.mxu0 %v1986
        %2344 = vmatmul.mubr.bf16.gmra.mxu0 %v1985
        %v2345 = vpop.f32.mrf.mxu0
        %v2346 = vadd.f32 0.0, %v2345
        %v2347 = vpop.f32.mrf.mxu0
        %v2348 = vpop.f32.mrf.mxu0
        %v2349 = vadd.f32 0.0, %v2348
        %v2350 = vpop.f32.mrf.mxu0
        %2351 = vmatprep.mubr.bf16.mxu0 %v1988
        %2352 = vmatmul.mubr.bf16.gmra.mxu0 %v1987
        %v2353 = vpop.f32.mrf.mxu0
        %v2354 = vadd.f32 0.0, %v2353
        %v2355 = vpop.f32.mrf.mxu0
        %v2356 = vpop.f32.mrf.mxu0
        %v2357 = vadd.f32 0.0, %v2356
        %v2358 = vpop.f32.mrf.mxu0
        %2359 = vmatprep.mubr.bf16.mxu0 %v1990
        %2360 = vmatmul.mubr.bf16.gmra.mxu0 %v1989
        %v2361 = vpop.f32.mrf.mxu0
        %v2362 = vadd.f32 0.0, %v2361
        %v2363 = vpop.f32.mrf.mxu0
        %v2364 = vpop.f32.mrf.mxu0
        %v2365 = vadd.f32 0.0, %v2364
        %v2366 = vpop.f32.mrf.mxu0
        %2367 = vmatprep.mubr.bf16.mxu0 %v1992
        %2368 = vmatmul.mubr.bf16.gmra.mxu0 %v1991
        %v2369 = vpop.f32.mrf.mxu0
        %v2370 = vadd.f32 0.0, %v2369
        %v2371 = vpop.f32.mrf.mxu0
        %v2372 = vpop.f32.mrf.mxu0
        %v2373 = vadd.f32 0.0, %v2372
        %v2374 = vpop.f32.mrf.mxu0
        %2375 = vmatprep.mubr.bf16.mxu0 %v1994
        %2376 = vmatmul.mubr.bf16.gmra.mxu0 %v1993
        %v2377 = vpop.f32.mrf.mxu0
        %v2378 = vadd.f32 0.0, %v2377
        %v2379 = vpop.f32.mrf.mxu0
        %v2380 = vpop.f32.mrf.mxu0
        %v2381 = vadd.f32 0.0, %v2380
        %v2382 = vpop.f32.mrf.mxu0
        %2383 = vmatprep.mubr.bf16.mxu0 %v1996
        %2384 = vmatmul.mubr.bf16.gmra.mxu0 %v1995
        %v2385 = vpop.f32.mrf.mxu0
        %v2386 = vadd.f32 0.0, %v2385
        %v2387 = vpop.f32.mrf.mxu0
        %v2388 = vpop.f32.mrf.mxu0
        %v2389 = vadd.f32 0.0, %v2388
        %v2390 = vpop.f32.mrf.mxu0
        %2391 = vmatprep.mubr.bf16.mxu0 %v1998
        %2392 = vmatmul.mubr.bf16.gmra.mxu0 %v1997
        %v2393 = vpop.f32.mrf.mxu0
        %v2394 = vadd.f32 0.0, %v2393
        %v2395 = vpop.f32.mrf.mxu0
        %v2396 = vpop.f32.mrf.mxu0
        %v2397 = vadd.f32 0.0, %v2396
        %v2398 = vpop.f32.mrf.mxu0
        %2399 = vmatprep.mubr.bf16.mxu0 %v2000
        %2400 = vmatmul.mubr.bf16.gmra.mxu0 %v1999
        %v2401 = vpop.f32.mrf.mxu0
        %v2402 = vadd.f32 0.0, %v2401
        %v2403 = vpop.f32.mrf.mxu0
        %v2404 = vpop.f32.mrf.mxu0
        %v2405 = vadd.f32 0.0, %v2404
        %v2406 = vpop.f32.mrf.mxu0
        %2407 = vmatprep.mubr.bf16.mxu0 %v2002
        %2408 = vmatmul.mubr.bf16.gmra.mxu0 %v2001
        %v2409 = vpop.f32.mrf.mxu0
        %v2410 = vadd.f32 0.0, %v2409
        %v2411 = vpop.f32.mrf.mxu0
        %v2412 = vpop.f32.mrf.mxu0
        %v2413 = vadd.f32 0.0, %v2412
        %v2414 = vpop.f32.mrf.mxu0
        %2415 = vmatprep.mubr.bf16.mxu0 %v2004
        %2416 = vmatmul.mubr.bf16.gmra.mxu0 %v2003
        %v2417 = vpop.f32.mrf.mxu0
        %v2418 = vadd.f32 0.0, %v2417
        %v2419 = vpop.f32.mrf.mxu0
        %v2420 = vpop.f32.mrf.mxu0
        %v2421 = vadd.f32 0.0, %v2420
        %v2422 = vpop.f32.mrf.mxu0
        %2423 = vmatprep.mubr.bf16.mxu0 %v2006
        %2424 = vmatmul.mubr.bf16.gmra.mxu0 %v2005
        %v2425 = vpop.f32.mrf.mxu0
        %v2426 = vadd.f32 0.0, %v2425
        %v2427 = vpop.f32.mrf.mxu0
        %v2428 = vpop.f32.mrf.mxu0
        %v2429 = vadd.f32 0.0, %v2428
        %v2430 = vpop.f32.mrf.mxu0
        %2431 = vmatprep.mubr.bf16.mxu0 %v2008
        %2432 = vmatmul.mubr.bf16.gmra.mxu0 %v2007
        %v2433 = vpop.f32.mrf.mxu0
        %v2434 = vadd.f32 0.0, %v2433
        %v2435 = vpop.f32.mrf.mxu0
        %v2436 = vpop.f32.mrf.mxu0
        %v2437 = vadd.f32 0.0, %v2436
        %v2438 = vpop.f32.mrf.mxu0
        %2439 = vmatprep.mubr.bf16.mxu0 %v2010
        %2440 = vmatmul.mubr.bf16.gmra.mxu0 %v2009
        %v2441 = vpop.f32.mrf.mxu0
        %v2442 = vadd.f32 0.0, %v2441
        %v2443 = vpop.f32.mrf.mxu0
        %v2444 = vpop.f32.mrf.mxu0
        %v2445 = vadd.f32 0.0, %v2444
        %v2446 = vpop.f32.mrf.mxu0
        %2447 = vmatprep.mubr.bf16.mxu0 %v2012
        %2448 = vmatmul.mubr.bf16.gmra.mxu0 %v2011
        %v2449 = vpop.f32.mrf.mxu0
        %v2450 = vadd.f32 0.0, %v2449
        %v2451 = vpop.f32.mrf.mxu0
        %v2452 = vpop.f32.mrf.mxu0
        %v2453 = vadd.f32 0.0, %v2452
        %v2454 = vpop.f32.mrf.mxu0
        %2455 = vmatprep.mubr.bf16.mxu0 %v2014
        %2456 = vmatmul.mubr.bf16.gmra.mxu0 %v2013
        %v2457 = vpop.f32.mrf.mxu0
        %v2458 = vadd.f32 0.0, %v2457
        %v2459 = vpop.f32.mrf.mxu0
        %v2460 = vpop.f32.mrf.mxu0
        %v2461 = vadd.f32 0.0, %v2460
        %v2462 = vpop.f32.mrf.mxu0
        %2463 = vdwg.mxu0
        %vm2464 = vcmask 130048
        %v2465 = vsel %vm2464, %v2210, -inf
        %v2466 = vsel %vm2464, %v2213, -inf
        %v2467 = vmax.f32 %v2465, %v2466
        %v2468 = vsel %vm2464, %v2218, -inf
        %v2469 = vmax.f32 %v2467, %v2468
        %v2470 = vsel %vm2464, %v2221, -inf
        %v2471 = vmax.f32 %v2469, %v2470
        %v2472 = vsel %vm2464, %v2226, -inf
        %v2473 = vmax.f32 %v2471, %v2472
        %v2474 = vsel %vm2464, %v2229, -inf
        %v2475 = vmax.f32 %v2473, %v2474
        %v2476 = vsel %vm2464, %v2234, -inf
        %v2477 = vmax.f32 %v2475, %v2476
        %v2478 = vsel %vm2464, %v2237, -inf
        %v2479 = vmax.f32 %v2477, %v2478
        %v2480 = vrot.slane %v2479, 4
        %v2481 = vmax.f32 %v2479, %v2480
        %v2482 = vrot.slane %v2481, 2
        %v2483 = vmax.f32 %v2481, %v2482
        %v2484 = vrot.slane %v2483, 1
        %v2485 = vmax.f32 %v2483, %v2484
        %v2486 = vsel %vm2464, %v2242, -inf
        %v2487 = vsel %vm2464, %v2245, -inf
        %v2488 = vmax.f32 %v2486, %v2487
        %v2489 = vsel %vm2464, %v2250, -inf
        %v2490 = vmax.f32 %v2488, %v2489
        %v2491 = vsel %vm2464, %v2253, -inf
        %v2492 = vmax.f32 %v2490, %v2491
        %v2493 = vsel %vm2464, %v2258, -inf
        %v2494 = vmax.f32 %v2492, %v2493
        %v2495 = vsel %vm2464, %v2261, -inf
        %v2496 = vmax.f32 %v2494, %v2495
        %v2497 = vsel %vm2464, %v2266, -inf
        %v2498 = vmax.f32 %v2496, %v2497
        %v2499 = vsel %vm2464, %v2269, -inf
        %v2500 = vmax.f32 %v2498, %v2499
        %v2501 = vrot.slane %v2500, 4
        %v2502 = vmax.f32 %v2500, %v2501
        %v2503 = vrot.slane %v2502, 2
        %v2504 = vmax.f32 %v2502, %v2503
        %v2505 = vrot.slane %v2504, 1
        %v2506 = vmax.f32 %v2504, %v2505
        %v2507 = vsel %vm2464, %v2274, -inf
        %v2508 = vsel %vm2464, %v2277, -inf
        %v2509 = vmax.f32 %v2507, %v2508
        %v2510 = vsel %vm2464, %v2282, -inf
        %v2511 = vmax.f32 %v2509, %v2510
        %v2512 = vsel %vm2464, %v2285, -inf
        %v2513 = vmax.f32 %v2511, %v2512
        %v2514 = vsel %vm2464, %v2290, -inf
        %v2515 = vmax.f32 %v2513, %v2514
        %v2516 = vsel %vm2464, %v2293, -inf
        %v2517 = vmax.f32 %v2515, %v2516
        %v2518 = vsel %vm2464, %v2298, -inf
        %v2519 = vmax.f32 %v2517, %v2518
        %v2520 = vsel %vm2464, %v2301, -inf
        %v2521 = vmax.f32 %v2519, %v2520
        %v2522 = vrot.slane %v2521, 4
        %v2523 = vmax.f32 %v2521, %v2522
        %v2524 = vrot.slane %v2523, 2
        %v2525 = vmax.f32 %v2523, %v2524
        %v2526 = vrot.slane %v2525, 1
        %v2527 = vmax.f32 %v2525, %v2526
        %v2528 = vsel %vm2464, %v2306, -inf
        %v2529 = vsel %vm2464, %v2309, -inf
        %v2530 = vmax.f32 %v2528, %v2529
        %v2531 = vsel %vm2464, %v2314, -inf
        %v2532 = vmax.f32 %v2530, %v2531
        %v2533 = vsel %vm2464, %v2317, -inf
        %v2534 = vmax.f32 %v2532, %v2533
        %v2535 = vsel %vm2464, %v2322, -inf
        %v2536 = vmax.f32 %v2534, %v2535
        %v2537 = vsel %vm2464, %v2325, -inf
        %v2538 = vmax.f32 %v2536, %v2537
        %v2539 = vsel %vm2464, %v2330, -inf
        %v2540 = vmax.f32 %v2538, %v2539
        %v2541 = vsel %vm2464, %v2333, -inf
        %v2542 = vmax.f32 %v2540, %v2541
        %v2543 = vrot.slane %v2542, 4
        %v2544 = vmax.f32 %v2542, %v2543
        %v2545 = vrot.slane %v2544, 2
        %v2546 = vmax.f32 %v2544, %v2545
        %v2547 = vrot.slane %v2546, 1
        %v2548 = vmax.f32 %v2546, %v2547
        %v2549 = vsel %vm2464, %v2338, -inf
        %v2550 = vsel %vm2464, %v2341, -inf
        %v2551 = vmax.f32 %v2549, %v2550
        %v2552 = vsel %vm2464, %v2346, -inf
        %v2553 = vmax.f32 %v2551, %v2552
        %v2554 = vsel %vm2464, %v2349, -inf
        %v2555 = vmax.f32 %v2553, %v2554
        %v2556 = vsel %vm2464, %v2354, -inf
        %v2557 = vmax.f32 %v2555, %v2556
        %v2558 = vsel %vm2464, %v2357, -inf
        %v2559 = vmax.f32 %v2557, %v2558
        %v2560 = vsel %vm2464, %v2362, -inf
        %v2561 = vmax.f32 %v2559, %v2560
        %v2562 = vsel %vm2464, %v2365, -inf
        %v2563 = vmax.f32 %v2561, %v2562
        %v2564 = vrot.slane %v2563, 4
        %v2565 = vmax.f32 %v2563, %v2564
        %v2566 = vrot.slane %v2565, 2
        %v2567 = vmax.f32 %v2565, %v2566
        %v2568 = vrot.slane %v2567, 1
        %v2569 = vmax.f32 %v2567, %v2568
        %v2570 = vsel %vm2464, %v2370, -inf
        %v2571 = vsel %vm2464, %v2373, -inf
        %v2572 = vmax.f32 %v2570, %v2571
        %v2573 = vsel %vm2464, %v2378, -inf
        %v2574 = vmax.f32 %v2572, %v2573
        %v2575 = vsel %vm2464, %v2381, -inf
        %v2576 = vmax.f32 %v2574, %v2575
        %v2577 = vsel %vm2464, %v2386, -inf
        %v2578 = vmax.f32 %v2576, %v2577
        %v2579 = vsel %vm2464, %v2389, -inf
        %v2580 = vmax.f32 %v2578, %v2579
        %v2581 = vsel %vm2464, %v2394, -inf
        %v2582 = vmax.f32 %v2580, %v2581
        %v2583 = vsel %vm2464, %v2397, -inf
        %v2584 = vmax.f32 %v2582, %v2583
        %v2585 = vrot.slane %v2584, 4
        %v2586 = vmax.f32 %v2584, %v2585
        %v2587 = vrot.slane %v2586, 2
        %v2588 = vmax.f32 %v2586, %v2587
        %v2589 = vrot.slane %v2588, 1
        %v2590 = vmax.f32 %v2588, %v2589
        %v2591 = vsel %vm2464, %v2402, -inf
        %v2592 = vsel %vm2464, %v2405, -inf
        %v2593 = vmax.f32 %v2591, %v2592
        %v2594 = vsel %vm2464, %v2410, -inf
        %v2595 = vmax.f32 %v2593, %v2594
        %v2596 = vsel %vm2464, %v2413, -inf
        %v2597 = vmax.f32 %v2595, %v2596
        %v2598 = vsel %vm2464, %v2418, -inf
        %v2599 = vmax.f32 %v2597, %v2598
        %v2600 = vsel %vm2464, %v2421, -inf
        %v2601 = vmax.f32 %v2599, %v2600
        %v2602 = vsel %vm2464, %v2426, -inf
        %v2603 = vmax.f32 %v2601, %v2602
        %v2604 = vsel %vm2464, %v2429, -inf
        %v2605 = vmax.f32 %v2603, %v2604
        %v2606 = vrot.slane %v2605, 4
        %v2607 = vmax.f32 %v2605, %v2606
        %v2608 = vrot.slane %v2607, 2
        %v2609 = vmax.f32 %v2607, %v2608
        %v2610 = vrot.slane %v2609, 1
        %v2611 = vmax.f32 %v2609, %v2610
        %v2612 = vsel %vm2464, %v2434, -inf
        %v2613 = vsel %vm2464, %v2437, -inf
        %v2614 = vmax.f32 %v2612, %v2613
        %v2615 = vsel %vm2464, %v2442, -inf
        %v2616 = vmax.f32 %v2614, %v2615
        %v2617 = vsel %vm2464, %v2445, -inf
        %v2618 = vmax.f32 %v2616, %v2617
        %v2619 = vsel %vm2464, %v2450, -inf
        %v2620 = vmax.f32 %v2618, %v2619
        %v2621 = vsel %vm2464, %v2453, -inf
        %v2622 = vmax.f32 %v2620, %v2621
        %v2623 = vsel %vm2464, %v2458, -inf
        %v2624 = vmax.f32 %v2622, %v2623
        %v2625 = vsel %vm2464, %v2461, -inf
        %v2626 = vmax.f32 %v2624, %v2625
        %v2627 = vrot.slane %v2626, 4
        %v2628 = vmax.f32 %v2626, %v2627
        %v2629 = vrot.slane %v2628, 2
        %v2630 = vmax.f32 %v2628, %v2629
        %v2631 = vrot.slane %v2630, 1
        %v2632 = vmax.f32 %v2630, %v2631
        %v2633 = vsub.f32 %v2210, %v2485
        %v2634 = vsub.f32 %v2213, %v2485
        %v2635 = vsub.f32 %v2218, %v2485
        %v2636 = vsub.f32 %v2221, %v2485
        %v2637 = vsub.f32 %v2226, %v2485
        %v2638 = vsub.f32 %v2229, %v2485
        %v2639 = vsub.f32 %v2234, %v2485
        %v2640 = vsub.f32 %v2237, %v2485
        %v2641 = vsub.f32 %v2242, %v2506
        %v2642 = vsub.f32 %v2245, %v2506
        %v2643 = vsub.f32 %v2250, %v2506
        %v2644 = vsub.f32 %v2253, %v2506
        %v2645 = vsub.f32 %v2258, %v2506
        %v2646 = vsub.f32 %v2261, %v2506
        %v2647 = vsub.f32 %v2266, %v2506
        %v2648 = vsub.f32 %v2269, %v2506
        %v2649 = vsub.f32 %v2274, %v2527
        %v2650 = vsub.f32 %v2277, %v2527
        %v2651 = vsub.f32 %v2282, %v2527
        %v2652 = vsub.f32 %v2285, %v2527
        %v2653 = vsub.f32 %v2290, %v2527
        %v2654 = vsub.f32 %v2293, %v2527
        %v2655 = vsub.f32 %v2298, %v2527
        %v2656 = vsub.f32 %v2301, %v2527
        %v2657 = vsub.f32 %v2306, %v2548
        %v2658 = vsub.f32 %v2309, %v2548
        %v2659 = vsub.f32 %v2314, %v2548
        %v2660 = vsub.f32 %v2317, %v2548
        %v2661 = vsub.f32 %v2322, %v2548
        %v2662 = vsub.f32 %v2325, %v2548
        %v2663 = vsub.f32 %v2330, %v2548
        %v2664 = vsub.f32 %v2333, %v2548
        %v2665 = vsub.f32 %v2338, %v2569
        %v2666 = vsub.f32 %v2341, %v2569
        %v2667 = vsub.f32 %v2346, %v2569
        %v2668 = vsub.f32 %v2349, %v2569
        %v2669 = vsub.f32 %v2354, %v2569
        %v2670 = vsub.f32 %v2357, %v2569
        %v2671 = vsub.f32 %v2362, %v2569
        %v2672 = vsub.f32 %v2365, %v2569
        %v2673 = vsub.f32 %v2370, %v2590
        %v2674 = vsub.f32 %v2373, %v2590
        %v2675 = vsub.f32 %v2378, %v2590
        %v2676 = vsub.f32 %v2381, %v2590
        %v2677 = vsub.f32 %v2386, %v2590
        %v2678 = vsub.f32 %v2389, %v2590
        %v2679 = vsub.f32 %v2394, %v2590
        %v2680 = vsub.f32 %v2397, %v2590
        %v2681 = vsub.f32 %v2402, %v2611
        %v2682 = vsub.f32 %v2405, %v2611
        %v2683 = vsub.f32 %v2410, %v2611
        %v2684 = vsub.f32 %v2413, %v2611
        %v2685 = vsub.f32 %v2418, %v2611
        %v2686 = vsub.f32 %v2421, %v2611
        %v2687 = vsub.f32 %v2426, %v2611
        %v2688 = vsub.f32 %v2429, %v2611
        %v2689 = vsub.f32 %v2434, %v2632
        %v2690 = vsub.f32 %v2437, %v2632
        %v2691 = vsub.f32 %v2442, %v2632
        %v2692 = vsub.f32 %v2445, %v2632
        %v2693 = vsub.f32 %v2450, %v2632
        %v2694 = vsub.f32 %v2453, %v2632
        %v2695 = vsub.f32 %v2458, %v2632
        %v2696 = vsub.f32 %v2461, %v2632
        %v2697 = vmul.f32 %v2633, 1.442695
        %v2698 = vpow.pop %v2697
        %v2699 = vmul.f32 %v2634, 1.442695
        %v2700 = vpow.pop %v2699
        %v2701 = vmul.f32 %v2635, 1.442695
        %v2702 = vpow.pop %v2701
        %v2703 = vmul.f32 %v2636, 1.442695
        %v2704 = vpow.pop %v2703
        %v2705 = vmul.f32 %v2637, 1.442695
        %v2706 = vpow.pop %v2705
        %v2707 = vmul.f32 %v2638, 1.442695
        %v2708 = vpow.pop %v2707
        %v2709 = vmul.f32 %v2639, 1.442695
        %v2710 = vpow.pop %v2709
        %v2711 = vmul.f32 %v2640, 1.442695
        %v2712 = vpow.pop %v2711
        %v2713 = vmul.f32 %v2641, 1.442695
        %v2714 = vpow.pop %v2713
        %v2715 = vmul.f32 %v2642, 1.442695
        %v2716 = vpow.pop %v2715
        %v2717 = vmul.f32 %v2643, 1.442695
        %v2718 = vpow.pop %v2717
        %v2719 = vmul.f32 %v2644, 1.442695
        %v2720 = vpow.pop %v2719
        %v2721 = vmul.f32 %v2645, 1.442695
        %v2722 = vpow.pop %v2721
        %v2723 = vmul.f32 %v2646, 1.442695
        %v2724 = vpow.pop %v2723
        %v2725 = vmul.f32 %v2647, 1.442695
        %v2726 = vpow.pop %v2725
        %v2727 = vmul.f32 %v2648, 1.442695
        %v2728 = vpow.pop %v2727
        %v2729 = vmul.f32 %v2649, 1.442695
        %v2730 = vpow.pop %v2729
        %v2731 = vmul.f32 %v2650, 1.442695
        %v2732 = vpow.pop %v2731
        %v2733 = vmul.f32 %v2651, 1.442695
        %v2734 = vpow.pop %v2733
        %v2735 = vmul.f32 %v2652, 1.442695
        %v2736 = vpow.pop %v2735
        %v2737 = vmul.f32 %v2653, 1.442695
        %v2738 = vpow.pop %v2737
        %v2739 = vmul.f32 %v2654, 1.442695
        %v2740 = vpow.pop %v2739
        %v2741 = vmul.f32 %v2655, 1.442695
        %v2742 = vpow.pop %v2741
        %v2743 = vmul.f32 %v2656, 1.442695
        %v2744 = vpow.pop %v2743
        %v2745 = vmul.f32 %v2657, 1.442695
        %v2746 = vpow.pop %v2745
        %v2747 = vmul.f32 %v2658, 1.442695
        %v2748 = vpow.pop %v2747
        %v2749 = vmul.f32 %v2659, 1.442695
        %v2750 = vpow.pop %v2749
        %v2751 = vmul.f32 %v2660, 1.442695
        %v2752 = vpow.pop %v2751
        %v2753 = vmul.f32 %v2661, 1.442695
        %v2754 = vpow.pop %v2753
        %v2755 = vmul.f32 %v2662, 1.442695
        %v2756 = vpow.pop %v2755
        %v2757 = vmul.f32 %v2663, 1.442695
        %v2758 = vpow.pop %v2757
        %v2759 = vmul.f32 %v2664, 1.442695
        %v2760 = vpow.pop %v2759
        %v2761 = vmul.f32 %v2665, 1.442695
        %v2762 = vpow.pop %v2761
        %v2763 = vmul.f32 %v2666, 1.442695
        %v2764 = vpow.pop %v2763
        %v2765 = vmul.f32 %v2667, 1.442695
        %v2766 = vpow.pop %v2765
        %v2767 = vmul.f32 %v2668, 1.442695
        %v2768 = vpow.pop %v2767
        %v2769 = vmul.f32 %v2669, 1.442695
        %v2770 = vpow.pop %v2769
        %v2771 = vmul.f32 %v2670, 1.442695
        %v2772 = vpow.pop %v2771
        %v2773 = vmul.f32 %v2671, 1.442695
        %v2774 = vpow.pop %v2773
        %v2775 = vmul.f32 %v2672, 1.442695
        %v2776 = vpow.pop %v2775
        %v2777 = vmul.f32 %v2673, 1.442695
        %v2778 = vpow.pop %v2777
        %v2779 = vmul.f32 %v2674, 1.442695
        %v2780 = vpow.pop %v2779
        %v2781 = vmul.f32 %v2675, 1.442695
        %v2782 = vpow.pop %v2781
        %v2783 = vmul.f32 %v2676, 1.442695
        %v2784 = vpow.pop %v2783
        %v2785 = vmul.f32 %v2677, 1.442695
        %v2786 = vpow.pop %v2785
        %v2787 = vmul.f32 %v2678, 1.442695
        %v2788 = vpow.pop %v2787
        %v2789 = vmul.f32 %v2679, 1.442695
        %v2790 = vpow.pop %v2789
        %v2791 = vmul.f32 %v2680, 1.442695
        %v2792 = vpow.pop %v2791
        %v2793 = vmul.f32 %v2681, 1.442695
        %v2794 = vpow.pop %v2793
        %v2795 = vmul.f32 %v2682, 1.442695
        %v2796 = vpow.pop %v2795
        %v2797 = vmul.f32 %v2683, 1.442695
        %v2798 = vpow.pop %v2797
        %v2799 = vmul.f32 %v2684, 1.442695
        %v2800 = vpow.pop %v2799
        %v2801 = vmul.f32 %v2685, 1.442695
        %v2802 = vpow.pop %v2801
        %v2803 = vmul.f32 %v2686, 1.442695
        %v2804 = vpow.pop %v2803
        %v2805 = vmul.f32 %v2687, 1.442695
        %v2806 = vpow.pop %v2805
        %v2807 = vmul.f32 %v2688, 1.442695
        %v2808 = vpow.pop %v2807
        %v2809 = vmul.f32 %v2689, 1.442695
        %v2810 = vpow.pop %v2809
        %v2811 = vmul.f32 %v2690, 1.442695
        %v2812 = vpow.pop %v2811
        %v2813 = vmul.f32 %v2691, 1.442695
        %v2814 = vpow.pop %v2813
        %v2815 = vmul.f32 %v2692, 1.442695
        %v2816 = vpow.pop %v2815
        %v2817 = vmul.f32 %v2693, 1.442695
        %v2818 = vpow.pop %v2817
        %v2819 = vmul.f32 %v2694, 1.442695
        %v2820 = vpow.pop %v2819
        %v2821 = vmul.f32 %v2695, 1.442695
        %v2822 = vpow.pop %v2821
        %v2823 = vmul.f32 %v2696, 1.442695
        %v2824 = vpow.pop %v2823
        %v2825 = vsel %vm2464, %v2698, 0.0
        %v2826 = vsel %vm2464, %v2700, 0.0
        %v2827 = vadd.f32 %v2825, %v2826
        %v2828 = vsel %vm2464, %v2702, 0.0
        %v2829 = vadd.f32 %v2827, %v2828
        %v2830 = vsel %vm2464, %v2704, 0.0
        %v2831 = vadd.f32 %v2829, %v2830
        %v2832 = vsel %vm2464, %v2706, 0.0
        %v2833 = vadd.f32 %v2831, %v2832
        %v2834 = vsel %vm2464, %v2708, 0.0
        %v2835 = vadd.f32 %v2833, %v2834
        %v2836 = vsel %vm2464, %v2710, 0.0
        %v2837 = vadd.f32 %v2835, %v2836
        %v2838 = vsel %vm2464, %v2712, 0.0
        %v2839 = vadd.f32 %v2837, %v2838
        %v2840 = vrot.slane %v2839, 4
        %v2841 = vadd.f32 %v2839, %v2840
        %v2842 = vrot.slane %v2841, 2
        %v2843 = vadd.f32 %v2841, %v2842
        %v2844 = vrot.slane %v2843, 1
        %v2845 = vadd.f32 %v2843, %v2844
        %v2846 = vsel %vm2464, %v2714, 0.0
        %v2847 = vsel %vm2464, %v2716, 0.0
        %v2848 = vadd.f32 %v2846, %v2847
        %v2849 = vsel %vm2464, %v2718, 0.0
        %v2850 = vadd.f32 %v2848, %v2849
        %v2851 = vsel %vm2464, %v2720, 0.0
        %v2852 = vadd.f32 %v2850, %v2851
        %v2853 = vsel %vm2464, %v2722, 0.0
        %v2854 = vadd.f32 %v2852, %v2853
        %v2855 = vsel %vm2464, %v2724, 0.0
        %v2856 = vadd.f32 %v2854, %v2855
        %v2857 = vsel %vm2464, %v2726, 0.0
        %v2858 = vadd.f32 %v2856, %v2857
        %v2859 = vsel %vm2464, %v2728, 0.0
        %v2860 = vadd.f32 %v2858, %v2859
        %v2861 = vrot.slane %v2860, 4
        %v2862 = vadd.f32 %v2860, %v2861
        %v2863 = vrot.slane %v2862, 2
        %v2864 = vadd.f32 %v2862, %v2863
        %v2865 = vrot.slane %v2864, 1
        %v2866 = vadd.f32 %v2864, %v2865
        %v2867 = vsel %vm2464, %v2730, 0.0
        %v2868 = vsel %vm2464, %v2732, 0.0
        %v2869 = vadd.f32 %v2867, %v2868
        %v2870 = vsel %vm2464, %v2734, 0.0
        %v2871 = vadd.f32 %v2869, %v2870
        %v2872 = vsel %vm2464, %v2736, 0.0
        %v2873 = vadd.f32 %v2871, %v2872
        %v2874 = vsel %vm2464, %v2738, 0.0
        %v2875 = vadd.f32 %v2873, %v2874
        %v2876 = vsel %vm2464, %v2740, 0.0
        %v2877 = vadd.f32 %v2875, %v2876
        %v2878 = vsel %vm2464, %v2742, 0.0
        %v2879 = vadd.f32 %v2877, %v2878
        %v2880 = vsel %vm2464, %v2744, 0.0
        %v2881 = vadd.f32 %v2879, %v2880
        %v2882 = vrot.slane %v2881, 4
        %v2883 = vadd.f32 %v2881, %v2882
        %v2884 = vrot.slane %v2883, 2
        %v2885 = vadd.f32 %v2883, %v2884
        %v2886 = vrot.slane %v2885, 1
        %v2887 = vadd.f32 %v2885, %v2886
        %v2888 = vsel %vm2464, %v2746, 0.0
        %v2889 = vsel %vm2464, %v2748, 0.0
        %v2890 = vadd.f32 %v2888, %v2889
        %v2891 = vsel %vm2464, %v2750, 0.0
        %v2892 = vadd.f32 %v2890, %v2891
        %v2893 = vsel %vm2464, %v2752, 0.0
        %v2894 = vadd.f32 %v2892, %v2893
        %v2895 = vsel %vm2464, %v2754, 0.0
        %v2896 = vadd.f32 %v2894, %v2895
        %v2897 = vsel %vm2464, %v2756, 0.0
        %v2898 = vadd.f32 %v2896, %v2897
        %v2899 = vsel %vm2464, %v2758, 0.0
        %v2900 = vadd.f32 %v2898, %v2899
        %v2901 = vsel %vm2464, %v2760, 0.0
        %v2902 = vadd.f32 %v2900, %v2901
        %v2903 = vrot.slane %v2902, 4
        %v2904 = vadd.f32 %v2902, %v2903
        %v2905 = vrot.slane %v2904, 2
        %v2906 = vadd.f32 %v2904, %v2905
        %v2907 = vrot.slane %v2906, 1
        %v2908 = vadd.f32 %v2906, %v2907
        %v2909 = vsel %vm2464, %v2762, 0.0
        %v2910 = vsel %vm2464, %v2764, 0.0
        %v2911 = vadd.f32 %v2909, %v2910
        %v2912 = vsel %vm2464, %v2766, 0.0
        %v2913 = vadd.f32 %v2911, %v2912
        %v2914 = vsel %vm2464, %v2768, 0.0
        %v2915 = vadd.f32 %v2913, %v2914
        %v2916 = vsel %vm2464, %v2770, 0.0
        %v2917 = vadd.f32 %v2915, %v2916
        %v2918 = vsel %vm2464, %v2772, 0.0
        %v2919 = vadd.f32 %v2917, %v2918
        %v2920 = vsel %vm2464, %v2774, 0.0
        %v2921 = vadd.f32 %v2919, %v2920
        %v2922 = vsel %vm2464, %v2776, 0.0
        %v2923 = vadd.f32 %v2921, %v2922
        %v2924 = vrot.slane %v2923, 4
        %v2925 = vadd.f32 %v2923, %v2924
        %v2926 = vrot.slane %v2925, 2
        %v2927 = vadd.f32 %v2925, %v2926
        %v2928 = vrot.slane %v2927, 1
        %v2929 = vadd.f32 %v2927, %v2928
        %v2930 = vsel %vm2464, %v2778, 0.0
        %v2931 = vsel %vm2464, %v2780, 0.0
        %v2932 = vadd.f32 %v2930, %v2931
        %v2933 = vsel %vm2464, %v2782, 0.0
        %v2934 = vadd.f32 %v2932, %v2933
        %v2935 = vsel %vm2464, %v2784, 0.0
        %v2936 = vadd.f32 %v2934, %v2935
        %v2937 = vsel %vm2464, %v2786, 0.0
        %v2938 = vadd.f32 %v2936, %v2937
        %v2939 = vsel %vm2464, %v2788, 0.0
        %v2940 = vadd.f32 %v2938, %v2939
        %v2941 = vsel %vm2464, %v2790, 0.0
        %v2942 = vadd.f32 %v2940, %v2941
        %v2943 = vsel %vm2464, %v2792, 0.0
        %v2944 = vadd.f32 %v2942, %v2943
        %v2945 = vrot.slane %v2944, 4
        %v2946 = vadd.f32 %v2944, %v2945
        %v2947 = vrot.slane %v2946, 2
        %v2948 = vadd.f32 %v2946, %v2947
        %v2949 = vrot.slane %v2948, 1
        %v2950 = vadd.f32 %v2948, %v2949
        %v2951 = vsel %vm2464, %v2794, 0.0
        %v2952 = vsel %vm2464, %v2796, 0.0
        %v2953 = vadd.f32 %v2951, %v2952
        %v2954 = vsel %vm2464, %v2798, 0.0
        %v2955 = vadd.f32 %v2953, %v2954
        %v2956 = vsel %vm2464, %v2800, 0.0
        %v2957 = vadd.f32 %v2955, %v2956
        %v2958 = vsel %vm2464, %v2802, 0.0
        %v2959 = vadd.f32 %v2957, %v2958
        %v2960 = vsel %vm2464, %v2804, 0.0
        %v2961 = vadd.f32 %v2959, %v2960
        %v2962 = vsel %vm2464, %v2806, 0.0
        %v2963 = vadd.f32 %v2961, %v2962
        %v2964 = vsel %vm2464, %v2808, 0.0
        %v2965 = vadd.f32 %v2963, %v2964
        %v2966 = vrot.slane %v2965, 4
        %v2967 = vadd.f32 %v2965, %v2966
        %v2968 = vrot.slane %v2967, 2
        %v2969 = vadd.f32 %v2967, %v2968
        %v2970 = vrot.slane %v2969, 1
        %v2971 = vadd.f32 %v2969, %v2970
        %v2972 = vsel %vm2464, %v2810, 0.0
        %v2973 = vsel %vm2464, %v2812, 0.0
        %v2974 = vadd.f32 %v2972, %v2973
        %v2975 = vsel %vm2464, %v2814, 0.0
        %v2976 = vadd.f32 %v2974, %v2975
        %v2977 = vsel %vm2464, %v2816, 0.0
        %v2978 = vadd.f32 %v2976, %v2977
        %v2979 = vsel %vm2464, %v2818, 0.0
        %v2980 = vadd.f32 %v2978, %v2979
        %v2981 = vsel %vm2464, %v2820, 0.0
        %v2982 = vadd.f32 %v2980, %v2981
        %v2983 = vsel %vm2464, %v2822, 0.0
        %v2984 = vadd.f32 %v2982, %v2983
        %v2985 = vsel %vm2464, %v2824, 0.0
        %v2986 = vadd.f32 %v2984, %v2985
        %v2987 = vrot.slane %v2986, 4
        %v2988 = vadd.f32 %v2986, %v2987
        %v2989 = vrot.slane %v2988, 2
        %v2990 = vadd.f32 %v2988, %v2989
        %v2991 = vrot.slane %v2990, 1
        %v2992 = vadd.f32 %v2990, %v2991
        %v2993 = vrcp.pop %v2845
        %v2994 = vrcp.pop %v2866
        %v2995 = vrcp.pop %v2887
        %v2996 = vrcp.pop %v2908
        %v2997 = vrcp.pop %v2929
        %v2998 = vrcp.pop %v2950
        %v2999 = vrcp.pop %v2971
        %v3000 = vrcp.pop %v2992
        %v3001 = vmul.f32 %v2698, %v2993
        %v3002 = vmul.f32 %v2700, %v2993
        %v3003 = vmul.f32 %v2702, %v2993
        %v3004 = vmul.f32 %v2704, %v2993
        %v3005 = vmul.f32 %v2706, %v2993
        %v3006 = vmul.f32 %v2708, %v2993
        %v3007 = vmul.f32 %v2710, %v2993
        %v3008 = vmul.f32 %v2712, %v2993
        %v3009 = vmul.f32 %v2714, %v2994
        %v3010 = vmul.f32 %v2716, %v2994
        %v3011 = vmul.f32 %v2718, %v2994
        %v3012 = vmul.f32 %v2720, %v2994
        %v3013 = vmul.f32 %v2722, %v2994
        %v3014 = vmul.f32 %v2724, %v2994
        %v3015 = vmul.f32 %v2726, %v2994
        %v3016 = vmul.f32 %v2728, %v2994
        %v3017 = vmul.f32 %v2730, %v2995
        %v3018 = vmul.f32 %v2732, %v2995
        %v3019 = vmul.f32 %v2734, %v2995
        %v3020 = vmul.f32 %v2736, %v2995
        %v3021 = vmul.f32 %v2738, %v2995
        %v3022 = vmul.f32 %v2740, %v2995
        %v3023 = vmul.f32 %v2742, %v2995
        %v3024 = vmul.f32 %v2744, %v2995
        %v3025 = vmul.f32 %v2746, %v2996
        %v3026 = vmul.f32 %v2748, %v2996
        %v3027 = vmul.f32 %v2750, %v2996
        %v3028 = vmul.f32 %v2752, %v2996
        %v3029 = vmul.f32 %v2754, %v2996
        %v3030 = vmul.f32 %v2756, %v2996
        %v3031 = vmul.f32 %v2758, %v2996
        %v3032 = vmul.f32 %v2760, %v2996
        %v3033 = vmul.f32 %v2762, %v2997
        %v3034 = vmul.f32 %v2764, %v2997
        %v3035 = vmul.f32 %v2766, %v2997
        %v3036 = vmul.f32 %v2768, %v2997
        %v3037 = vmul.f32 %v2770, %v2997
        %v3038 = vmul.f32 %v2772, %v2997
        %v3039 = vmul.f32 %v2774, %v2997
        %v3040 = vmul.f32 %v2776, %v2997
        %v3041 = vmul.f32 %v2778, %v2998
        %v3042 = vmul.f32 %v2780, %v2998
        %v3043 = vmul.f32 %v2782, %v2998
        %v3044 = vmul.f32 %v2784, %v2998
        %v3045 = vmul.f32 %v2786, %v2998
        %v3046 = vmul.f32 %v2788, %v2998
        %v3047 = vmul.f32 %v2790, %v2998
        %v3048 = vmul.f32 %v2792, %v2998
        %v3049 = vmul.f32 %v2794, %v2999
        %v3050 = vmul.f32 %v2796, %v2999
        %v3051 = vmul.f32 %v2798, %v2999
        %v3052 = vmul.f32 %v2800, %v2999
        %v3053 = vmul.f32 %v2802, %v2999
        %v3054 = vmul.f32 %v2804, %v2999
        %v3055 = vmul.f32 %v2806, %v2999
        %v3056 = vmul.f32 %v2808, %v2999
        %v3057 = vmul.f32 %v2810, %v3000
        %v3058 = vmul.f32 %v2812, %v3000
        %v3059 = vmul.f32 %v2814, %v3000
        %v3060 = vmul.f32 %v2816, %v3000
        %v3061 = vmul.f32 %v2818, %v3000
        %v3062 = vmul.f32 %v2820, %v3000
        %v3063 = vmul.f32 %v2822, %v3000
        %v3064 = vmul.f32 %v2824, %v3000
        %v3065 = vpack.c.bf16 %v3002, %v3001
        %v3066 = vpack.c.bf16 %v3004, %v3003
        %v3067 = vpack.c.bf16 %v3006, %v3005
        %v3068 = vpack.c.bf16 %v3008, %v3007
        %v3069 = vpack.c.bf16 %v3010, %v3009
        %v3070 = vpack.c.bf16 %v3012, %v3011
        %v3071 = vpack.c.bf16 %v3014, %v3013
        %v3072 = vpack.c.bf16 %v3016, %v3015
        %v3073 = vpack.c.bf16 %v3018, %v3017
        %v3074 = vpack.c.bf16 %v3020, %v3019
        %v3075 = vpack.c.bf16 %v3022, %v3021
        %v3076 = vpack.c.bf16 %v3024, %v3023
        %v3077 = vpack.c.bf16 %v3026, %v3025
        %v3078 = vpack.c.bf16 %v3028, %v3027
        %v3079 = vpack.c.bf16 %v3030, %v3029
        %v3080 = vpack.c.bf16 %v3032, %v3031
        %v3081 = vpack.c.bf16 %v3034, %v3033
        %v3082 = vpack.c.bf16 %v3036, %v3035
        %v3083 = vpack.c.bf16 %v3038, %v3037
        %v3084 = vpack.c.bf16 %v3040, %v3039
        %v3085 = vpack.c.bf16 %v3042, %v3041
        %v3086 = vpack.c.bf16 %v3044, %v3043
        %v3087 = vpack.c.bf16 %v3046, %v3045
        %v3088 = vpack.c.bf16 %v3048, %v3047
        %v3089 = vpack.c.bf16 %v3050, %v3049
        %v3090 = vpack.c.bf16 %v3052, %v3051
        %v3091 = vpack.c.bf16 %v3054, %v3053
        %v3092 = vpack.c.bf16 %v3056, %v3055
        %v3093 = vpack.c.bf16 %v3058, %v3057
        %v3094 = vpack.c.bf16 %v3060, %v3059
        %v3095 = vpack.c.bf16 %v3062, %v3061
        %v3096 = vpack.c.bf16 %v3064, %v3063
        %v3097 = vld [vmem:[%s5] sm:$0xff]
        %v3098 = vld [vmem:[%s5 + $0x8] sm:$0xff]
        %v3101 = vunpack.c.l.b16 %v3097
        %v3102 = vunpack.c.h.b16 %v3097
        %v3103 = vunpack.c.l.b16 %v3098
        %v3104 = vunpack.c.h.b16 %v3098
        %v3105 = vpack.c.b16 %v3103, %v3101
        %v3106 = vpack.c.b16 %v3104, %v3102
        %v3110 = vsel %vm2464, %v3065, 0
        %v3113 = vsel %vm2464, %v3066, 0
        %v3116 = vsel %vm2464, %v3067, 0
        %v3119 = vsel %vm2464, %v3068, 0
        %v3122 = vsel %vm2464, %v3069, 0
        %v3125 = vsel %vm2464, %v3070, 0
        %v3128 = vsel %vm2464, %v3071, 0
        %v3131 = vsel %vm2464, %v3072, 0
        %v3134 = vsel %vm2464, %v3073, 0
        %v3137 = vsel %vm2464, %v3074, 0
        %v3140 = vsel %vm2464, %v3075, 0
        %v3143 = vsel %vm2464, %v3076, 0
        %v3146 = vsel %vm2464, %v3077, 0
        %v3149 = vsel %vm2464, %v3078, 0
        %v3152 = vsel %vm2464, %v3079, 0
        %v3155 = vsel %vm2464, %v3080, 0
        %v3158 = vsel %vm2464, %v3081, 0
        %v3161 = vsel %vm2464, %v3082, 0
        %v3164 = vsel %vm2464, %v3083, 0
        %v3167 = vsel %vm2464, %v3084, 0
        %v3170 = vsel %vm2464, %v3085, 0
        %v3173 = vsel %vm2464, %v3086, 0
        %v3176 = vsel %vm2464, %v3087, 0
        %v3179 = vsel %vm2464, %v3088, 0
        %v3182 = vsel %vm2464, %v3089, 0
        %v3185 = vsel %vm2464, %v3090, 0
        %v3188 = vsel %vm2464, %v3091, 0
        %v3191 = vsel %vm2464, %v3092, 0
        %v3194 = vsel %vm2464, %v3093, 0
        %v3197 = vsel %vm2464, %v3094, 0
        %v3200 = vsel %vm2464, %v3095, 0
        %v3203 = vsel %vm2464, %v3096, 0
        %3205 = vmatprep.subr.bf16.mxu0 0
        %3206 = vmatpush1.bf16.msra.mxu0 0
        %3207 = vmatprep.subr.bf16.mxu0 0
        %3208 = vmatpush1.bf16.msra.mxu0 0
        %3209 = vmatprep.subr.bf16.mxu0 0
        %3210 = vmatpush1.bf16.msra.mxu0 0
        %3211 = vmatprep.subr.bf16.mxu0 0
        %3212 = vmatpush1.bf16.msra.mxu0 0
        %3213 = vmatprep.subr.bf16.mxu0 0
        %3214 = vmatpush1.bf16.msra.mxu0 0
        %3215 = vmatprep.subr.bf16.mxu0 0
        %3216 = vmatpush1.bf16.msra.mxu0 0
        %3217 = vmatprep.subr.bf16.mxu0 0
        %3218 = vmatpush1.bf16.msra.mxu0 0
        %3219 = vmatprep.subr.bf16.mxu0 %v3106
        %3220 = vmatpush1.bf16.msra.mxu0 %v3105
        %3221 = vmatprep.subr.bf16.mxu0 0
        %3222 = vmatpush2.bf16.msra.mxu0 0
        %3223 = vmatprep.subr.bf16.mxu0 0
        %3224 = vmatpush2.bf16.msra.mxu0 0
        %3225 = vmatprep.subr.bf16.mxu0 0
        %3226 = vmatpush2.bf16.msra.mxu0 0
        %3227 = vmatprep.subr.bf16.mxu0 0
        %3228 = vmatpush2.bf16.msra.mxu0 0
        %3229 = vmatprep.subr.bf16.mxu0 0
        %3230 = vmatpush2.bf16.msra.mxu0 0
        %3231 = vmatprep.subr.bf16.mxu0 0
        %3232 = vmatpush2.bf16.msra.mxu0 0
        %3233 = vmatprep.subr.bf16.mxu0 0
        %3234 = vmatpush2.bf16.msra.mxu0 0
        %3235 = vmatprep.subr.bf16.mxu0 0
        %3236 = vmatpush2.bf16.msra.mxu0 0
        %3237 = vmatprep.mubr.bf16.mxu0 0
        %3238 = vmatmul.mubr.bf16.gmra.mxu0 %v3110
        %v3239 = vpop.f32.mrf.mxu0
        %v3240 = vadd.f32 0.0, %v3239
        %v3241 = vpop.f32.mrf.mxu0
        %v3242 = vadd.f32 0.0, %v3241
        %v3243 = vpop.f32.mrf.mxu0
        %v3244 = vadd.f32 0.0, %v3243
        %v3245 = vpop.f32.mrf.mxu0
        %v3246 = vadd.f32 0.0, %v3245
        %3247 = vmatprep.mubr.bf16.mxu0 0
        %3248 = vmatmul.mubr.bf16.gmra.mxu0 %v3113
        %v3249 = vpop.f32.mrf.mxu0
        %v3250 = vadd.f32 0.0, %v3249
        %v3251 = vpop.f32.mrf.mxu0
        %v3252 = vadd.f32 0.0, %v3251
        %v3253 = vpop.f32.mrf.mxu0
        %v3254 = vadd.f32 0.0, %v3253
        %v3255 = vpop.f32.mrf.mxu0
        %v3256 = vadd.f32 0.0, %v3255
        %3257 = vmatprep.mubr.bf16.mxu0 0
        %3258 = vmatmul.mubr.bf16.gmra.mxu0 %v3116
        %v3259 = vpop.f32.mrf.mxu0
        %v3260 = vadd.f32 0.0, %v3259
        %v3261 = vpop.f32.mrf.mxu0
        %v3262 = vadd.f32 0.0, %v3261
        %v3263 = vpop.f32.mrf.mxu0
        %v3264 = vadd.f32 0.0, %v3263
        %v3265 = vpop.f32.mrf.mxu0
        %v3266 = vadd.f32 0.0, %v3265
        %3267 = vmatprep.mubr.bf16.mxu0 0
        %3268 = vmatmul.mubr.bf16.gmra.mxu0 %v3119
        %v3269 = vpop.f32.mrf.mxu0
        %v3270 = vadd.f32 0.0, %v3269
        %v3271 = vpop.f32.mrf.mxu0
        %v3272 = vadd.f32 0.0, %v3271
        %v3273 = vpop.f32.mrf.mxu0
        %v3274 = vadd.f32 0.0, %v3273
        %v3275 = vpop.f32.mrf.mxu0
        %v3276 = vadd.f32 0.0, %v3275
        %3277 = vmatprep.mubr.bf16.mxu0 0
        %3278 = vmatmul.mubr.bf16.gmra.mxu0 %v3122
        %v3279 = vpop.f32.mrf.mxu0
        %v3280 = vadd.f32 0.0, %v3279
        %v3281 = vpop.f32.mrf.mxu0
        %v3282 = vadd.f32 0.0, %v3281
        %v3283 = vpop.f32.mrf.mxu0
        %v3284 = vadd.f32 0.0, %v3283
        %v3285 = vpop.f32.mrf.mxu0
        %v3286 = vadd.f32 0.0, %v3285
        %3287 = vmatprep.mubr.bf16.mxu0 0
        %3288 = vmatmul.mubr.bf16.gmra.mxu0 %v3125
        %v3289 = vpop.f32.mrf.mxu0
        %v3290 = vadd.f32 0.0, %v3289
        %v3291 = vpop.f32.mrf.mxu0
        %v3292 = vadd.f32 0.0, %v3291
        %v3293 = vpop.f32.mrf.mxu0
        %v3294 = vadd.f32 0.0, %v3293
        %v3295 = vpop.f32.mrf.mxu0
        %v3296 = vadd.f32 0.0, %v3295
        %3297 = vmatprep.mubr.bf16.mxu0 0
        %3298 = vmatmul.mubr.bf16.gmra.mxu0 %v3128
        %v3299 = vpop.f32.mrf.mxu0
        %v3300 = vadd.f32 0.0, %v3299
        %v3301 = vpop.f32.mrf.mxu0
        %v3302 = vadd.f32 0.0, %v3301
        %v3303 = vpop.f32.mrf.mxu0
        %v3304 = vadd.f32 0.0, %v3303
        %v3305 = vpop.f32.mrf.mxu0
        %v3306 = vadd.f32 0.0, %v3305
        %3307 = vmatprep.mubr.bf16.mxu0 0
        %3308 = vmatmul.mubr.bf16.gmra.mxu0 %v3131
        %v3309 = vpop.f32.mrf.mxu0
        %v3310 = vadd.f32 0.0, %v3309
        %v3311 = vpop.f32.mrf.mxu0
        %v3312 = vadd.f32 0.0, %v3311
        %v3313 = vpop.f32.mrf.mxu0
        %v3314 = vadd.f32 0.0, %v3313
        %v3315 = vpop.f32.mrf.mxu0
        %v3316 = vadd.f32 0.0, %v3315
        %3317 = vmatprep.mubr.bf16.mxu0 0
        %3318 = vmatmul.mubr.bf16.gmra.mxu0 %v3134
        %v3319 = vpop.f32.mrf.mxu0
        %v3320 = vadd.f32 0.0, %v3319
        %v3321 = vpop.f32.mrf.mxu0
        %v3322 = vadd.f32 0.0, %v3321
        %v3323 = vpop.f32.mrf.mxu0
        %v3324 = vadd.f32 0.0, %v3323
        %v3325 = vpop.f32.mrf.mxu0
        %v3326 = vadd.f32 0.0, %v3325
        %3327 = vmatprep.mubr.bf16.mxu0 0
        %3328 = vmatmul.mubr.bf16.gmra.mxu0 %v3137
        %v3329 = vpop.f32.mrf.mxu0
        %v3330 = vadd.f32 0.0, %v3329
        %v3331 = vpop.f32.mrf.mxu0
        %v3332 = vadd.f32 0.0, %v3331
        %v3333 = vpop.f32.mrf.mxu0
        %v3334 = vadd.f32 0.0, %v3333
        %v3335 = vpop.f32.mrf.mxu0
        %v3336 = vadd.f32 0.0, %v3335
        %3337 = vmatprep.mubr.bf16.mxu0 0
        %3338 = vmatmul.mubr.bf16.gmra.mxu0 %v3140
        %v3339 = vpop.f32.mrf.mxu0
        %v3340 = vadd.f32 0.0, %v3339
        %v3341 = vpop.f32.mrf.mxu0
        %v3342 = vadd.f32 0.0, %v3341
        %v3343 = vpop.f32.mrf.mxu0
        %v3344 = vadd.f32 0.0, %v3343
        %v3345 = vpop.f32.mrf.mxu0
        %v3346 = vadd.f32 0.0, %v3345
        %3347 = vmatprep.mubr.bf16.mxu0 0
        %3348 = vmatmul.mubr.bf16.gmra.mxu0 %v3143
        %v3349 = vpop.f32.mrf.mxu0
        %v3350 = vadd.f32 0.0, %v3349
        %v3351 = vpop.f32.mrf.mxu0
        %v3352 = vadd.f32 0.0, %v3351
        %v3353 = vpop.f32.mrf.mxu0
        %v3354 = vadd.f32 0.0, %v3353
        %v3355 = vpop.f32.mrf.mxu0
        %v3356 = vadd.f32 0.0, %v3355
        %3357 = vmatprep.mubr.bf16.mxu0 0
        %3358 = vmatmul.mubr.bf16.gmra.mxu0 %v3146
        %v3359 = vpop.f32.mrf.mxu0
        %v3360 = vadd.f32 0.0, %v3359
        %v3361 = vpop.f32.mrf.mxu0
        %v3362 = vadd.f32 0.0, %v3361
        %v3363 = vpop.f32.mrf.mxu0
        %v3364 = vadd.f32 0.0, %v3363
        %v3365 = vpop.f32.mrf.mxu0
        %v3366 = vadd.f32 0.0, %v3365
        %3367 = vmatprep.mubr.bf16.mxu0 0
        %3368 = vmatmul.mubr.bf16.gmra.mxu0 %v3149
        %v3369 = vpop.f32.mrf.mxu0
        %v3370 = vadd.f32 0.0, %v3369
        %v3371 = vpop.f32.mrf.mxu0
        %v3372 = vadd.f32 0.0, %v3371
        %v3373 = vpop.f32.mrf.mxu0
        %v3374 = vadd.f32 0.0, %v3373
        %v3375 = vpop.f32.mrf.mxu0
        %v3376 = vadd.f32 0.0, %v3375
        %3377 = vmatprep.mubr.bf16.mxu0 0
        %3378 = vmatmul.mubr.bf16.gmra.mxu0 %v3152
        %v3379 = vpop.f32.mrf.mxu0
        %v3380 = vadd.f32 0.0, %v3379
        %v3381 = vpop.f32.mrf.mxu0
        %v3382 = vadd.f32 0.0, %v3381
        %v3383 = vpop.f32.mrf.mxu0
        %v3384 = vadd.f32 0.0, %v3383
        %v3385 = vpop.f32.mrf.mxu0
        %v3386 = vadd.f32 0.0, %v3385
        %3387 = vmatprep.mubr.bf16.mxu0 0
        %3388 = vmatmul.mubr.bf16.gmra.mxu0 %v3155
        %v3389 = vpop.f32.mrf.mxu0
        %v3390 = vadd.f32 0.0, %v3389
        %v3391 = vpop.f32.mrf.mxu0
        %v3392 = vadd.f32 0.0, %v3391
        %v3393 = vpop.f32.mrf.mxu0
        %v3394 = vadd.f32 0.0, %v3393
        %v3395 = vpop.f32.mrf.mxu0
        %v3396 = vadd.f32 0.0, %v3395
        %3397 = vmatprep.mubr.bf16.mxu0 0
        %3398 = vmatmul.mubr.bf16.gmra.mxu0 %v3158
        %v3399 = vpop.f32.mrf.mxu0
        %v3400 = vadd.f32 0.0, %v3399
        %v3401 = vpop.f32.mrf.mxu0
        %v3402 = vadd.f32 0.0, %v3401
        %v3403 = vpop.f32.mrf.mxu0
        %v3404 = vadd.f32 0.0, %v3403
        %v3405 = vpop.f32.mrf.mxu0
        %v3406 = vadd.f32 0.0, %v3405
        %3407 = vmatprep.mubr.bf16.mxu0 0
        %3408 = vmatmul.mubr.bf16.gmra.mxu0 %v3161
        %v3409 = vpop.f32.mrf.mxu0
        %v3410 = vadd.f32 0.0, %v3409
        %v3411 = vpop.f32.mrf.mxu0
        %v3412 = vadd.f32 0.0, %v3411
        %v3413 = vpop.f32.mrf.mxu0
        %v3414 = vadd.f32 0.0, %v3413
        %v3415 = vpop.f32.mrf.mxu0
        %v3416 = vadd.f32 0.0, %v3415
        %3417 = vmatprep.mubr.bf16.mxu0 0
        %3418 = vmatmul.mubr.bf16.gmra.mxu0 %v3164
        %v3419 = vpop.f32.mrf.mxu0
        %v3420 = vadd.f32 0.0, %v3419
        %v3421 = vpop.f32.mrf.mxu0
        %v3422 = vadd.f32 0.0, %v3421
        %v3423 = vpop.f32.mrf.mxu0
        %v3424 = vadd.f32 0.0, %v3423
        %v3425 = vpop.f32.mrf.mxu0
        %v3426 = vadd.f32 0.0, %v3425
        %3427 = vmatprep.mubr.bf16.mxu0 0
        %3428 = vmatmul.mubr.bf16.gmra.mxu0 %v3167
        %v3429 = vpop.f32.mrf.mxu0
        %v3430 = vadd.f32 0.0, %v3429
        %v3431 = vpop.f32.mrf.mxu0
        %v3432 = vadd.f32 0.0, %v3431
        %v3433 = vpop.f32.mrf.mxu0
        %v3434 = vadd.f32 0.0, %v3433
        %v3435 = vpop.f32.mrf.mxu0
        %v3436 = vadd.f32 0.0, %v3435
        %3437 = vmatprep.mubr.bf16.mxu0 0
        %3438 = vmatmul.mubr.bf16.gmra.mxu0 %v3170
        %v3439 = vpop.f32.mrf.mxu0
        %v3440 = vadd.f32 0.0, %v3439
        %v3441 = vpop.f32.mrf.mxu0
        %v3442 = vadd.f32 0.0, %v3441
        %v3443 = vpop.f32.mrf.mxu0
        %v3444 = vadd.f32 0.0, %v3443
        %v3445 = vpop.f32.mrf.mxu0
        %v3446 = vadd.f32 0.0, %v3445
        %3447 = vmatprep.mubr.bf16.mxu0 0
        %3448 = vmatmul.mubr.bf16.gmra.mxu0 %v3173
        %v3449 = vpop.f32.mrf.mxu0
        %v3450 = vadd.f32 0.0, %v3449
        %v3451 = vpop.f32.mrf.mxu0
        %v3452 = vadd.f32 0.0, %v3451
        %v3453 = vpop.f32.mrf.mxu0
        %v3454 = vadd.f32 0.0, %v3453
        %v3455 = vpop.f32.mrf.mxu0
        %v3456 = vadd.f32 0.0, %v3455
        %3457 = vmatprep.mubr.bf16.mxu0 0
        %3458 = vmatmul.mubr.bf16.gmra.mxu0 %v3176
        %v3459 = vpop.f32.mrf.mxu0
        %v3460 = vadd.f32 0.0, %v3459
        %v3461 = vpop.f32.mrf.mxu0
        %v3462 = vadd.f32 0.0, %v3461
        %v3463 = vpop.f32.mrf.mxu0
        %v3464 = vadd.f32 0.0, %v3463
        %v3465 = vpop.f32.mrf.mxu0
        %v3466 = vadd.f32 0.0, %v3465
        %3467 = vmatprep.mubr.bf16.mxu0 0
        %3468 = vmatmul.mubr.bf16.gmra.mxu0 %v3179
        %v3469 = vpop.f32.mrf.mxu0
        %v3470 = vadd.f32 0.0, %v3469
        %v3471 = vpop.f32.mrf.mxu0
        %v3472 = vadd.f32 0.0, %v3471
        %v3473 = vpop.f32.mrf.mxu0
        %v3474 = vadd.f32 0.0, %v3473
        %v3475 = vpop.f32.mrf.mxu0
        %v3476 = vadd.f32 0.0, %v3475
        %3477 = vmatprep.mubr.bf16.mxu0 0
        %3478 = vmatmul.mubr.bf16.gmra.mxu0 %v3182
        %v3479 = vpop.f32.mrf.mxu0
        %v3480 = vadd.f32 0.0, %v3479
        %v3481 = vpop.f32.mrf.mxu0
        %v3482 = vadd.f32 0.0, %v3481
        %v3483 = vpop.f32.mrf.mxu0
        %v3484 = vadd.f32 0.0, %v3483
        %v3485 = vpop.f32.mrf.mxu0
        %v3486 = vadd.f32 0.0, %v3485
        %3487 = vmatprep.mubr.bf16.mxu0 0
        %3488 = vmatmul.mubr.bf16.gmra.mxu0 %v3185
        %v3489 = vpop.f32.mrf.mxu0
        %v3490 = vadd.f32 0.0, %v3489
        %v3491 = vpop.f32.mrf.mxu0
        %v3492 = vadd.f32 0.0, %v3491
        %v3493 = vpop.f32.mrf.mxu0
        %v3494 = vadd.f32 0.0, %v3493
        %v3495 = vpop.f32.mrf.mxu0
        %v3496 = vadd.f32 0.0, %v3495
        %3497 = vmatprep.mubr.bf16.mxu0 0
        %3498 = vmatmul.mubr.bf16.gmra.mxu0 %v3188
        %v3499 = vpop.f32.mrf.mxu0
        %v3500 = vadd.f32 0.0, %v3499
        %v3501 = vpop.f32.mrf.mxu0
        %v3502 = vadd.f32 0.0, %v3501
        %v3503 = vpop.f32.mrf.mxu0
        %v3504 = vadd.f32 0.0, %v3503
        %v3505 = vpop.f32.mrf.mxu0
        %v3506 = vadd.f32 0.0, %v3505
        %3507 = vmatprep.mubr.bf16.mxu0 0
        %3508 = vmatmul.mubr.bf16.gmra.mxu0 %v3191
        %v3509 = vpop.f32.mrf.mxu0
        %v3510 = vadd.f32 0.0, %v3509
        %v3511 = vpop.f32.mrf.mxu0
        %v3512 = vadd.f32 0.0, %v3511
        %v3513 = vpop.f32.mrf.mxu0
        %v3514 = vadd.f32 0.0, %v3513
        %v3515 = vpop.f32.mrf.mxu0
        %v3516 = vadd.f32 0.0, %v3515
        %3517 = vmatprep.mubr.bf16.mxu0 0
        %3518 = vmatmul.mubr.bf16.gmra.mxu0 %v3194
        %v3519 = vpop.f32.mrf.mxu0
        %v3520 = vadd.f32 0.0, %v3519
        %v3521 = vpop.f32.mrf.mxu0
        %v3522 = vadd.f32 0.0, %v3521
        %v3523 = vpop.f32.mrf.mxu0
        %v3524 = vadd.f32 0.0, %v3523
        %v3525 = vpop.f32.mrf.mxu0
        %v3526 = vadd.f32 0.0, %v3525
        %3527 = vmatprep.mubr.bf16.mxu0 0
        %3528 = vmatmul.mubr.bf16.gmra.mxu0 %v3197
        %v3529 = vpop.f32.mrf.mxu0
        %v3530 = vadd.f32 0.0, %v3529
        %v3531 = vpop.f32.mrf.mxu0
        %v3532 = vadd.f32 0.0, %v3531
        %v3533 = vpop.f32.mrf.mxu0
        %v3534 = vadd.f32 0.0, %v3533
        %v3535 = vpop.f32.mrf.mxu0
        %v3536 = vadd.f32 0.0, %v3535
        %3537 = vmatprep.mubr.bf16.mxu0 0
        %3538 = vmatmul.mubr.bf16.gmra.mxu0 %v3200
        %v3539 = vpop.f32.mrf.mxu0
        %v3540 = vadd.f32 0.0, %v3539
        %v3541 = vpop.f32.mrf.mxu0
        %v3542 = vadd.f32 0.0, %v3541
        %v3543 = vpop.f32.mrf.mxu0
        %v3544 = vadd.f32 0.0, %v3543
        %v3545 = vpop.f32.mrf.mxu0
        %v3546 = vadd.f32 0.0, %v3545
        %3547 = vmatprep.mubr.bf16.mxu0 0
        %3548 = vmatmul.mubr.bf16.gmra.mxu0 %v3203
        %v3549 = vpop.f32.mrf.mxu0
        %v3550 = vadd.f32 0.0, %v3549
        %v3551 = vpop.f32.mrf.mxu0
        %v3552 = vadd.f32 0.0, %v3551
        %v3553 = vpop.f32.mrf.mxu0
        %v3554 = vadd.f32 0.0, %v3553
        %v3555 = vpop.f32.mrf.mxu0
        %v3556 = vadd.f32 0.0, %v3555
        %3557 = vdwg.mxu0
        %v3558 = vunpack.c.l.bf16 %v916
        %v3559 = vunpack.c.h.bf16 %v916
        %v3560 = vunpack.c.l.bf16 %v917
        %v3561 = vunpack.c.h.bf16 %v917
        %v3562 = vunpack.c.l.bf16 %v918
        %v3563 = vunpack.c.h.bf16 %v918
        %v3564 = vunpack.c.l.bf16 %v919
        %v3565 = vunpack.c.h.bf16 %v919
        %v3566 = vunpack.c.l.bf16 %v920
        %v3567 = vunpack.c.h.bf16 %v920
        %v3568 = vunpack.c.l.bf16 %v921
        %v3569 = vunpack.c.h.bf16 %v921
        %v3570 = vunpack.c.l.bf16 %v922
        %v3571 = vunpack.c.h.bf16 %v922
        %v3572 = vunpack.c.l.bf16 %v923
        %v3573 = vunpack.c.h.bf16 %v923
        %v3574 = vunpack.c.l.bf16 %v924
        %v3575 = vunpack.c.h.bf16 %v924
        %v3576 = vunpack.c.l.bf16 %v925
        %v3577 = vunpack.c.h.bf16 %v925
        %v3578 = vunpack.c.l.bf16 %v926
        %v3579 = vunpack.c.h.bf16 %v926
        %v3580 = vunpack.c.l.bf16 %v927
        %v3581 = vunpack.c.h.bf16 %v927
        %v3582 = vunpack.c.l.bf16 %v928
        %v3583 = vunpack.c.h.bf16 %v928
        %v3584 = vunpack.c.l.bf16 %v929
        %v3585 = vunpack.c.h.bf16 %v929
        %v3586 = vunpack.c.l.bf16 %v930
        %v3587 = vunpack.c.h.bf16 %v930
        %v3588 = vunpack.c.l.bf16 %v931
        %v3589 = vunpack.c.h.bf16 %v931
        %v3590 = vunpack.c.l.bf16 %v932
        %v3591 = vunpack.c.h.bf16 %v932
        %v3592 = vunpack.c.l.bf16 %v933
        %v3593 = vunpack.c.h.bf16 %v933
        %v3594 = vunpack.c.l.bf16 %v934
        %v3595 = vunpack.c.h.bf16 %v934
        %v3596 = vunpack.c.l.bf16 %v935
        %v3597 = vunpack.c.h.bf16 %v935
        %v3598 = vunpack.c.l.bf16 %v936
        %v3599 = vunpack.c.h.bf16 %v936
        %v3600 = vunpack.c.l.bf16 %v937
        %v3601 = vunpack.c.h.bf16 %v937
        %v3602 = vunpack.c.l.bf16 %v938
        %v3603 = vunpack.c.h.bf16 %v938
        %v3604 = vunpack.c.l.bf16 %v939
        %v3605 = vunpack.c.h.bf16 %v939
        %v3606 = vunpack.c.l.bf16 %v940
        %v3607 = vunpack.c.h.bf16 %v940
        %v3608 = vunpack.c.l.bf16 %v941
        %v3609 = vunpack.c.h.bf16 %v941
        %v3610 = vunpack.c.l.bf16 %v942
        %v3611 = vunpack.c.h.bf16 %v942
        %v3612 = vunpack.c.l.bf16 %v943
        %v3613 = vunpack.c.h.bf16 %v943
        %v3614 = vunpack.c.l.bf16 %v944
        %v3615 = vunpack.c.h.bf16 %v944
        %v3616 = vunpack.c.l.bf16 %v945
        %v3617 = vunpack.c.h.bf16 %v945
        %v3618 = vunpack.c.l.bf16 %v946
        %v3619 = vunpack.c.h.bf16 %v946
        %v3620 = vunpack.c.l.bf16 %v947
        %v3621 = vunpack.c.h.bf16 %v947
        %v3622 = vunpack.c.l.bf16 %v948
        %v3623 = vunpack.c.h.bf16 %v948
        %v3624 = vunpack.c.l.bf16 %v949
        %v3625 = vunpack.c.h.bf16 %v949
        %v3626 = vunpack.c.l.bf16 %v950
        %v3627 = vunpack.c.h.bf16 %v950
        %v3628 = vunpack.c.l.bf16 %v951
        %v3629 = vunpack.c.h.bf16 %v951
        %v3630 = vunpack.c.l.bf16 %v952
        %v3631 = vunpack.c.h.bf16 %v952
        %v3632 = vunpack.c.l.bf16 %v953
        %v3633 = vunpack.c.h.bf16 %v953
        %v3634 = vunpack.c.l.bf16 %v954
        %v3635 = vunpack.c.h.bf16 %v954
        %v3636 = vunpack.c.l.bf16 %v955
        %v3637 = vunpack.c.h.bf16 %v955
        %v3638 = vunpack.c.l.bf16 %v956
        %v3639 = vunpack.c.h.bf16 %v956
        %v3640 = vunpack.c.l.bf16 %v957
        %v3641 = vunpack.c.h.bf16 %v957
        %v3642 = vunpack.c.l.bf16 %v958
        %v3643 = vunpack.c.h.bf16 %v958
        %v3644 = vunpack.c.l.bf16 %v959
        %v3645 = vunpack.c.h.bf16 %v959
        %v3646 = vunpack.c.l.bf16 %v960
        %v3647 = vunpack.c.h.bf16 %v960
        %v3648 = vunpack.c.l.bf16 %v961
        %v3649 = vunpack.c.h.bf16 %v961
        %v3650 = vunpack.c.l.bf16 %v962
        %v3651 = vunpack.c.h.bf16 %v962
        %v3652 = vunpack.c.l.bf16 %v963
        %v3653 = vunpack.c.h.bf16 %v963
        %v3654 = vunpack.c.l.bf16 %v964
        %v3655 = vunpack.c.h.bf16 %v964
        %v3656 = vunpack.c.l.bf16 %v965
        %v3657 = vunpack.c.h.bf16 %v965
        %v3658 = vunpack.c.l.bf16 %v966
        %v3659 = vunpack.c.h.bf16 %v966
        %v3660 = vunpack.c.l.bf16 %v967
        %v3661 = vunpack.c.h.bf16 %v967
        %v3662 = vunpack.c.l.bf16 %v968
        %v3663 = vunpack.c.h.bf16 %v968
        %v3664 = vunpack.c.l.bf16 %v969
        %v3665 = vunpack.c.h.bf16 %v969
        %v3666 = vunpack.c.l.bf16 %v970
        %v3667 = vunpack.c.h.bf16 %v970
        %v3668 = vunpack.c.l.bf16 %v971
        %v3669 = vunpack.c.h.bf16 %v971
        %v3670 = vunpack.c.l.bf16 %v972
        %v3671 = vunpack.c.h.bf16 %v972
        %v3672 = vunpack.c.l.bf16 %v973
        %v3673 = vunpack.c.h.bf16 %v973
        %v3674 = vunpack.c.l.bf16 %v974
        %v3675 = vunpack.c.h.bf16 %v974
        %v3676 = vunpack.c.l.bf16 %v975
        %v3677 = vunpack.c.h.bf16 %v975
        %v3678 = vunpack.c.l.bf16 %v976
        %v3679 = vunpack.c.h.bf16 %v976
        %v3680 = vunpack.c.l.bf16 %v977
        %v3681 = vunpack.c.h.bf16 %v977
        %v3682 = vunpack.c.l.bf16 %v978
        %v3683 = vunpack.c.h.bf16 %v978
        %v3684 = vunpack.c.l.bf16 %v979
        %v3685 = vunpack.c.h.bf16 %v979
        %v3686 = vmul.f32 %v3240, %v3558
        %v3687 = vmul.f32 %v3242, %v3559
        %v3688 = vmul.f32 %v3244, %v3560
        %v3689 = vmul.f32 %v3246, %v3561
        %v3690 = vmul.f32 %v3250, %v3562
        %v3691 = vmul.f32 %v3252, %v3563
        %v3692 = vmul.f32 %v3254, %v3564
        %v3693 = vmul.f32 %v3256, %v3565
        %v3694 = vmul.f32 %v3260, %v3566
        %v3695 = vmul.f32 %v3262, %v3567
        %v3696 = vmul.f32 %v3264, %v3568
        %v3697 = vmul.f32 %v3266, %v3569
        %v3698 = vmul.f32 %v3270, %v3570
        %v3699 = vmul.f32 %v3272, %v3571
        %v3700 = vmul.f32 %v3274, %v3572
        %v3701 = vmul.f32 %v3276, %v3573
        %v3702 = vmul.f32 %v3280, %v3574
        %v3703 = vmul.f32 %v3282, %v3575
        %v3704 = vmul.f32 %v3284, %v3576
        %v3705 = vmul.f32 %v3286, %v3577
        %v3706 = vmul.f32 %v3290, %v3578
        %v3707 = vmul.f32 %v3292, %v3579
        %v3708 = vmul.f32 %v3294, %v3580
        %v3709 = vmul.f32 %v3296, %v3581
        %v3710 = vmul.f32 %v3300, %v3582
        %v3711 = vmul.f32 %v3302, %v3583
        %v3712 = vmul.f32 %v3304, %v3584
        %v3713 = vmul.f32 %v3306, %v3585
        %v3714 = vmul.f32 %v3310, %v3586
        %v3715 = vmul.f32 %v3312, %v3587
        %v3716 = vmul.f32 %v3314, %v3588
        %v3717 = vmul.f32 %v3316, %v3589
        %v3718 = vmul.f32 %v3320, %v3590
        %v3719 = vmul.f32 %v3322, %v3591
        %v3720 = vmul.f32 %v3324, %v3592
        %v3721 = vmul.f32 %v3326, %v3593
        %v3722 = vmul.f32 %v3330, %v3594
        %v3723 = vmul.f32 %v3332, %v3595
        %v3724 = vmul.f32 %v3334, %v3596
        %v3725 = vmul.f32 %v3336, %v3597
        %v3726 = vmul.f32 %v3340, %v3598
        %v3727 = vmul.f32 %v3342, %v3599
        %v3728 = vmul.f32 %v3344, %v3600
        %v3729 = vmul.f32 %v3346, %v3601
        %v3730 = vmul.f32 %v3350, %v3602
        %v3731 = vmul.f32 %v3352, %v3603
        %v3732 = vmul.f32 %v3354, %v3604
        %v3733 = vmul.f32 %v3356, %v3605
        %v3734 = vmul.f32 %v3360, %v3606
        %v3735 = vmul.f32 %v3362, %v3607
        %v3736 = vmul.f32 %v3364, %v3608
        %v3737 = vmul.f32 %v3366, %v3609
        %v3738 = vmul.f32 %v3370, %v3610
        %v3739 = vmul.f32 %v3372, %v3611
        %v3740 = vmul.f32 %v3374, %v3612
        %v3741 = vmul.f32 %v3376, %v3613
        %v3742 = vmul.f32 %v3380, %v3614
        %v3743 = vmul.f32 %v3382, %v3615
        %v3744 = vmul.f32 %v3384, %v3616
        %v3745 = vmul.f32 %v3386, %v3617
        %v3746 = vmul.f32 %v3390, %v3618
        %v3747 = vmul.f32 %v3392, %v3619
        %v3748 = vmul.f32 %v3394, %v3620
        %v3749 = vmul.f32 %v3396, %v3621
        %v3750 = vmul.f32 %v3400, %v3622
        %v3751 = vmul.f32 %v3402, %v3623
        %v3752 = vmul.f32 %v3404, %v3624
        %v3753 = vmul.f32 %v3406, %v3625
        %v3754 = vmul.f32 %v3410, %v3626
        %v3755 = vmul.f32 %v3412, %v3627
        %v3756 = vmul.f32 %v3414, %v3628
        %v3757 = vmul.f32 %v3416, %v3629
        %v3758 = vmul.f32 %v3420, %v3630
        %v3759 = vmul.f32 %v3422, %v3631
        %v3760 = vmul.f32 %v3424, %v3632
        %v3761 = vmul.f32 %v3426, %v3633
        %v3762 = vmul.f32 %v3430, %v3634
        %v3763 = vmul.f32 %v3432, %v3635
        %v3764 = vmul.f32 %v3434, %v3636
        %v3765 = vmul.f32 %v3436, %v3637
        %v3766 = vmul.f32 %v3440, %v3638
        %v3767 = vmul.f32 %v3442, %v3639
        %v3768 = vmul.f32 %v3444, %v3640
        %v3769 = vmul.f32 %v3446, %v3641
        %v3770 = vmul.f32 %v3450, %v3642
        %v3771 = vmul.f32 %v3452, %v3643
        %v3772 = vmul.f32 %v3454, %v3644
        %v3773 = vmul.f32 %v3456, %v3645
        %v3774 = vmul.f32 %v3460, %v3646
        %v3775 = vmul.f32 %v3462, %v3647
        %v3776 = vmul.f32 %v3464, %v3648
        %v3777 = vmul.f32 %v3466, %v3649
        %v3778 = vmul.f32 %v3470, %v3650
        %v3779 = vmul.f32 %v3472, %v3651
        %v3780 = vmul.f32 %v3474, %v3652
        %v3781 = vmul.f32 %v3476, %v3653
        %v3782 = vmul.f32 %v3480, %v3654
        %v3783 = vmul.f32 %v3482, %v3655
        %v3784 = vmul.f32 %v3484, %v3656
        %v3785 = vmul.f32 %v3486, %v3657
        %v3786 = vmul.f32 %v3490, %v3658
        %v3787 = vmul.f32 %v3492, %v3659
        %v3788 = vmul.f32 %v3494, %v3660
        %v3789 = vmul.f32 %v3496, %v3661
        %v3790 = vmul.f32 %v3500, %v3662
        %v3791 = vmul.f32 %v3502, %v3663
        %v3792 = vmul.f32 %v3504, %v3664
        %v3793 = vmul.f32 %v3506, %v3665
        %v3794 = vmul.f32 %v3510, %v3666
        %v3795 = vmul.f32 %v3512, %v3667
        %v3796 = vmul.f32 %v3514, %v3668
        %v3797 = vmul.f32 %v3516, %v3669
        %v3798 = vmul.f32 %v3520, %v3670
        %v3799 = vmul.f32 %v3522, %v3671
        %v3800 = vmul.f32 %v3524, %v3672
        %v3801 = vmul.f32 %v3526, %v3673
        %v3802 = vmul.f32 %v3530, %v3674
        %v3803 = vmul.f32 %v3532, %v3675
        %v3804 = vmul.f32 %v3534, %v3676
        %v3805 = vmul.f32 %v3536, %v3677
        %v3806 = vmul.f32 %v3540, %v3678
        %v3807 = vmul.f32 %v3542, %v3679
        %v3808 = vmul.f32 %v3544, %v3680
        %v3809 = vmul.f32 %v3546, %v3681
        %v3810 = vmul.f32 %v3550, %v3682
        %v3811 = vmul.f32 %v3552, %v3683
        %v3812 = vmul.f32 %v3554, %v3684
        %v3813 = vmul.f32 %v3556, %v3685
        %v3814 = vld [vmem:[%s6] sm:$0xff]
        %v3815 = vld [vmem:[%s6 + $0x8] sm:$0xff]
        %v3816 = vld [vmem:[%s6 + $0x10] sm:$0xff]
        %v3817 = vld [vmem:[%s6 + $0x18] sm:$0xff]
        %3818 = vmatprep.subr.mxu0 %v3717
        %3819 = vmatpush1.msra.mxu0 %v3716
        %3820 = vmatprep.subr.mxu0 %v3715
        %3821 = vmatpush1.msra.mxu0 %v3714
        %3822 = vmatprep.subr.mxu0 %v3713
        %3823 = vmatpush1.msra.mxu0 %v3712
        %3824 = vmatprep.subr.mxu0 %v3711
        %3825 = vmatpush1.msra.mxu0 %v3710
        %3826 = vmatprep.subr.mxu0 %v3709
        %3827 = vmatpush1.msra.mxu0 %v3708
        %3828 = vmatprep.subr.mxu0 %v3707
        %3829 = vmatpush1.msra.mxu0 %v3706
        %3830 = vmatprep.subr.mxu0 %v3705
        %3831 = vmatpush1.msra.mxu0 %v3704
        %3832 = vmatprep.subr.mxu0 %v3703
        %3833 = vmatpush1.msra.mxu0 %v3702
        %3834 = vmatprep.subr.mxu0 %v3701
        %3835 = vmatpush1.msra.mxu0 %v3700
        %3836 = vmatprep.subr.mxu0 %v3699
        %3837 = vmatpush1.msra.mxu0 %v3698
        %3838 = vmatprep.subr.mxu0 %v3697
        %3839 = vmatpush1.msra.mxu0 %v3696
        %3840 = vmatprep.subr.mxu0 %v3695
        %3841 = vmatpush1.msra.mxu0 %v3694
        %3842 = vmatprep.subr.mxu0 %v3693
        %3843 = vmatpush1.msra.mxu0 %v3692
        %3844 = vmatprep.subr.mxu0 %v3691
        %3845 = vmatpush1.msra.mxu0 %v3690
        %3846 = vmatprep.subr.mxu0 %v3689
        %3847 = vmatpush1.msra.mxu0 %v3688
        %3848 = vmatprep.subr.mxu0 %v3687
        %3849 = vmatpush1.msra.mxu0 %v3686
        %3850 = vmatprep.subr.mxu0 %v3749
        %3851 = vmatpush2.msra.mxu0 %v3748
        %3852 = vmatprep.subr.mxu0 %v3747
        %3853 = vmatpush2.msra.mxu0 %v3746
        %3854 = vmatprep.subr.mxu0 %v3745
        %3855 = vmatpush2.msra.mxu0 %v3744
        %3856 = vmatprep.subr.mxu0 %v3743
        %3857 = vmatpush2.msra.mxu0 %v3742
        %3858 = vmatprep.subr.mxu0 %v3741
        %3859 = vmatpush2.msra.mxu0 %v3740
        %3860 = vmatprep.subr.mxu0 %v3739
        %3861 = vmatpush2.msra.mxu0 %v3738
        %3862 = vmatprep.subr.mxu0 %v3737
        %3863 = vmatpush2.msra.mxu0 %v3736
        %3864 = vmatprep.subr.mxu0 %v3735
        %3865 = vmatpush2.msra.mxu0 %v3734
        %3866 = vmatprep.subr.mxu0 %v3733
        %3867 = vmatpush2.msra.mxu0 %v3732
        %3868 = vmatprep.subr.mxu0 %v3731
        %3869 = vmatpush2.msra.mxu0 %v3730
        %3870 = vmatprep.subr.mxu0 %v3729
        %3871 = vmatpush2.msra.mxu0 %v3728
        %3872 = vmatprep.subr.mxu0 %v3727
        %3873 = vmatpush2.msra.mxu0 %v3726
        %3874 = vmatprep.subr.mxu0 %v3725
        %3875 = vmatpush2.msra.mxu0 %v3724
        %3876 = vmatprep.subr.mxu0 %v3723
        %3877 = vmatpush2.msra.mxu0 %v3722
        %3878 = vmatprep.subr.mxu0 %v3721
        %3879 = vmatpush2.msra.mxu0 %v3720
        %3880 = vmatprep.subr.mxu0 %v3719
        %3881 = vmatpush2.msra.mxu0 %v3718
        %3882 = vmatprep.mubr.f32.mxu0 %v3815
        %3883 = vmatmul.mubr.f32.gmra.mxu0 %v3814
        %v3884 = vpop.f32.mrf.mxu0
        %v3885 = vadd.f32 0.0, %v3884
        %v3886 = vpop.f32.mrf.mxu0
        %v3887 = vadd.f32 0.0, %v3886
        %3888 = vdwg.mxu0
        %3889 = vmatprep.subr.mxu0 %v3781
        %3890 = vmatpush1.msra.mxu0 %v3780
        %3891 = vmatprep.subr.mxu0 %v3779
        %3892 = vmatpush1.msra.mxu0 %v3778
        %3893 = vmatprep.subr.mxu0 %v3777
        %3894 = vmatpush1.msra.mxu0 %v3776
        %3895 = vmatprep.subr.mxu0 %v3775
        %3896 = vmatpush1.msra.mxu0 %v3774
        %3897 = vmatprep.subr.mxu0 %v3773
        %3898 = vmatpush1.msra.mxu0 %v3772
        %3899 = vmatprep.subr.mxu0 %v3771
        %3900 = vmatpush1.msra.mxu0 %v3770
        %3901 = vmatprep.subr.mxu0 %v3769
        %3902 = vmatpush1.msra.mxu0 %v3768
        %3903 = vmatprep.subr.mxu0 %v3767
        %3904 = vmatpush1.msra.mxu0 %v3766
        %3905 = vmatprep.subr.mxu0 %v3765
        %3906 = vmatpush1.msra.mxu0 %v3764
        %3907 = vmatprep.subr.mxu0 %v3763
        %3908 = vmatpush1.msra.mxu0 %v3762
        %3909 = vmatprep.subr.mxu0 %v3761
        %3910 = vmatpush1.msra.mxu0 %v3760
        %3911 = vmatprep.subr.mxu0 %v3759
        %3912 = vmatpush1.msra.mxu0 %v3758
        %3913 = vmatprep.subr.mxu0 %v3757
        %3914 = vmatpush1.msra.mxu0 %v3756
        %3915 = vmatprep.subr.mxu0 %v3755
        %3916 = vmatpush1.msra.mxu0 %v3754
        %3917 = vmatprep.subr.mxu0 %v3753
        %3918 = vmatpush1.msra.mxu0 %v3752
        %3919 = vmatprep.subr.mxu0 %v3751
        %3920 = vmatpush1.msra.mxu0 %v3750
        %3921 = vmatprep.subr.mxu0 %v3813
        %3922 = vmatpush2.msra.mxu0 %v3812
        %3923 = vmatprep.subr.mxu0 %v3811
        %3924 = vmatpush2.msra.mxu0 %v3810
        %3925 = vmatprep.subr.mxu0 %v3809
        %3926 = vmatpush2.msra.mxu0 %v3808
        %3927 = vmatprep.subr.mxu0 %v3807
        %3928 = vmatpush2.msra.mxu0 %v3806
        %3929 = vmatprep.subr.mxu0 %v3805
        %3930 = vmatpush2.msra.mxu0 %v3804
        %3931 = vmatprep.subr.mxu0 %v3803
        %3932 = vmatpush2.msra.mxu0 %v3802
        %3933 = vmatprep.subr.mxu0 %v3801
        %3934 = vmatpush2.msra.mxu0 %v3800
        %3935 = vmatprep.subr.mxu0 %v3799
        %3936 = vmatpush2.msra.mxu0 %v3798
        %3937 = vmatprep.subr.mxu0 %v3797
        %3938 = vmatpush2.msra.mxu0 %v3796
        %3939 = vmatprep.subr.mxu0 %v3795
        %3940 = vmatpush2.msra.mxu0 %v3794
        %3941 = vmatprep.subr.mxu0 %v3793
        %3942 = vmatpush2.msra.mxu0 %v3792
        %3943 = vmatprep.subr.mxu0 %v3791
        %3944 = vmatpush2.msra.mxu0 %v3790
        %3945 = vmatprep.subr.mxu0 %v3789
        %3946 = vmatpush2.msra.mxu0 %v3788
        %3947 = vmatprep.subr.mxu0 %v3787
        %3948 = vmatpush2.msra.mxu0 %v3786
        %3949 = vmatprep.subr.mxu0 %v3785
        %3950 = vmatpush2.msra.mxu0 %v3784
        %3951 = vmatprep.subr.mxu0 %v3783
        %3952 = vmatpush2.msra.mxu0 %v3782
        %3953 = vmatprep.mubr.f32.mxu0 %v3817
        %3954 = vmatmul.mubr.f32.gmra.mxu0 %v3816
        %v3955 = vpop.f32.mrf.mxu0
        %v3956 = vadd.f32 %v3885, %v3955
        %v3957 = vpop.f32.mrf.mxu0
        %v3958 = vadd.f32 %v3887, %v3957
        %3959 = vdwg.mxu0
        %v3960 = vld [vmem:[%s2 + $0x10] sm:$0xff]
        %v3961 = vld [vmem:[%s2 + $0x38] sm:$0xff]
        %v3962 = vld [vmem:[%s2 + $0x60] sm:$0xff]
        %v3963 = vld [vmem:[%s2 + $0x88] sm:$0xff]
        %v3964 = vld [vmem:[%s2 + $0xb0] sm:$0xff]
        %v3965 = vld [vmem:[%s2 + $0xd8] sm:$0xff]
        %v3966 = vld [vmem:[%s2 + $0x100] sm:$0xff]
        %v3967 = vld [vmem:[%s2 + $0x128] sm:$0xff]
        %v3968 = vld [vmem:[%s2 + $0x150] sm:$0xff]
        %v3969 = vld [vmem:[%s2 + $0x178] sm:$0xff]
        %v3970 = vld [vmem:[%s2 + $0x1a0] sm:$0xff]
        %v3971 = vld [vmem:[%s2 + $0x1c8] sm:$0xff]
        %v3972 = vld [vmem:[%s2 + $0x1f0] sm:$0xff]
        %v3973 = vld [vmem:[%s2 + $0x218] sm:$0xff]
        %v3974 = vld [vmem:[%s2 + $0x240] sm:$0xff]
        %v3975 = vld [vmem:[%s2 + $0x268] sm:$0xff]
        %v3976 = vld [vmem:[%s2 + $0x290] sm:$0xff]
        %v3977 = vld [vmem:[%s2 + $0x2b8] sm:$0xff]
        %v3978 = vld [vmem:[%s2 + $0x2e0] sm:$0xff]
        %v3979 = vld [vmem:[%s2 + $0x308] sm:$0xff]
        %v3980 = vld [vmem:[%s2 + $0x330] sm:$0xff]
        %v3981 = vld [vmem:[%s2 + $0x358] sm:$0xff]
        %v3982 = vld [vmem:[%s2 + $0x380] sm:$0xff]
        %v3983 = vld [vmem:[%s2 + $0x3a8] sm:$0xff]
        %v3984 = vld [vmem:[%s2 + $0x3d0] sm:$0xff]
        %v3985 = vld [vmem:[%s2 + $0x3f8] sm:$0xff]
        %v3986 = vld [vmem:[%s2 + $0x420] sm:$0xff]
        %v3987 = vld [vmem:[%s2 + $0x448] sm:$0xff]
        %v3988 = vld [vmem:[%s2 + $0x470] sm:$0xff]
        %v3989 = vld [vmem:[%s2 + $0x498] sm:$0xff]
        %v3990 = vld [vmem:[%s2 + $0x4c0] sm:$0xff]
        %v3991 = vld [vmem:[%s2 + $0x4e8] sm:$0xff]
        %s3992 = scalar_lea.vmem %s3, 2
        %v3993 = vld [vmem:[%s3992] ss:$8 sm:$0x3]
        %v3994 = vpack.c.bf16 %v3956, %v3956
        %v3995 = vpack.c.bf16 %v3958, %v3958
        %v3997 = vlaneseq
        %v3998 = vshrl.u32 %v3997, 7
        %v3999 = vsub.s32 0, %v3998
        %v4000 = vrot.slane %v3993, %v3999
        %v4001 = vlaneseq
        %v4002 = vshrl.u32 %v4001, 7
        %v4003 = vsub.s32 1, %v4002
        %v4004 = vrot.slane %v3993, %v4003
        %v4039 = vunpack.c.l.b16 %v3960
        %v4040 = vunpack.c.h.b16 %v3960
        %v4041 = vunpack.c.l.b16 %v3961
        %v4042 = vunpack.c.h.b16 %v3961
        %v4043 = vunpack.c.l.b16 %v3962
        %v4044 = vunpack.c.h.b16 %v3962
        %v4045 = vunpack.c.l.b16 %v3963
        %v4046 = vunpack.c.h.b16 %v3963
        %v4047 = vunpack.c.l.b16 %v3964
        %v4048 = vunpack.c.h.b16 %v3964
        %v4049 = vunpack.c.l.b16 %v3965
        %v4050 = vunpack.c.h.b16 %v3965
        %v4051 = vunpack.c.l.b16 %v3966
        %v4052 = vunpack.c.h.b16 %v3966
        %v4053 = vunpack.c.l.b16 %v3967
        %v4054 = vunpack.c.h.b16 %v3967
        %v4055 = vunpack.c.l.b16 %v3968
        %v4056 = vunpack.c.h.b16 %v3968
        %v4057 = vunpack.c.l.b16 %v3969
        %v4058 = vunpack.c.h.b16 %v3969
        %v4059 = vunpack.c.l.b16 %v3970
        %v4060 = vunpack.c.h.b16 %v3970
        %v4061 = vunpack.c.l.b16 %v3971
        %v4062 = vunpack.c.h.b16 %v3971
        %v4063 = vunpack.c.l.b16 %v3972
        %v4064 = vunpack.c.h.b16 %v3972
        %v4065 = vunpack.c.l.b16 %v3973
        %v4066 = vunpack.c.h.b16 %v3973
        %v4067 = vunpack.c.l.b16 %v3974
        %v4068 = vunpack.c.h.b16 %v3974
        %v4069 = vunpack.c.l.b16 %v3975
        %v4070 = vunpack.c.h.b16 %v3975
        %v4071 = vunpack.c.l.b16 %v3976
        %v4072 = vunpack.c.h.b16 %v3976
        %v4073 = vunpack.c.l.b16 %v3977
        %v4074 = vunpack.c.h.b16 %v3977
        %v4075 = vunpack.c.l.b16 %v3978
        %v4076 = vunpack.c.h.b16 %v3978
        %v4077 = vunpack.c.l.b16 %v3979
        %v4078 = vunpack.c.h.b16 %v3979
        %v4079 = vunpack.c.l.b16 %v3980
        %v4080 = vunpack.c.h.b16 %v3980
        %v4081 = vunpack.c.l.b16 %v3981
        %v4082 = vunpack.c.h.b16 %v3981
        %v4083 = vunpack.c.l.b16 %v3982
        %v4084 = vunpack.c.h.b16 %v3982
        %v4085 = vunpack.c.l.b16 %v3983
        %v4086 = vunpack.c.h.b16 %v3983
        %v4087 = vunpack.c.l.b16 %v3984
        %v4088 = vunpack.c.h.b16 %v3984
        %v4089 = vunpack.c.l.b16 %v3985
        %v4090 = vunpack.c.h.b16 %v3985
        %v4091 = vunpack.c.l.b16 %v3986
        %v4092 = vunpack.c.h.b16 %v3986
        %v4093 = vunpack.c.l.b16 %v3987
        %v4094 = vunpack.c.h.b16 %v3987
        %v4095 = vunpack.c.l.b16 %v3988
        %v4096 = vunpack.c.h.b16 %v3988
        %v4097 = vunpack.c.l.b16 %v3989
        %v4098 = vunpack.c.h.b16 %v3989
        %v4099 = vunpack.c.l.b16 %v3990
        %v4100 = vunpack.c.h.b16 %v3990
        %v4101 = vunpack.c.l.b16 %v3991
        %v4102 = vunpack.c.h.b16 %v3991
        %v4103 = vpack.c.b16 %v4041, %v4039
        %v4104 = vpack.c.b16 %v4042, %v4040
        %v4105 = vpack.c.b16 %v4045, %v4043
        %v4106 = vpack.c.b16 %v4046, %v4044
        %v4107 = vpack.c.b16 %v4049, %v4047
        %v4108 = vpack.c.b16 %v4050, %v4048
        %v4109 = vpack.c.b16 %v4053, %v4051
        %v4110 = vpack.c.b16 %v4054, %v4052
        %v4111 = vpack.c.b16 %v4057, %v4055
        %v4112 = vpack.c.b16 %v4058, %v4056
        %v4113 = vpack.c.b16 %v4061, %v4059
        %v4114 = vpack.c.b16 %v4062, %v4060
        %v4115 = vpack.c.b16 %v4065, %v4063
        %v4116 = vpack.c.b16 %v4066, %v4064
        %v4117 = vpack.c.b16 %v4069, %v4067
        %v4118 = vpack.c.b16 %v4070, %v4068
        %v4119 = vpack.c.b16 %v4073, %v4071
        %v4120 = vpack.c.b16 %v4074, %v4072
        %v4121 = vpack.c.b16 %v4077, %v4075
        %v4122 = vpack.c.b16 %v4078, %v4076
        %v4123 = vpack.c.b16 %v4081, %v4079
        %v4124 = vpack.c.b16 %v4082, %v4080
        %v4125 = vpack.c.b16 %v4085, %v4083
        %v4126 = vpack.c.b16 %v4086, %v4084
        %v4127 = vpack.c.b16 %v4089, %v4087
        %v4128 = vpack.c.b16 %v4090, %v4088
        %v4129 = vpack.c.b16 %v4093, %v4091
        %v4130 = vpack.c.b16 %v4094, %v4092
        %v4131 = vpack.c.b16 %v4097, %v4095
        %v4132 = vpack.c.b16 %v4098, %v4096
        %v4133 = vpack.c.b16 %v4101, %v4099
        %v4134 = vpack.c.b16 %v4102, %v4100
        %4167 = vmatprep.subr.bf16.mxu0 %v4118
        %4168 = vmatpush1.bf16.msra.mxu0 %v4117
        %4169 = vmatprep.subr.bf16.mxu0 %v4116
        %4170 = vmatpush1.bf16.msra.mxu0 %v4115
        %4171 = vmatprep.subr.bf16.mxu0 %v4114
        %4172 = vmatpush1.bf16.msra.mxu0 %v4113
        %4173 = vmatprep.subr.bf16.mxu0 %v4112
        %4174 = vmatpush1.bf16.msra.mxu0 %v4111
        %4175 = vmatprep.subr.bf16.mxu0 %v4110
        %4176 = vmatpush1.bf16.msra.mxu0 %v4109
        %4177 = vmatprep.subr.bf16.mxu0 %v4108
        %4178 = vmatpush1.bf16.msra.mxu0 %v4107
        %4179 = vmatprep.subr.bf16.mxu0 %v4106
        %4180 = vmatpush1.bf16.msra.mxu0 %v4105
        %4181 = vmatprep.subr.bf16.mxu0 %v4104
        %4182 = vmatpush1.bf16.msra.mxu0 %v4103
        %4183 = vmatprep.subr.bf16.mxu0 %v4134
        %4184 = vmatpush2.bf16.msra.mxu0 %v4133
        %4185 = vmatprep.subr.bf16.mxu0 %v4132
        %4186 = vmatpush2.bf16.msra.mxu0 %v4131
        %4187 = vmatprep.subr.bf16.mxu0 %v4130
        %4188 = vmatpush2.bf16.msra.mxu0 %v4129
        %4189 = vmatprep.subr.bf16.mxu0 %v4128
        %4190 = vmatpush2.bf16.msra.mxu0 %v4127
        %4191 = vmatprep.subr.bf16.mxu0 %v4126
        %4192 = vmatpush2.bf16.msra.mxu0 %v4125
        %4193 = vmatprep.subr.bf16.mxu0 %v4124
        %4194 = vmatpush2.bf16.msra.mxu0 %v4123
        %4195 = vmatprep.subr.bf16.mxu0 %v4122
        %4196 = vmatpush2.bf16.msra.mxu0 %v4121
        %4197 = vmatprep.subr.bf16.mxu0 %v4120
        %4198 = vmatpush2.bf16.msra.mxu0 %v4119
        %4199 = vmatprep.mubr.bf16.mxu0 %v3995
        %4200 = vmatmul.mubr.bf16.gmra.mxu0 %v3994
        %v4201 = vpop.f32.mrf.mxu0
        %v4202 = vadd.f32 %v4000, %v4201
        %v4203 = vpop.f32.mrf.mxu0
        %v4204 = vadd.f32 %v4004, %v4203
        %v4205 = vpop.f32.mrf.mxu0
        %v4206 = vpop.f32.mrf.mxu0
        %4207 = vdwg.mxu0
        %v4210 = vcombine.low %v4202, %v4204
        %v4211 = vcombine.high %v4202, %v4204
        %v4213 = vunpack.c.l.s4 1966171168
        %v4214 = vunpack.c.0.s8 %v4213
        %v4215 = vlaneseq
        %v4216 = vshrl.u32 %v4215, 7
        %v4217 = vsub.s32 %v4214, %v4216
        %v4218 = vrot.slane %v4210, %v4217
        %v4220 = vunpack.c.l.s4 1966171168
        %v4221 = vunpack.c.0.s8 %v4220
        %v4222 = vlaneseq
        %v4223 = vshrl.u32 %v4222, 7
        %v4224 = vsub.s32 %v4221, %v4223
        %v4225 = vrot.slane %v4211, %v4224
        %v4226 = vcombine.high %v4218, %v4218
        %v4227 = vcombine.high %v4225, %v4225
        %v4229 = vunpack.c.l.s4 1966171168
        %v4230 = vunpack.c.0.s8 %v4229
        %v4231 = vlaneseq
        %v4232 = vshrl.u32 %v4231, 7
        %v4233 = vsub.s32 %v4230, %v4232
        %v4234 = vrot.slane %v4218, %v4233
        %v4236 = vunpack.c.l.s4 1966171168
        %v4237 = vunpack.c.0.s8 %v4236
        %v4238 = vlaneseq
        %v4239 = vshrl.u32 %v4238, 7
        %v4240 = vsub.s32 %v4237, %v4239
        %v4241 = vrot.slane %v4225, %v4240
        %v4243 = vunpack.c.l.s4 1966171168
        %v4244 = vunpack.c.0.s8 %v4243
        %v4245 = vlaneseq
        %v4246 = vshrl.u32 %v4245, 7
        %v4247 = vsub.s32 %v4244, %v4246
        %v4248 = vrot.slane %v4226, %v4247
        %v4250 = vunpack.c.l.s4 1966171168
        %v4251 = vunpack.c.0.s8 %v4250
        %v4252 = vlaneseq
        %v4253 = vshrl.u32 %v4252, 7
        %v4254 = vsub.s32 %v4251, %v4253
        %v4255 = vrot.slane %v4227, %v4254
        %v4256 = vcombine.high %v4234, %v4234
        %v4257 = vcombine.high %v4241, %v4241
        %v4258 = vcombine.high %v4248, %v4248
        %v4259 = vcombine.high %v4255, %v4255
        %v4268 = vadd.f32 %v844, %v4234
        %v4269 = vadd.f32 %v845, %v4248
        %v4270 = vadd.f32 %v846, %v4256
        %v4271 = vadd.f32 %v847, %v4258
        %v4272 = vadd.f32 %v848, %v4241
        %v4273 = vadd.f32 %v849, %v4255
        %v4274 = vadd.f32 %v850, %v4257
        %v4275 = vadd.f32 %v851, %v4259
        %v4276 = vld [vmem:[%s2 + $0x18] sm:$0xff]
        %v4277 = vld [vmem:[%s2 + $0x40] sm:$0xff]
        %v4278 = vld [vmem:[%s2 + $0x68] sm:$0xff]
        %v4279 = vld [vmem:[%s2 + $0x90] sm:$0xff]
        %v4280 = vld [vmem:[%s2 + $0xb8] sm:$0xff]
        %v4281 = vld [vmem:[%s2 + $0xe0] sm:$0xff]
        %v4282 = vld [vmem:[%s2 + $0x108] sm:$0xff]
        %v4283 = vld [vmem:[%s2 + $0x130] sm:$0xff]
        %v4284 = vld [vmem:[%s2 + $0x158] sm:$0xff]
        %v4285 = vld [vmem:[%s2 + $0x180] sm:$0xff]
        %v4286 = vld [vmem:[%s2 + $0x1a8] sm:$0xff]
        %v4287 = vld [vmem:[%s2 + $0x1d0] sm:$0xff]
        %v4288 = vld [vmem:[%s2 + $0x1f8] sm:$0xff]
        %v4289 = vld [vmem:[%s2 + $0x220] sm:$0xff]
        %v4290 = vld [vmem:[%s2 + $0x248] sm:$0xff]
        %v4291 = vld [vmem:[%s2 + $0x270] sm:$0xff]
        %v4292 = vld [vmem:[%s2 + $0x298] sm:$0xff]
        %v4293 = vld [vmem:[%s2 + $0x2c0] sm:$0xff]
        %v4294 = vld [vmem:[%s2 + $0x2e8] sm:$0xff]
        %v4295 = vld [vmem:[%s2 + $0x310] sm:$0xff]
        %v4296 = vld [vmem:[%s2 + $0x338] sm:$0xff]
        %v4297 = vld [vmem:[%s2 + $0x360] sm:$0xff]
        %v4298 = vld [vmem:[%s2 + $0x388] sm:$0xff]
        %v4299 = vld [vmem:[%s2 + $0x3b0] sm:$0xff]
        %v4300 = vld [vmem:[%s2 + $0x3d8] sm:$0xff]
        %v4301 = vld [vmem:[%s2 + $0x400] sm:$0xff]
        %v4302 = vld [vmem:[%s2 + $0x428] sm:$0xff]
        %v4303 = vld [vmem:[%s2 + $0x450] sm:$0xff]
        %v4304 = vld [vmem:[%s2 + $0x478] sm:$0xff]
        %v4305 = vld [vmem:[%s2 + $0x4a0] sm:$0xff]
        %v4306 = vld [vmem:[%s2 + $0x4c8] sm:$0xff]
        %v4307 = vld [vmem:[%s2 + $0x4f0] sm:$0xff]
        %s4308 = scalar_lea.vmem %s3, 3
        %v4309 = vld [vmem:[%s4308] ss:$8 sm:$0x3]
        %v4318 = vlaneseq
        %v4319 = vshrl.u32 %v4318, 7
        %v4320 = vsub.s32 0, %v4319
        %v4321 = vrot.slane %v4268, %v4320
        %v4322 = vlaneseq
        %v4323 = vshrl.u32 %v4322, 7
        %v4324 = vsub.s32 1, %v4323
        %v4325 = vrot.slane %v4268, %v4324
        %v4326 = vlaneseq
        %v4327 = vshrl.u32 %v4326, 7
        %v4328 = vsub.s32 0, %v4327
        %v4329 = vrot.slane %v4269, %v4328
        %v4330 = vlaneseq
        %v4331 = vshrl.u32 %v4330, 7
        %v4332 = vsub.s32 1, %v4331
        %v4333 = vrot.slane %v4269, %v4332
        %v4334 = vlaneseq
        %v4335 = vshrl.u32 %v4334, 7
        %v4336 = vsub.s32 0, %v4335
        %v4337 = vrot.slane %v4270, %v4336
        %v4338 = vlaneseq
        %v4339 = vshrl.u32 %v4338, 7
        %v4340 = vsub.s32 1, %v4339
        %v4341 = vrot.slane %v4270, %v4340
        %v4342 = vlaneseq
        %v4343 = vshrl.u32 %v4342, 7
        %v4344 = vsub.s32 0, %v4343
        %v4345 = vrot.slane %v4271, %v4344
        %v4346 = vlaneseq
        %v4347 = vshrl.u32 %v4346, 7
        %v4348 = vsub.s32 1, %v4347
        %v4349 = vrot.slane %v4271, %v4348
        %v4350 = vlaneseq
        %v4351 = vshrl.u32 %v4350, 7
        %v4352 = vsub.s32 0, %v4351
        %v4353 = vrot.slane %v4272, %v4352
        %v4354 = vlaneseq
        %v4355 = vshrl.u32 %v4354, 7
        %v4356 = vsub.s32 1, %v4355
        %v4357 = vrot.slane %v4272, %v4356
        %v4358 = vlaneseq
        %v4359 = vshrl.u32 %v4358, 7
        %v4360 = vsub.s32 0, %v4359
        %v4361 = vrot.slane %v4273, %v4360
        %v4362 = vlaneseq
        %v4363 = vshrl.u32 %v4362, 7
        %v4364 = vsub.s32 1, %v4363
        %v4365 = vrot.slane %v4273, %v4364
        %v4366 = vlaneseq
        %v4367 = vshrl.u32 %v4366, 7
        %v4368 = vsub.s32 0, %v4367
        %v4369 = vrot.slane %v4274, %v4368
        %v4370 = vlaneseq
        %v4371 = vshrl.u32 %v4370, 7
        %v4372 = vsub.s32 1, %v4371
        %v4373 = vrot.slane %v4274, %v4372
        %v4374 = vlaneseq
        %v4375 = vshrl.u32 %v4374, 7
        %v4376 = vsub.s32 0, %v4375
        %v4377 = vrot.slane %v4275, %v4376
        %v4378 = vlaneseq
        %v4379 = vshrl.u32 %v4378, 7
        %v4380 = vsub.s32 1, %v4379
        %v4381 = vrot.slane %v4275, %v4380
        %v4398 = vpack.c.bf16 %v4321, %v4321
        %v4399 = vpack.c.bf16 %v4325, %v4325
        %v4400 = vpack.c.bf16 %v4329, %v4329
        %v4401 = vpack.c.bf16 %v4333, %v4333
        %v4402 = vpack.c.bf16 %v4337, %v4337
        %v4403 = vpack.c.bf16 %v4341, %v4341
        %v4404 = vpack.c.bf16 %v4345, %v4345
        %v4405 = vpack.c.bf16 %v4349, %v4349
        %v4406 = vpack.c.bf16 %v4353, %v4353
        %v4407 = vpack.c.bf16 %v4357, %v4357
        %v4408 = vpack.c.bf16 %v4361, %v4361
        %v4409 = vpack.c.bf16 %v4365, %v4365
        %v4410 = vpack.c.bf16 %v4369, %v4369
        %v4411 = vpack.c.bf16 %v4373, %v4373
        %v4412 = vpack.c.bf16 %v4377, %v4377
        %v4413 = vpack.c.bf16 %v4381, %v4381
        %v4415 = vlaneseq
        %v4416 = vshrl.u32 %v4415, 7
        %v4417 = vsub.s32 0, %v4416
        %v4418 = vrot.slane %v4309, %v4417
        %v4419 = vlaneseq
        %v4420 = vshrl.u32 %v4419, 7
        %v4421 = vsub.s32 1, %v4420
        %v4422 = vrot.slane %v4309, %v4421
        %v4441 = vunpack.c.l.b16 %v4398
        %v4442 = vunpack.c.l.b16 %v4399
        %v4443 = vunpack.c.l.b16 %v4400
        %v4444 = vunpack.c.l.b16 %v4401
        %v4445 = vunpack.c.l.b16 %v4402
        %v4446 = vunpack.c.l.b16 %v4403
        %v4447 = vunpack.c.l.b16 %v4404
        %v4448 = vunpack.c.l.b16 %v4405
        %v4449 = vunpack.c.l.b16 %v4406
        %v4450 = vunpack.c.l.b16 %v4407
        %v4451 = vunpack.c.l.b16 %v4408
        %v4452 = vunpack.c.l.b16 %v4409
        %v4453 = vunpack.c.l.b16 %v4410
        %v4454 = vunpack.c.l.b16 %v4411
        %v4455 = vunpack.c.l.b16 %v4412
        %v4456 = vunpack.c.l.b16 %v4413
        %v4457 = vrot.slane %v4443, 7
        %v4458 = vsel %vm545, %v4457, %v4441
        %v4459 = vrot.slane %v4445, 6
        %v4460 = vsel %vm548, %v4459, %v4458
        %v4461 = vrot.slane %v4447, 5
        %v4462 = vsel %vm551, %v4461, %v4460
        %v4463 = vrot.slane %v4449, 4
        %v4464 = vsel %vm554, %v4463, %v4462
        %v4465 = vrot.slane %v4451, 3
        %v4466 = vsel %vm557, %v4465, %v4464
        %v4467 = vrot.slane %v4453, 2
        %v4468 = vsel %vm560, %v4467, %v4466
        %v4469 = vrot.slane %v4455, 1
        %v4470 = vsel %vm563, %v4469, %v4468
        %v4471 = vrot.slane %v4444, 7
        %v4472 = vsel %vm545, %v4471, %v4442
        %v4473 = vrot.slane %v4446, 6
        %v4474 = vsel %vm548, %v4473, %v4472
        %v4475 = vrot.slane %v4448, 5
        %v4476 = vsel %vm551, %v4475, %v4474
        %v4477 = vrot.slane %v4450, 4
        %v4478 = vsel %vm554, %v4477, %v4476
        %v4479 = vrot.slane %v4452, 3
        %v4480 = vsel %vm557, %v4479, %v4478
        %v4481 = vrot.slane %v4454, 2
        %v4482 = vsel %vm560, %v4481, %v4480
        %v4483 = vrot.slane %v4456, 1
        %v4484 = vsel %vm563, %v4483, %v4482
        %v4485 = vpack.c.b16 %v4470, %v4470
        %v4486 = vpack.c.b16 %v4484, %v4484
        %v4521 = vunpack.c.l.b16 %v4276
        %v4522 = vunpack.c.h.b16 %v4276
        %v4523 = vunpack.c.l.b16 %v4277
        %v4524 = vunpack.c.h.b16 %v4277
        %v4525 = vunpack.c.l.b16 %v4278
        %v4526 = vunpack.c.h.b16 %v4278
        %v4527 = vunpack.c.l.b16 %v4279
        %v4528 = vunpack.c.h.b16 %v4279
        %v4529 = vunpack.c.l.b16 %v4280
        %v4530 = vunpack.c.h.b16 %v4280
        %v4531 = vunpack.c.l.b16 %v4281
        %v4532 = vunpack.c.h.b16 %v4281
        %v4533 = vunpack.c.l.b16 %v4282
        %v4534 = vunpack.c.h.b16 %v4282
        %v4535 = vunpack.c.l.b16 %v4283
        %v4536 = vunpack.c.h.b16 %v4283
        %v4537 = vunpack.c.l.b16 %v4284
        %v4538 = vunpack.c.h.b16 %v4284
        %v4539 = vunpack.c.l.b16 %v4285
        %v4540 = vunpack.c.h.b16 %v4285
        %v4541 = vunpack.c.l.b16 %v4286
        %v4542 = vunpack.c.h.b16 %v4286
        %v4543 = vunpack.c.l.b16 %v4287
        %v4544 = vunpack.c.h.b16 %v4287
        %v4545 = vunpack.c.l.b16 %v4288
        %v4546 = vunpack.c.h.b16 %v4288
        %v4547 = vunpack.c.l.b16 %v4289
        %v4548 = vunpack.c.h.b16 %v4289
        %v4549 = vunpack.c.l.b16 %v4290
        %v4550 = vunpack.c.h.b16 %v4290
        %v4551 = vunpack.c.l.b16 %v4291
        %v4552 = vunpack.c.h.b16 %v4291
        %v4553 = vunpack.c.l.b16 %v4292
        %v4554 = vunpack.c.h.b16 %v4292
        %v4555 = vunpack.c.l.b16 %v4293
        %v4556 = vunpack.c.h.b16 %v4293
        %v4557 = vunpack.c.l.b16 %v4294
        %v4558 = vunpack.c.h.b16 %v4294
        %v4559 = vunpack.c.l.b16 %v4295
        %v4560 = vunpack.c.h.b16 %v4295
        %v4561 = vunpack.c.l.b16 %v4296
        %v4562 = vunpack.c.h.b16 %v4296
        %v4563 = vunpack.c.l.b16 %v4297
        %v4564 = vunpack.c.h.b16 %v4297
        %v4565 = vunpack.c.l.b16 %v4298
        %v4566 = vunpack.c.h.b16 %v4298
        %v4567 = vunpack.c.l.b16 %v4299
        %v4568 = vunpack.c.h.b16 %v4299
        %v4569 = vunpack.c.l.b16 %v4300
        %v4570 = vunpack.c.h.b16 %v4300
        %v4571 = vunpack.c.l.b16 %v4301
        %v4572 = vunpack.c.h.b16 %v4301
        %v4573 = vunpack.c.l.b16 %v4302
        %v4574 = vunpack.c.h.b16 %v4302
        %v4575 = vunpack.c.l.b16 %v4303
        %v4576 = vunpack.c.h.b16 %v4303
        %v4577 = vunpack.c.l.b16 %v4304
        %v4578 = vunpack.c.h.b16 %v4304
        %v4579 = vunpack.c.l.b16 %v4305
        %v4580 = vunpack.c.h.b16 %v4305
        %v4581 = vunpack.c.l.b16 %v4306
        %v4582 = vunpack.c.h.b16 %v4306
        %v4583 = vunpack.c.l.b16 %v4307
        %v4584 = vunpack.c.h.b16 %v4307
        %v4585 = vpack.c.b16 %v4523, %v4521
        %v4586 = vpack.c.b16 %v4524, %v4522
        %v4587 = vpack.c.b16 %v4527, %v4525
        %v4588 = vpack.c.b16 %v4528, %v4526
        %v4589 = vpack.c.b16 %v4531, %v4529
        %v4590 = vpack.c.b16 %v4532, %v4530
        %v4591 = vpack.c.b16 %v4535, %v4533
        %v4592 = vpack.c.b16 %v4536, %v4534
        %v4593 = vpack.c.b16 %v4539, %v4537
        %v4594 = vpack.c.b16 %v4540, %v4538
        %v4595 = vpack.c.b16 %v4543, %v4541
        %v4596 = vpack.c.b16 %v4544, %v4542
        %v4597 = vpack.c.b16 %v4547, %v4545
        %v4598 = vpack.c.b16 %v4548, %v4546
        %v4599 = vpack.c.b16 %v4551, %v4549
        %v4600 = vpack.c.b16 %v4552, %v4550
        %v4601 = vpack.c.b16 %v4555, %v4553
        %v4602 = vpack.c.b16 %v4556, %v4554
        %v4603 = vpack.c.b16 %v4559, %v4557
        %v4604 = vpack.c.b16 %v4560, %v4558
        %v4605 = vpack.c.b16 %v4563, %v4561
        %v4606 = vpack.c.b16 %v4564, %v4562
        %v4607 = vpack.c.b16 %v4567, %v4565
        %v4608 = vpack.c.b16 %v4568, %v4566
        %v4609 = vpack.c.b16 %v4571, %v4569
        %v4610 = vpack.c.b16 %v4572, %v4570
        %v4611 = vpack.c.b16 %v4575, %v4573
        %v4612 = vpack.c.b16 %v4576, %v4574
        %v4613 = vpack.c.b16 %v4579, %v4577
        %v4614 = vpack.c.b16 %v4580, %v4578
        %v4615 = vpack.c.b16 %v4583, %v4581
        %v4616 = vpack.c.b16 %v4584, %v4582
        %4649 = vmatprep.subr.bf16.mxu0 %v4600
        %4650 = vmatpush1.bf16.msra.mxu0 %v4599
        %4651 = vmatprep.subr.bf16.mxu0 %v4598
        %4652 = vmatpush1.bf16.msra.mxu0 %v4597
        %4653 = vmatprep.subr.bf16.mxu0 %v4596
        %4654 = vmatpush1.bf16.msra.mxu0 %v4595
        %4655 = vmatprep.subr.bf16.mxu0 %v4594
        %4656 = vmatpush1.bf16.msra.mxu0 %v4593
        %4657 = vmatprep.subr.bf16.mxu0 %v4592
        %4658 = vmatpush1.bf16.msra.mxu0 %v4591
        %4659 = vmatprep.subr.bf16.mxu0 %v4590
        %4660 = vmatpush1.bf16.msra.mxu0 %v4589
        %4661 = vmatprep.subr.bf16.mxu0 %v4588
        %4662 = vmatpush1.bf16.msra.mxu0 %v4587
        %4663 = vmatprep.subr.bf16.mxu0 %v4586
        %4664 = vmatpush1.bf16.msra.mxu0 %v4585
        %4665 = vmatprep.subr.bf16.mxu0 %v4616
        %4666 = vmatpush2.bf16.msra.mxu0 %v4615
        %4667 = vmatprep.subr.bf16.mxu0 %v4614
        %4668 = vmatpush2.bf16.msra.mxu0 %v4613
        %4669 = vmatprep.subr.bf16.mxu0 %v4612
        %4670 = vmatpush2.bf16.msra.mxu0 %v4611
        %4671 = vmatprep.subr.bf16.mxu0 %v4610
        %4672 = vmatpush2.bf16.msra.mxu0 %v4609
        %4673 = vmatprep.subr.bf16.mxu0 %v4608
        %4674 = vmatpush2.bf16.msra.mxu0 %v4607
        %4675 = vmatprep.subr.bf16.mxu0 %v4606
        %4676 = vmatpush2.bf16.msra.mxu0 %v4605
        %4677 = vmatprep.subr.bf16.mxu0 %v4604
        %4678 = vmatpush2.bf16.msra.mxu0 %v4603
        %4679 = vmatprep.subr.bf16.mxu0 %v4602
        %4680 = vmatpush2.bf16.msra.mxu0 %v4601
        %4681 = vmatprep.mubr.bf16.mxu0 %v4486
        %4682 = vmatmul.mubr.bf16.gmra.mxu0 %v4485
        %v4683 = vpop.f32.mrf.mxu0
        %v4684 = vadd.f32 %v4418, %v4683
        %v4685 = vpop.f32.mrf.mxu0
        %v4686 = vadd.f32 %v4422, %v4685
        %v4687 = vpop.f32.mrf.mxu0
        %v4688 = vpop.f32.mrf.mxu0
        %4689 = vdwg.mxu0
        %v4690 = vmax.f32 %v4684, 0.0
        %v4691 = vmax.f32 %v4686, 0.0
        %v4692 = vld [vmem:[%s2 + $0x20] sm:$0xff]
        %v4693 = vld [vmem:[%s2 + $0x48] sm:$0xff]
        %v4694 = vld [vmem:[%s2 + $0x70] sm:$0xff]
        %v4695 = vld [vmem:[%s2 + $0x98] sm:$0xff]
        %v4696 = vld [vmem:[%s2 + $0xc0] sm:$0xff]
        %v4697 = vld [vmem:[%s2 + $0xe8] sm:$0xff]
        %v4698 = vld [vmem:[%s2 + $0x110] sm:$0xff]
        %v4699 = vld [vmem:[%s2 + $0x138] sm:$0xff]
        %v4700 = vld [vmem:[%s2 + $0x160] sm:$0xff]
        %v4701 = vld [vmem:[%s2 + $0x188] sm:$0xff]
        %v4702 = vld [vmem:[%s2 + $0x1b0] sm:$0xff]
        %v4703 = vld [vmem:[%s2 + $0x1d8] sm:$0xff]
        %v4704 = vld [vmem:[%s2 + $0x200] sm:$0xff]
        %v4705 = vld [vmem:[%s2 + $0x228] sm:$0xff]
        %v4706 = vld [vmem:[%s2 + $0x250] sm:$0xff]
        %v4707 = vld [vmem:[%s2 + $0x278] sm:$0xff]
        %v4708 = vld [vmem:[%s2 + $0x2a0] sm:$0xff]
        %v4709 = vld [vmem:[%s2 + $0x2c8] sm:$0xff]
        %v4710 = vld [vmem:[%s2 + $0x2f0] sm:$0xff]
        %v4711 = vld [vmem:[%s2 + $0x318] sm:$0xff]
        %v4712 = vld [vmem:[%s2 + $0x340] sm:$0xff]
        %v4713 = vld [vmem:[%s2 + $0x368] sm:$0xff]
        %v4714 = vld [vmem:[%s2 + $0x390] sm:$0xff]
        %v4715 = vld [vmem:[%s2 + $0x3b8] sm:$0xff]
        %v4716 = vld [vmem:[%s2 + $0x3e0] sm:$0xff]
        %v4717 = vld [vmem:[%s2 + $0x408] sm:$0xff]
        %v4718 = vld [vmem:[%s2 + $0x430] sm:$0xff]
        %v4719 = vld [vmem:[%s2 + $0x458] sm:$0xff]
        %v4720 = vld [vmem:[%s2 + $0x480] sm:$0xff]
        %v4721 = vld [vmem:[%s2 + $0x4a8] sm:$0xff]
        %v4722 = vld [vmem:[%s2 + $0x4d0] sm:$0xff]
        %v4723 = vld [vmem:[%s2 + $0x4f8] sm:$0xff]
        %s4724 = scalar_lea.vmem %s3, 4
        %v4725 = vld [vmem:[%s4724] ss:$8 sm:$0x3]
        %v4726 = vpack.c.bf16 %v4690, %v4690
        %v4727 = vpack.c.bf16 %v4691, %v4691
        %v4729 = vlaneseq
        %v4730 = vshrl.u32 %v4729, 7
        %v4731 = vsub.s32 0, %v4730
        %v4732 = vrot.slane %v4725, %v4731
        %v4733 = vlaneseq
        %v4734 = vshrl.u32 %v4733, 7
        %v4735 = vsub.s32 1, %v4734
        %v4736 = vrot.slane %v4725, %v4735
        %v4771 = vunpack.c.l.b16 %v4692
        %v4772 = vunpack.c.h.b16 %v4692
        %v4773 = vunpack.c.l.b16 %v4693
        %v4774 = vunpack.c.h.b16 %v4693
        %v4775 = vunpack.c.l.b16 %v4694
        %v4776 = vunpack.c.h.b16 %v4694
        %v4777 = vunpack.c.l.b16 %v4695
        %v4778 = vunpack.c.h.b16 %v4695
        %v4779 = vunpack.c.l.b16 %v4696
        %v4780 = vunpack.c.h.b16 %v4696
        %v4781 = vunpack.c.l.b16 %v4697
        %v4782 = vunpack.c.h.b16 %v4697
        %v4783 = vunpack.c.l.b16 %v4698
        %v4784 = vunpack.c.h.b16 %v4698
        %v4785 = vunpack.c.l.b16 %v4699
        %v4786 = vunpack.c.h.b16 %v4699
        %v4787 = vunpack.c.l.b16 %v4700
        %v4788 = vunpack.c.h.b16 %v4700
        %v4789 = vunpack.c.l.b16 %v4701
        %v4790 = vunpack.c.h.b16 %v4701
        %v4791 = vunpack.c.l.b16 %v4702
        %v4792 = vunpack.c.h.b16 %v4702
        %v4793 = vunpack.c.l.b16 %v4703
        %v4794 = vunpack.c.h.b16 %v4703
        %v4795 = vunpack.c.l.b16 %v4704
        %v4796 = vunpack.c.h.b16 %v4704
        %v4797 = vunpack.c.l.b16 %v4705
        %v4798 = vunpack.c.h.b16 %v4705
        %v4799 = vunpack.c.l.b16 %v4706
        %v4800 = vunpack.c.h.b16 %v4706
        %v4801 = vunpack.c.l.b16 %v4707
        %v4802 = vunpack.c.h.b16 %v4707
        %v4803 = vunpack.c.l.b16 %v4708
        %v4804 = vunpack.c.h.b16 %v4708
        %v4805 = vunpack.c.l.b16 %v4709
        %v4806 = vunpack.c.h.b16 %v4709
        %v4807 = vunpack.c.l.b16 %v4710
        %v4808 = vunpack.c.h.b16 %v4710
        %v4809 = vunpack.c.l.b16 %v4711
        %v4810 = vunpack.c.h.b16 %v4711
        %v4811 = vunpack.c.l.b16 %v4712
        %v4812 = vunpack.c.h.b16 %v4712
        %v4813 = vunpack.c.l.b16 %v4713
        %v4814 = vunpack.c.h.b16 %v4713
        %v4815 = vunpack.c.l.b16 %v4714
        %v4816 = vunpack.c.h.b16 %v4714
        %v4817 = vunpack.c.l.b16 %v4715
        %v4818 = vunpack.c.h.b16 %v4715
        %v4819 = vunpack.c.l.b16 %v4716
        %v4820 = vunpack.c.h.b16 %v4716
        %v4821 = vunpack.c.l.b16 %v4717
        %v4822 = vunpack.c.h.b16 %v4717
        %v4823 = vunpack.c.l.b16 %v4718
        %v4824 = vunpack.c.h.b16 %v4718
        %v4825 = vunpack.c.l.b16 %v4719
        %v4826 = vunpack.c.h.b16 %v4719
        %v4827 = vunpack.c.l.b16 %v4720
        %v4828 = vunpack.c.h.b16 %v4720
        %v4829 = vunpack.c.l.b16 %v4721
        %v4830 = vunpack.c.h.b16 %v4721
        %v4831 = vunpack.c.l.b16 %v4722
        %v4832 = vunpack.c.h.b16 %v4722
        %v4833 = vunpack.c.l.b16 %v4723
        %v4834 = vunpack.c.h.b16 %v4723
        %v4835 = vpack.c.b16 %v4773, %v4771
        %v4836 = vpack.c.b16 %v4774, %v4772
        %v4837 = vpack.c.b16 %v4777, %v4775
        %v4838 = vpack.c.b16 %v4778, %v4776
        %v4839 = vpack.c.b16 %v4781, %v4779
        %v4840 = vpack.c.b16 %v4782, %v4780
        %v4841 = vpack.c.b16 %v4785, %v4783
        %v4842 = vpack.c.b16 %v4786, %v4784
        %v4843 = vpack.c.b16 %v4789, %v4787
        %v4844 = vpack.c.b16 %v4790, %v4788
        %v4845 = vpack.c.b16 %v4793, %v4791
        %v4846 = vpack.c.b16 %v4794, %v4792
        %v4847 = vpack.c.b16 %v4797, %v4795
        %v4848 = vpack.c.b16 %v4798, %v4796
        %v4849 = vpack.c.b16 %v4801, %v4799
        %v4850 = vpack.c.b16 %v4802, %v4800
        %v4851 = vpack.c.b16 %v4805, %v4803
        %v4852 = vpack.c.b16 %v4806, %v4804
        %v4853 = vpack.c.b16 %v4809, %v4807
        %v4854 = vpack.c.b16 %v4810, %v4808
        %v4855 = vpack.c.b16 %v4813, %v4811
        %v4856 = vpack.c.b16 %v4814, %v4812
        %v4857 = vpack.c.b16 %v4817, %v4815
        %v4858 = vpack.c.b16 %v4818, %v4816
        %v4859 = vpack.c.b16 %v4821, %v4819
        %v4860 = vpack.c.b16 %v4822, %v4820
        %v4861 = vpack.c.b16 %v4825, %v4823
        %v4862 = vpack.c.b16 %v4826, %v4824
        %v4863 = vpack.c.b16 %v4829, %v4827
        %v4864 = vpack.c.b16 %v4830, %v4828
        %v4865 = vpack.c.b16 %v4833, %v4831
        %v4866 = vpack.c.b16 %v4834, %v4832
        %4899 = vmatprep.subr.bf16.mxu0 %v4850
        %4900 = vmatpush1.bf16.msra.mxu0 %v4849
        %4901 = vmatprep.subr.bf16.mxu0 %v4848
        %4902 = vmatpush1.bf16.msra.mxu0 %v4847
        %4903 = vmatprep.subr.bf16.mxu0 %v4846
        %4904 = vmatpush1.bf16.msra.mxu0 %v4845
        %4905 = vmatprep.subr.bf16.mxu0 %v4844
        %4906 = vmatpush1.bf16.msra.mxu0 %v4843
        %4907 = vmatprep.subr.bf16.mxu0 %v4842
        %4908 = vmatpush1.bf16.msra.mxu0 %v4841
        %4909 = vmatprep.subr.bf16.mxu0 %v4840
        %4910 = vmatpush1.bf16.msra.mxu0 %v4839
        %4911 = vmatprep.subr.bf16.mxu0 %v4838
        %4912 = vmatpush1.bf16.msra.mxu0 %v4837
        %4913 = vmatprep.subr.bf16.mxu0 %v4836
        %4914 = vmatpush1.bf16.msra.mxu0 %v4835
        %4915 = vmatprep.subr.bf16.mxu0 %v4866
        %4916 = vmatpush2.bf16.msra.mxu0 %v4865
        %4917 = vmatprep.subr.bf16.mxu0 %v4864
        %4918 = vmatpush2.bf16.msra.mxu0 %v4863
        %4919 = vmatprep.subr.bf16.mxu0 %v4862
        %4920 = vmatpush2.bf16.msra.mxu0 %v4861
        %4921 = vmatprep.subr.bf16.mxu0 %v4860
        %4922 = vmatpush2.bf16.msra.mxu0 %v4859
        %4923 = vmatprep.subr.bf16.mxu0 %v4858
        %4924 = vmatpush2.bf16.msra.mxu0 %v4857
        %4925 = vmatprep.subr.bf16.mxu0 %v4856
        %4926 = vmatpush2.bf16.msra.mxu0 %v4855
        %4927 = vmatprep.subr.bf16.mxu0 %v4854
        %4928 = vmatpush2.bf16.msra.mxu0 %v4853
        %4929 = vmatprep.subr.bf16.mxu0 %v4852
        %4930 = vmatpush2.bf16.msra.mxu0 %v4851
        %4931 = vmatprep.mubr.bf16.mxu0 %v4727
        %4932 = vmatmul.mubr.bf16.gmra.mxu0 %v4726
        %v4933 = vpop.f32.mrf.mxu0
        %v4934 = vadd.f32 %v4732, %v4933
        %v4935 = vpop.f32.mrf.mxu0
        %v4936 = vadd.f32 %v4736, %v4935
        %v4937 = vpop.f32.mrf.mxu0
        %v4938 = vpop.f32.mrf.mxu0
        %4939 = vdwg.mxu0
        %v4940 = vcombine.low %v4268, %v4269
        %v4941 = vcombine.low %v4270, %v4271
        %v4942 = vcombine.low %v4272, %v4273
        %v4943 = vcombine.low %v4274, %v4275
        %v4945 = vunpack.c.l.s4 1966171168
        %v4946 = vunpack.c.0.s8 %v4945
        %v4947 = vlaneseq
        %v4948 = vshrl.u32 %v4947, 7
        %v4949 = vsub.s32 %v4946, %v4948
        %v4950 = vrot.slane %v4940, %v4949
        %v4952 = vunpack.c.l.s4 1966171168
        %v4953 = vunpack.c.0.s8 %v4952
        %v4954 = vlaneseq
        %v4955 = vshrl.u32 %v4954, 7
        %v4956 = vsub.s32 %v4953, %v4955
        %v4957 = vrot.slane %v4941, %v4956
        %v4959 = vunpack.c.l.s4 1966171168
        %v4960 = vunpack.c.0.s8 %v4959
        %v4961 = vlaneseq
        %v4962 = vshrl.u32 %v4961, 7
        %v4963 = vsub.s32 %v4960, %v4962
        %v4964 = vrot.slane %v4942, %v4963
        %v4966 = vunpack.c.l.s4 1966171168
        %v4967 = vunpack.c.0.s8 %v4966
        %v4968 = vlaneseq
        %v4969 = vshrl.u32 %v4968, 7
        %v4970 = vsub.s32 %v4967, %v4969
        %v4971 = vrot.slane %v4943, %v4970
        %v4972 = vcombine.low %v4950, %v4957
        %v4973 = vcombine.high %v4950, %v4957
        %v4974 = vcombine.low %v4964, %v4971
        %v4975 = vcombine.high %v4964, %v4971
        %v4977 = vunpack.c.l.s4 1966171168
        %v4978 = vunpack.c.0.s8 %v4977
        %v4979 = vlaneseq
        %v4980 = vshrl.u32 %v4979, 7
        %v4981 = vsub.s32 %v4978, %v4980
        %v4982 = vrot.slane %v4972, %v4981
        %v4984 = vunpack.c.l.s4 1966171168
        %v4985 = vunpack.c.0.s8 %v4984
        %v4986 = vlaneseq
        %v4987 = vshrl.u32 %v4986, 7
        %v4988 = vsub.s32 %v4985, %v4987
        %v4989 = vrot.slane %v4973, %v4988
        %v4991 = vunpack.c.l.s4 1966171168
        %v4992 = vunpack.c.0.s8 %v4991
        %v4993 = vlaneseq
        %v4994 = vshrl.u32 %v4993, 7
        %v4995 = vsub.s32 %v4992, %v4994
        %v4996 = vrot.slane %v4974, %v4995
        %v4998 = vunpack.c.l.s4 1966171168
        %v4999 = vunpack.c.0.s8 %v4998
        %v5000 = vlaneseq
        %v5001 = vshrl.u32 %v5000, 7
        %v5002 = vsub.s32 %v4999, %v5001
        %v5003 = vrot.slane %v4975, %v5002
        %v5004 = vcombine.low %v4982, %v4996
        %v5005 = vcombine.low %v4989, %v5003
        %v5008 = vadd.f32 %v4934, %v5004
        %v5009 = vadd.f32 %v4936, %v5005
        %v5010 = vadd.f32 %v5008, %v5009
        %5011 = vadd.xlane.f32.xlu0 %v5010
        %v5012 = vpop.xlane.xlu0 %5011
        %v5013 = vrcp.pop 256.0
        %v5014 = vmul.f32 %v5012, %v5013
        %v5015 = vsub.f32 %v5008, %v5014
        %v5016 = vsub.f32 %v5009, %v5014
        %v5017 = vmul.f32 %v5015, %v5015
        %v5018 = vmul.f32 %v5016, %v5016
        %v5019 = vadd.f32 %v5017, %v5018
        %5020 = vadd.xlane.f32.xlu0 %v5019
        %v5021 = vpop.xlane.xlu0 %5020
        %v5022 = vmul.f32 %v5021, %v5013
        %v5023 = vadd.f32 %v5022, 1e-05
        %v5024 = vrsqrt.pop %v5023
        %v5025 = vmul.f32 %v5015, %v5024
        %v5026 = vmul.f32 %v5016, %v5024
        %s5027 = scalar_lea.vmem %s3, 5
        %v5028 = vld [vmem:[%s5027] ss:$8 sm:$0x3]
        %v5030 = vlaneseq
        %v5031 = vshrl.u32 %v5030, 7
        %v5032 = vsub.s32 0, %v5031
        %v5033 = vrot.slane %v5028, %v5032
        %v5034 = vlaneseq
        %v5035 = vshrl.u32 %v5034, 7
        %v5036 = vsub.s32 1, %v5035
        %v5037 = vrot.slane %v5028, %v5036
        %v5040 = vmul.f32 %v5025, %v5033
        %v5041 = vmul.f32 %v5026, %v5037
        %s5042 = scalar_lea.vmem %s3, 6
        %v5043 = vld [vmem:[%s5042] ss:$8 sm:$0x3]
        %v5045 = vlaneseq
        %v5046 = vshrl.u32 %v5045, 7
        %v5047 = vsub.s32 0, %v5046
        %v5048 = vrot.slane %v5043, %v5047
        %v5049 = vlaneseq
        %v5050 = vshrl.u32 %v5049, 7
        %v5051 = vsub.s32 1, %v5050
        %v5052 = vrot.slane %v5043, %v5051
        %v5055 = vadd.f32 %v5040, %v5048
        %v5056 = vadd.f32 %v5041, %v5052
        %v5059 = vcombine.low %v5055, %v5056
        %v5060 = vcombine.high %v5055, %v5056
        %v5062 = vunpack.c.l.s4 1966171168
        %v5063 = vunpack.c.0.s8 %v5062
        %v5064 = vlaneseq
        %v5065 = vshrl.u32 %v5064, 7
        %v5066 = vsub.s32 %v5063, %v5065
        %v5067 = vrot.slane %v5059, %v5066
        %v5069 = vunpack.c.l.s4 1966171168
        %v5070 = vunpack.c.0.s8 %v5069
        %v5071 = vlaneseq
        %v5072 = vshrl.u32 %v5071, 7
        %v5073 = vsub.s32 %v5070, %v5072
        %v5074 = vrot.slane %v5060, %v5073
        %v5075 = vcombine.high %v5067, %v5067
        %v5076 = vcombine.high %v5074, %v5074
        %v5078 = vunpack.c.l.s4 1966171168
        %v5079 = vunpack.c.0.s8 %v5078
        %v5080 = vlaneseq
        %v5081 = vshrl.u32 %v5080, 7
        %v5082 = vsub.s32 %v5079, %v5081
        %v5083 = vrot.slane %v5067, %v5082
        %v5085 = vunpack.c.l.s4 1966171168
        %v5086 = vunpack.c.0.s8 %v5085
        %v5087 = vlaneseq
        %v5088 = vshrl.u32 %v5087, 7
        %v5089 = vsub.s32 %v5086, %v5088
        %v5090 = vrot.slane %v5074, %v5089
        %v5092 = vunpack.c.l.s4 1966171168
        %v5093 = vunpack.c.0.s8 %v5092
        %v5094 = vlaneseq
        %v5095 = vshrl.u32 %v5094, 7
        %v5096 = vsub.s32 %v5093, %v5095
        %v5097 = vrot.slane %v5075, %v5096
        %v5099 = vunpack.c.l.s4 1966171168
        %v5100 = vunpack.c.0.s8 %v5099
        %v5101 = vlaneseq
        %v5102 = vshrl.u32 %v5101, 7
        %v5103 = vsub.s32 %v5100, %v5102
        %v5104 = vrot.slane %v5076, %v5103
        %v5105 = vcombine.high %v5083, %v5083
        %v5106 = vcombine.high %v5090, %v5090
        %v5107 = vcombine.high %v5097, %v5097
        %v5108 = vcombine.high %v5104, %v5104
        %v5117 = vlaneseq
        %vm5118 = vcmp.ge.s32.totalorder %v5117, 0
        %vm5119 = vcmp.lt.s32.totalorder %v5117, 256
        %vm5120 = vmand %vm5118, %vm5119
        %5121 = vst.msk [vmem:[%s312] sm:$0x3] %vm5120, %v5083
        %5122 = vst.msk [vmem:[%s312 + $0x2] sm:$0x3] %vm5120, %v5097
        %5123 = vst.msk [vmem:[%s312 + $0x4] sm:$0x3] %vm5120, %v5105
        %5124 = vst.msk [vmem:[%s312 + $0x6] sm:$0x3] %vm5120, %v5107
        %5125 = vst.msk [vmem:[%s312 + $0x8] sm:$0x3] %vm5120, %v5090
        %5126 = vst.msk [vmem:[%s312 + $0xa] sm:$0x3] %vm5120, %v5104
        %5127 = vst.msk [vmem:[%s312 + $0xc] sm:$0x3] %vm5120, %v5106
        %5128 = vst.msk [vmem:[%s312 + $0xe] sm:$0x3] %vm5120, %v5108
        %s5129 = sand.u32 %s200, 1
        %s5130 = scalar_lea.sflag [#allocation3], %s5129
        %s5131 = sand.u32 %s200, 1
        %s5132 = smul.addr %s5131, 16
        %s5133 = scalar_lea.vmem [#allocation2], %s5132
        // Predicated region
        $region53: #{encoder_forward.1} parent=47 // pred_check
          %p5134 = pneg %p210
        $region54: #{encoder_forward.1} parent=47 // pred_check_branch
          %5136 = sbr.rel (%p5134) target = $region56
        $region55: #{encoder_forward.1} parent=47 // pred_region
          %s5137 = smul.u32 8, %s25
          %s5139 = ssub.s32 256, 256
          %5140 = vsyncadd %s5130, %s5139
          %s5141 = smul.addr %s5137, 2
          %s5142 = smul.addr %s5141, 16
          %s5143 = scalar_lea.hbm %s7, %s5142
          %s5144 = sshll.u32 %s5133, 4
          %s5145 = int_to_ptr.vmem [resolvable:$true] %s5144
          %5150 = dma.vmem_to_hbm [thread:$0]  %s5145, 256, %s5143, %s5130, 32, 32, 2
        $region56: #{encoder_forward.1} parent=47 // pred_fallthru
          _
      $region48: #{encoder_forward.1} parent=5 // pred_fallthru
        _
      %p5151 = scmp.le.s32.totalorder 2, %s16
      // Predicated region
      $region57: #{encoder_forward.1} parent=5 // pred_check
        %p5152 = pneg %p5151
      $region58: #{encoder_forward.1} parent=5 // pred_check_branch
        %5154 = sbr.rel (%p5152) target = $region60
      $region59: #{encoder_forward.1} parent=5 // pred_region
        %s5155 = ssub.s32 %s16, 2
        // Predicated region
        $region61: #{encoder_forward.1} parent=59 // pred_check
          %p5156 = pneg %p216
        $region62: #{encoder_forward.1} parent=59 // pred_check_branch
          %5158 = sbr.rel (%p5156) target = $region64
        $region63: #{encoder_forward.1} parent=59 // pred_region
          %s5159 = sand.u32 %s201, 1
          %s5160 = scalar_lea.sflag [#allocation3], %s5159
          %s5161 = sand.u32 %s201, 1
          %s5162 = smul.addr %s5161, 16
          %s5163 = scalar_lea.vmem [#allocation2], %s5162
          %5164 = dma.done %s5160, 256
        $region64: #{encoder_forward.1} parent=59 // pred_fallthru
          _
      $region60: #{encoder_forward.1} parent=5 // pred_fallthru
        _
    $region6: #{encoder_forward.1} parent=1 // loop_footer
      %s20 = sadd.s32 1, %s16
    $region7: #{encoder_forward.1} parent=1 // loop_footer_branch
      %15 = sbr.rel target = $region3
    $region8: #{encoder_forward.1} parent=1 // loop_exit
      _
    %5165 = vsyncpa [#allocation3], 1
    %s5166 = scalar_lea.sflag [#allocation3], 1
    %5167 = vsyncpa %s5166, 1

</llo_original>
